<compile_context>
chip_gen: v7x
topology: tpu7x:2x2x1
jax: 0.10.0
libtpu: 0.0.40
codegen_flags: <defaults>
</compile_context>

<pallas_src>
import functools

import numpy as np
import jax
import jax.numpy as jnp
from jax import lax
from jax.experimental import pallas as pl
from jax.experimental.pallas import tpu as pltpu


def _vmem_limit_bytes():
    """Generation-dependent scoped-VMEM budget (3/4 of physical, capped)."""
    try:
        cap = int(pltpu.get_tpu_info().vmem_capacity_bytes)
    except Exception:  # pragma: no cover - conservative fallback
        cap = 64 * 1024 * 1024
    return max(32 * 1024 * 1024, min((cap * 3) // 4, 112 * 1024 * 1024))


def _resnet_block_kernel(x_ref, halo_ref, w1_ref, b1_ref, w2_ref, b2_ref,
                         w3_ref, b3_ref, o_ref):
    """One (image, row-tile) step of the bottleneck block.

    x_ref    : (TH, W, C)     bf16 body rows (also the residual source)
    halo_ref : (2, W, C)      bf16 clamped row above / row below the tile
    w1_ref   : (C, mid)       bf16 conv1 1x1 weights, BN1 scale folded in
    b1_ref   : (1, mid)       f32  folded BN1 bias
    w2_ref   : (9*mid, mid)   bf16 conv2 3x3 weights (kh,kw,ci)-major, BN2 folded
    b2_ref   : (1, mid)       f32
    w3_ref   : (mid, C)       bf16 conv3 1x1 weights, BN3 scale folded in
    b3_ref   : (1, C)         f32
    o_ref    : (TH, W, C)     f32
    """
    xb = x_ref[...]                        # (TH, W, C) bf16
    xh = halo_ref[...]                     # (2,  W, C) bf16
    th, w, c = xb.shape
    mid = w1_ref.shape[1]

    # conv1 (1x1, folded BN1): body + halo rows in ONE MXU matmul, M=(TH+2)*W.
    xs = jnp.concatenate([xh[0:1], xb, xh[1:2]], axis=0)        # (TH+2, W, C)
    h1 = jnp.dot(xs.reshape((th + 2) * w, c), w1_ref[...],
                 preferred_element_type=jnp.float32)
    h1 = jnp.maximum(h1 + b1_ref[...], 0.0).reshape(th + 2, w, mid)

    # SAME padding of the 3x3 conv acts on h1: halo rows that fall outside the
    # image must be exactly zero.  The wrapper ships clamped in-image rows, so
    # this must be a jnp.where row mask (not a multiplicative mask).
    i = pl.program_id(1)
    row = lax.broadcasted_iota(jnp.int32, (th + 2, 1, 1), 0)
    valid = jnp.logical_and(
        jnp.logical_or(row > 0, i > 0),
        jnp.logical_or(row < th + 1, i < pl.num_programs(1) - 1))
    h1 = jnp.where(valid, h1, 0.0).astype(jnp.bfloat16)         # bf16 im2col src

    # conv2 (3x3, folded BN2): im2col the 9 taps along K in bf16 -> one MXU
    # matmul with contraction depth 9*mid instead of nine shallow matmuls.
    zcol = jnp.zeros((th + 2, 1, mid), jnp.bfloat16)
    h1p = jnp.concatenate([zcol, h1, zcol], axis=1)             # (TH+2, W+2, mid)
    taps = [h1p[kh:kh + th, kw:kw + w, :]
            for kh in range(3) for kw in range(3)]
    patch = jnp.concatenate(taps, axis=-1).reshape(th * w, 9 * mid)
    h2 = jnp.dot(patch, w2_ref[...], preferred_element_type=jnp.float32)
    h2 = jnp.maximum(h2 + b2_ref[...], 0.0).astype(jnp.bfloat16)

    # conv3 (1x1, folded BN3) + residual add + ReLU; epilogue stays in f32.
    h3 = jnp.dot(h2, w3_ref[...], preferred_element_type=jnp.float32)
    h3 = (h3 + b3_ref[...]).reshape(th, w, c)
    o_ref[...] = jnp.maximum(xb.astype(jnp.float32) + h3, 0.0).astype(o_ref.dtype)


def make_params(channels, expansion=4, seed=0, eps=1e-5):
    """Random weights + BN stats, with BN scales folded into the conv weights."""
    mid = channels // expansion
    key = jax.random.PRNGKey(seed)
    ks = jax.random.split(key, 15)

    # torch layouts: conv.weight[co, ci, kh, kw] -> matmul-ready [.., ci, co]
    w1 = 0.1 * jax.random.normal(ks[0], (channels, mid), jnp.float32)
    w2 = 0.1 * jax.random.normal(ks[1], (3, 3, mid, mid), jnp.float32)
    w3 = 0.1 * jax.random.normal(ks[2], (mid, channels), jnp.float32)

    def bn(kg, kb, km, kv, nch):
        gamma = 1.0 + 0.1 * jax.random.normal(kg, (nch,), jnp.float32)
        beta = 0.1 * jax.random.normal(kb, (nch,), jnp.float32)
        mean = 0.1 * jax.random.normal(km, (nch,), jnp.float32)
        var = 1.0 + 0.1 * jnp.abs(jax.random.normal(kv, (nch,), jnp.float32))
        scale = gamma / jnp.sqrt(var + eps)
        bias = beta - mean * scale
        return scale, bias

    s1, b1 = bn(ks[3], ks[4], ks[5], ks[6], mid)
    s2, b2 = bn(ks[7], ks[8], ks[9], ks[10], mid)
    s3, b3 = bn(ks[11], ks[12], ks[13], ks[14], channels)

    # Fold BN scales into the conv weights (convs have bias=False); keep biases.
    w1f = (w1 * s1[None, :]).astype(jnp.bfloat16)                         # (C, mid)
    w2f = (w2 * s2[None, None, None, :]).reshape(9 * mid, mid).astype(jnp.bfloat16)
    w3f = (w3 * s3[None, :]).astype(jnp.bfloat16)                         # (mid, C)

    return dict(
        w1=w1f, b1=b1.reshape(1, mid).astype(jnp.float32),
        w2=w2f, b2=b2.reshape(1, mid).astype(jnp.float32),
        w3=w3f, b3=b3.reshape(1, channels).astype(jnp.float32),
    )


@functools.partial(jax.jit, static_argnames=("row_tile",))
def resnet_block(x_nchw, params, *, row_tile=16):
    # NCHW -> NHWC; ship activations in bf16 (the kernel is HBM-bound).
    x = jnp.transpose(x_nchw, (0, 2, 3, 1)).astype(jnp.bfloat16)
    n, h, w, c = x.shape

    # Largest divisor of H that is <= row_tile (no whole-image VMEM blow-up).
    th = max(1, min(row_tile, h))
    while h % th:
        th -= 1
    n_tiles = h // th

    # Halo rows for the 3x3 conv: gather only the 2*n_tiles rows above/below
    # each row tile (clamped at the image border; the kernel zeroes the
    # out-of-image ones post-conv1).  No full-array pad / extra HBM pass.
    starts = np.arange(n_tiles) * th
    top_idx = np.maximum(starts - 1, 0)
    bot_idx = np.minimum(starts + th, h - 1)
    halo = jnp.stack([x[:, top_idx], x[:, bot_idx]], axis=2)   # (N, nT, 2, W, C)

    out = pl.pallas_call(
        _resnet_block_kernel,
        out_shape=jax.ShapeDtypeStruct((n, h, w, c), jnp.float32),
        grid_spec=pltpu.PrefetchScalarGridSpec(
            num_scalar_prefetch=0,
            grid=(n, n_tiles),
            in_specs=[
                pl.BlockSpec((None, th, w, c), lambda b, i: (b, i, 0, 0)),
                pl.BlockSpec((None, None, 2, w, c), lambda b, i: (b, i, 0, 0, 0)),
                pl.BlockSpec(params["w1"].shape, lambda b, i: (0, 0)),
                pl.BlockSpec(params["b1"].shape, lambda b, i: (0, 0)),
                pl.BlockSpec(params["w2"].shape, lambda b, i: (0, 0)),
                pl.BlockSpec(params["b2"].shape, lambda b, i: (0, 0)),
                pl.BlockSpec(params["w3"].shape, lambda b, i: (0, 0)),
                pl.BlockSpec(params["b3"].shape, lambda b, i: (0, 0)),
            ],
            out_specs=pl.BlockSpec((None, th, w, c), lambda b, i: (b, i, 0, 0)),
        ),
        compiler_params=pltpu.CompilerParams(
            dimension_semantics=("parallel", "parallel"),   # megacore sharding
            vmem_limit_bytes=_vmem_limit_bytes(),           # per-generation budget
        ),
    )(x, halo, params["w1"], params["b1"], params["w2"], params["b2"],
      params["w3"], params["b3"])
    return jnp.transpose(out, (0, 3, 1, 2))                 # NHWC -> NCHW


def resnet_block_reference(x_nchw, params):
    """Pure-JAX (XLA conv) reference with matching numerics contract:
    activations bf16 at the kernel boundary, f32 accumulation, f32 epilogue."""
    x = jnp.transpose(x_nchw, (0, 2, 3, 1)).astype(jnp.bfloat16).astype(jnp.float32)
    dn = ("NHWC", "HWIO", "NHWC")
    c, mid = params["w1"].shape

    def conv(v, wt):
        return lax.conv_general_dilated(
            v.astype(jnp.bfloat16), wt, (1, 1), "SAME",
            dimension_numbers=dn, preferred_element_type=jnp.float32)

    w1 = params["w1"].reshape(1, 1, c, mid)
    w2 = params["w2"].reshape(3, 3, mid, mid)
    w3 = params["w3"].reshape(1, 1, mid, c)

    h1 = jnp.maximum(conv(x, w1) + params["b1"].reshape(1, 1, 1, mid), 0.0)
    h2 = jnp.maximum(conv(h1, w2) + params["b2"].reshape(1, 1, 1, mid), 0.0)
    h3 = conv(h2, w3) + params["b3"].reshape(1, 1, 1, c)
    out = jnp.maximum(x + h3, 0.0)
    return jnp.transpose(out, (0, 3, 1, 2))


if __name__ == "__main__":
    # channels=512, expansion=4 -> mid=128: channel dims are lane-aligned (x128).
    N, C, H, W = 2, 512, 16, 16
    key = jax.random.PRNGKey(0)
    x = jax.random.normal(key, (N, C, H, W), jnp.float32)   # NCHW like PyTorch

    params = make_params(C, expansion=4, seed=0)

    out = jax.block_until_ready(resnet_block(x, params, row_tile=16))
    ref = jax.block_until_ready(resnet_block_reference(x, params))

    assert out.shape == (N, C, H, W)
    max_err = jnp.max(jnp.abs(out - ref))
    assert jnp.allclose(out, ref, atol=2e-2, rtol=2e-2), (
        f"mismatch vs reference, max abs err {max_err:.3e}")

    print("KERNEL_OK")
</pallas_src>

<mosaic_0001>
module attributes {stable_mosaic.version = 11 : i64} {
  func.func @_resnet_block_kernel(%arg0: i32, %arg1: i32, %arg2: memref<1x16x16x512xbf16, #tpu.memory_space<vmem>>, %arg3: memref<1x1x2x16x512xbf16, #tpu.memory_space<vmem>>, %arg4: memref<512x128xbf16, #tpu.memory_space<vmem>>, %arg5: memref<1x128xf32, #tpu.memory_space<vmem>>, %arg6: memref<1152x128xbf16, #tpu.memory_space<vmem>>, %arg7: memref<1x128xf32, #tpu.memory_space<vmem>>, %arg8: memref<128x512xbf16, #tpu.memory_space<vmem>>, %arg9: memref<1x512xf32, #tpu.memory_space<vmem>>, %arg10: memref<1x16x16x512xf32, #tpu.memory_space<vmem>>) attributes {dimension_semantics = [#tpu.dimension_semantics<parallel>, #tpu.dimension_semantics<parallel>], iteration_bounds = array<i64: 2, 1>, scalar_prefetch = 0 : i64, scratch_operands = 0 : i64, tpu.core_type = #tpu.core_type<tc>, window_params = [{transform_indices = @transform_0, window_bounds = array<i64: 1, 16, 16, 512>}, {transform_indices = @transform_1, window_bounds = array<i64: 1, 1, 2, 16, 512>}, {pipeline_mode = #tpu.pipeline_mode<synchronous>, transform_indices = @transform_2, window_bounds = array<i64: 512, 128>}, {pipeline_mode = #tpu.pipeline_mode<synchronous>, transform_indices = @transform_3, window_bounds = array<i64: 1, 128>}, {pipeline_mode = #tpu.pipeline_mode<synchronous>, transform_indices = @transform_4, window_bounds = array<i64: 1152, 128>}, {pipeline_mode = #tpu.pipeline_mode<synchronous>, transform_indices = @transform_5, window_bounds = array<i64: 1, 128>}, {pipeline_mode = #tpu.pipeline_mode<synchronous>, transform_indices = @transform_6, window_bounds = array<i64: 128, 512>}, {pipeline_mode = #tpu.pipeline_mode<synchronous>, transform_indices = @transform_7, window_bounds = array<i64: 1, 512>}, {transform_indices = @transform_8, window_bounds = array<i64: 1, 16, 16, 512>}]} {
    %c0 = arith.constant 0 : index
    %c0_0 = arith.constant 0 : index
    %c0_1 = arith.constant 0 : index
    %c0_2 = arith.constant 0 : index
    %0 = vector.load %arg2[%c0, %c0_0, %c0_1, %c0_2] : memref<1x16x16x512xbf16, #tpu.memory_space<vmem>>, vector<1x16x16x512xbf16>
    %1 = vector.shape_cast %0 : vector<1x16x16x512xbf16> to vector<16x16x512xbf16>
    %c0_3 = arith.constant 0 : index
    %c0_4 = arith.constant 0 : index
    %c0_5 = arith.constant 0 : index
    %c0_6 = arith.constant 0 : index
    %c0_7 = arith.constant 0 : index
    %2 = vector.load %arg3[%c0_3, %c0_4, %c0_5, %c0_6, %c0_7] : memref<1x1x2x16x512xbf16, #tpu.memory_space<vmem>>, vector<1x1x2x16x512xbf16>
    %3 = vector.shape_cast %2 : vector<1x1x2x16x512xbf16> to vector<2x16x512xbf16>
    %4 = vector.extract_strided_slice %3 {offsets = [0, 0, 0], sizes = [1, 16, 512], strides = [1, 1, 1]} : vector<2x16x512xbf16> to vector<1x16x512xbf16>
    %5 = vector.extract_strided_slice %3 {offsets = [1, 0, 0], sizes = [1, 16, 512], strides = [1, 1, 1]} : vector<2x16x512xbf16> to vector<1x16x512xbf16>
    %6 = tpu.concatenate %4, %1, %5 in 0 : vector<1x16x512xbf16>, vector<16x16x512xbf16>, vector<1x16x512xbf16> -> vector<18x16x512xbf16>
    %7 = vector.shape_cast %6 : vector<18x16x512xbf16> to vector<288x512xbf16>
    %c0_8 = arith.constant 0 : index
    %c0_9 = arith.constant 0 : index
    %8 = vector.load %arg4[%c0_8, %c0_9] : memref<512x128xbf16, #tpu.memory_space<vmem>>, vector<512x128xbf16>
    %cst = arith.constant dense<0.000000e+00> : vector<288x128xf32>
    %9 = tpu.matmul %7, %8, %cst {dimension_numbers = #tpu.dot_dimension_numbers<[1], [0], [0], [1], [0, 0, 1, 1], [], []>} : vector<288x512xbf16>, vector<512x128xbf16>, vector<288x128xf32> -> vector<288x128xf32>
    %c0_10 = arith.constant 0 : index
    %c0_11 = arith.constant 0 : index
    %10 = vector.load %arg5[%c0_10, %c0_11] : memref<1x128xf32, #tpu.memory_space<vmem>>, vector<1x128xf32>
    %11 = vector.broadcast %10 : vector<1x128xf32> to vector<288x128xf32>
    %12 = arith.addf %9, %11 : vector<288x128xf32>
    %cst_12 = arith.constant 0.000000e+00 : f32
    %13 = vector.broadcast %cst_12 : f32 to vector<288x128xf32>
    %14 = arith.maximumf %12, %13 : vector<288x128xf32>
    %15 = vector.shape_cast %14 : vector<288x128xf32> to vector<18x16x128xf32>
    %16 = tpu.iota {dimensions = array<i32: 0>} : vector<18x1x1xi32>
    %c0_i32 = arith.constant 0 : i32
    %17 = vector.broadcast %c0_i32 : i32 to vector<18x1x1xi32>
    %18 = arith.cmpi sgt, %16, %17 : vector<18x1x1xi32>
    %c0_i32_13 = arith.constant 0 : i32
    %19 = arith.cmpi sgt, %arg1, %c0_i32_13 : i32
    %20 = vector.broadcast %19 : i1 to vector<18x1x1xi1>
    %21 = arith.ori %18, %20 : vector<18x1x1xi1>
    %c17_i32 = arith.constant 17 : i32
    %22 = vector.broadcast %c17_i32 : i32 to vector<18x1x1xi32>
    %23 = arith.cmpi slt, %16, %22 : vector<18x1x1xi32>
    %c0_i32_14 = arith.constant 0 : i32
    %24 = arith.cmpi slt, %arg1, %c0_i32_14 : i32
    %25 = vector.broadcast %24 : i1 to vector<18x1x1xi1>
    %26 = arith.ori %23, %25 : vector<18x1x1xi1>
    %27 = arith.andi %21, %26 : vector<18x1x1xi1>
    %cst_15 = arith.constant 0.000000e+00 : f32
    %28 = vector.shape_cast %27 : vector<18x1x1xi1> to vector<18x1x1xi1>
    %29 = vector.broadcast %28 : vector<18x1x1xi1> to vector<18x16x128xi1>
    %30 = vector.broadcast %cst_15 : f32 to vector<18x16x128xf32>
    %31 = arith.select %29, %15, %30 : vector<18x16x128xi1>, vector<18x16x128xf32>
    %32 = arith.truncf %31 : vector<18x16x128xf32> to vector<18x16x128xbf16>
    %cst_16 = arith.constant 0.000000e+00 : bf16
    %33 = vector.broadcast %cst_16 : bf16 to vector<18x1x128xbf16>
    %34 = tpu.concatenate %33, %32, %33 in 1 : vector<18x1x128xbf16>, vector<18x16x128xbf16>, vector<18x1x128xbf16> -> vector<18x18x128xbf16>
    %35 = vector.extract_strided_slice %34 {offsets = [0, 0, 0], sizes = [16, 16, 128], strides = [1, 1, 1]} : vector<18x18x128xbf16> to vector<16x16x128xbf16>
    %36 = vector.extract_strided_slice %34 {offsets = [0, 1, 0], sizes = [16, 16, 128], strides = [1, 1, 1]} : vector<18x18x128xbf16> to vector<16x16x128xbf16>
    %37 = vector.extract_strided_slice %34 {offsets = [0, 2, 0], sizes = [16, 16, 128], strides = [1, 1, 1]} : vector<18x18x128xbf16> to vector<16x16x128xbf16>
    %38 = vector.extract_strided_slice %34 {offsets = [1, 0, 0], sizes = [16, 16, 128], strides = [1, 1, 1]} : vector<18x18x128xbf16> to vector<16x16x128xbf16>
    %39 = vector.extract_strided_slice %34 {offsets = [1, 1, 0], sizes = [16, 16, 128], strides = [1, 1, 1]} : vector<18x18x128xbf16> to vector<16x16x128xbf16>
    %40 = vector.extract_strided_slice %34 {offsets = [1, 2, 0], sizes = [16, 16, 128], strides = [1, 1, 1]} : vector<18x18x128xbf16> to vector<16x16x128xbf16>
    %41 = vector.extract_strided_slice %34 {offsets = [2, 0, 0], sizes = [16, 16, 128], strides = [1, 1, 1]} : vector<18x18x128xbf16> to vector<16x16x128xbf16>
    %42 = vector.extract_strided_slice %34 {offsets = [2, 1, 0], sizes = [16, 16, 128], strides = [1, 1, 1]} : vector<18x18x128xbf16> to vector<16x16x128xbf16>
    %43 = vector.extract_strided_slice %34 {offsets = [2, 2, 0], sizes = [16, 16, 128], strides = [1, 1, 1]} : vector<18x18x128xbf16> to vector<16x16x128xbf16>
    %44 = tpu.concatenate %35, %36, %37, %38, %39, %40, %41, %42, %43 in 2 : vector<16x16x128xbf16>, vector<16x16x128xbf16>, vector<16x16x128xbf16>, vector<16x16x128xbf16>, vector<16x16x128xbf16>, vector<16x16x128xbf16>, vector<16x16x128xbf16>, vector<16x16x128xbf16>, vector<16x16x128xbf16> -> vector<16x16x1152xbf16>
    %45 = vector.shape_cast %44 : vector<16x16x1152xbf16> to vector<256x1152xbf16>
    %c0_17 = arith.constant 0 : index
    %c0_18 = arith.constant 0 : index
    %46 = vector.load %arg6[%c0_17, %c0_18] : memref<1152x128xbf16, #tpu.memory_space<vmem>>, vector<1152x128xbf16>
    %cst_19 = arith.constant dense<0.000000e+00> : vector<256x128xf32>
    %47 = tpu.matmul %45, %46, %cst_19 {dimension_numbers = #tpu.dot_dimension_numbers<[1], [0], [0], [1], [0, 0, 1, 1], [], []>} : vector<256x1152xbf16>, vector<1152x128xbf16>, vector<256x128xf32> -> vector<256x128xf32>
    %c0_20 = arith.constant 0 : index
    %c0_21 = arith.constant 0 : index
    %48 = vector.load %arg7[%c0_20, %c0_21] : memref<1x128xf32, #tpu.memory_space<vmem>>, vector<1x128xf32>
    %49 = vector.broadcast %48 : vector<1x128xf32> to vector<256x128xf32>
    %50 = arith.addf %47, %49 : vector<256x128xf32>
    %cst_22 = arith.constant 0.000000e+00 : f32
    %51 = vector.broadcast %cst_22 : f32 to vector<256x128xf32>
    %52 = arith.maximumf %50, %51 : vector<256x128xf32>
    %53 = arith.truncf %52 : vector<256x128xf32> to vector<256x128xbf16>
    %c0_23 = arith.constant 0 : index
    %c0_24 = arith.constant 0 : index
    %54 = vector.load %arg8[%c0_23, %c0_24] : memref<128x512xbf16, #tpu.memory_space<vmem>>, vector<128x512xbf16>
    %cst_25 = arith.constant dense<0.000000e+00> : vector<256x512xf32>
    %55 = tpu.matmul %53, %54, %cst_25 {dimension_numbers = #tpu.dot_dimension_numbers<[1], [0], [0], [1], [0, 0, 1, 1], [], []>} : vector<256x128xbf16>, vector<128x512xbf16>, vector<256x512xf32> -> vector<256x512xf32>
    %c0_26 = arith.constant 0 : index
    %c0_27 = arith.constant 0 : index
    %56 = vector.load %arg9[%c0_26, %c0_27] : memref<1x512xf32, #tpu.memory_space<vmem>>, vector<1x512xf32>
    %57 = vector.broadcast %56 : vector<1x512xf32> to vector<256x512xf32>
    %58 = arith.addf %55, %57 : vector<256x512xf32>
    %59 = vector.shape_cast %58 : vector<256x512xf32> to vector<16x16x512xf32>
    %60 = arith.extf %1 : vector<16x16x512xbf16> to vector<16x16x512xf32>
    %61 = arith.addf %60, %59 : vector<16x16x512xf32>
    %cst_28 = arith.constant 0.000000e+00 : f32
    %62 = vector.broadcast %cst_28 : f32 to vector<16x16x512xf32>
    %63 = arith.maximumf %61, %62 : vector<16x16x512xf32>
    %c0_29 = arith.constant 0 : index
    %c0_30 = arith.constant 0 : index
    %c0_31 = arith.constant 0 : index
    %c0_32 = arith.constant 0 : index
    %64 = vector.load %arg10[%c0_29, %c0_30, %c0_31, %c0_32] : memref<1x16x16x512xf32, #tpu.memory_space<vmem>>, vector<1x16x16x512xf32>
    %65 = vector.shape_cast %64 : vector<1x16x16x512xf32> to vector<16x16x512xf32>
    %66 = vector.shape_cast %63 : vector<16x16x512xf32> to vector<1x16x16x512xf32>
    tpu.vector_store %arg10[%c0_29, %c0_30, %c0_31, %c0_32], %66 {strides = array<i32>} : memref<1x16x16x512xf32, #tpu.memory_space<vmem>>, vector<1x16x16x512xf32>,
    return
  }
  func.func @transform_0(%arg0: i32, %arg1: i32) -> (i32, i32, i32, i32) {
    %c0_i32 = arith.constant 0 : i32
    %c0_i32_0 = arith.constant 0 : i32
    %c0_i32_1 = arith.constant 0 : i32
    return %arg0, %arg1, %c0_i32, %c0_i32_0 : i32, i32, i32, i32
  }
  func.func @transform_1(%arg0: i32, %arg1: i32) -> (i32, i32, i32, i32, i32) {
    %c0_i32 = arith.constant 0 : i32
    %c0_i32_0 = arith.constant 0 : i32
    %c0_i32_1 = arith.constant 0 : i32
    %c0_i32_2 = arith.constant 0 : i32
    return %arg0, %arg1, %c0_i32, %c0_i32_0, %c0_i32_1 : i32, i32, i32, i32, i32
  }
  func.func @transform_2(%arg0: i32, %arg1: i32) -> (i32, i32) {
    %c0_i32 = arith.constant 0 : i32
    %c0_i32_0 = arith.constant 0 : i32
    %c0_i32_1 = arith.constant 0 : i32
    return %c0_i32, %c0_i32_0 : i32, i32
  }
  func.func @transform_3(%arg0: i32, %arg1: i32) -> (i32, i32) {
    %c0_i32 = arith.constant 0 : i32
    %c0_i32_0 = arith.constant 0 : i32
    %c0_i32_1 = arith.constant 0 : i32
    return %c0_i32, %c0_i32_0 : i32, i32
  }
  func.func @transform_4(%arg0: i32, %arg1: i32) -> (i32, i32) {
    %c0_i32 = arith.constant 0 : i32
    %c0_i32_0 = arith.constant 0 : i32
    %c0_i32_1 = arith.constant 0 : i32
    return %c0_i32, %c0_i32_0 : i32, i32
  }
  func.func @transform_5(%arg0: i32, %arg1: i32) -> (i32, i32) {
    %c0_i32 = arith.constant 0 : i32
    %c0_i32_0 = arith.constant 0 : i32
    %c0_i32_1 = arith.constant 0 : i32
    return %c0_i32, %c0_i32_0 : i32, i32
  }
  func.func @transform_6(%arg0: i32, %arg1: i32) -> (i32, i32) {
    %c0_i32 = arith.constant 0 : i32
    %c0_i32_0 = arith.constant 0 : i32
    %c0_i32_1 = arith.constant 0 : i32
    return %c0_i32, %c0_i32_0 : i32, i32
  }
  func.func @transform_7(%arg0: i32, %arg1: i32) -> (i32, i32) {
    %c0_i32 = arith.constant 0 : i32
    %c0_i32_0 = arith.constant 0 : i32
    %c0_i32_1 = arith.constant 0 : i32
    return %c0_i32, %c0_i32_0 : i32, i32
  }
  func.func @transform_8(%arg0: i32, %arg1: i32) -> (i32, i32, i32, i32) {
    %c0_i32 = arith.constant 0 : i32
    %c0_i32_0 = arith.constant 0 : i32
    %c0_i32_1 = arith.constant 0 : i32
    return %arg0, %arg1, %c0_i32, %c0_i32_0 : i32, i32, i32, i32
  }
}

</mosaic_0001>

<llo_original>
// kernel: resnet_block.1
$region0: #{resnet_block.1}
  #allocation0 [shape = 'u32[]', space=smem, size = 0x4, offset = 0x4, fixed_abs, tag = 'smem constant byte address 0x4 - core index']
  #allocation1 [shape = 'u32[144,128]{1,0:T(1,128)}', space=vmem, size = 0x12000, scoped, tag = 'internal scratch']
  %s0 = inlined_call_operand.vmem [shape: bf16[2,16,16,512], index: 0, kind: input, shape index: {}]
  %s1 = inlined_call_operand.vmem [shape: bf16[2,1,2,16,512], index: 1, kind: input, shape index: {}]
  %s2 = inlined_call_operand.vmem [shape: bf16[512,128], index: 2, kind: input, shape index: {}]
  %s3 = inlined_call_operand.vmem [shape: f32[1,128], index: 3, kind: input, shape index: {}]
  %s4 = inlined_call_operand.vmem [shape: bf16[1152,128], index: 4, kind: input, shape index: {}]
  %s5 = inlined_call_operand.vmem [shape: f32[1,128], index: 5, kind: input, shape index: {}]
  %s6 = inlined_call_operand.vmem [shape: bf16[128,512], index: 6, kind: input, shape index: {}]
  %s7 = inlined_call_operand.vmem [shape: f32[1,512], index: 7, kind: input, shape index: {}]
  %s8 = inlined_call_operand.hbm [shape: f32[2,16,16,512], index: 8, kind: output, shape index: {}]
  %s9 = sld [smem:[#allocation0]]
  $region65: #{resnet_block.1} parent=0
    _
  %s11 = ssub.s32 1, %s9
  %s12 = scalar_select 0, %s11, %s9
  $region1: #{resnet_block.1} parent=0
    #allocation2 [shape = 'u8[1048576]{0}', space=vmem, size = 0x100000, scoped, tag = 'output window, operand 0']
    #allocation3 [shape = 's32[2]{0}', space=sflag, size = 0x8, scoped, tag = 'scoped memory for resnet_block.1']
    %13 = vsyncpa [#allocation3], 0
    %s14 = scalar_lea.sflag [#allocation3], 1
    %15 = vsyncpa %s14, 0
    loop: start=0, step=1, limit=4
    $region2: #{resnet_block.1} parent=1 // loop_pre_header
      _
    $region3: #{resnet_block.1} parent=1 // loop_header
      %s17 = sphi 0, %s21
      %p18 = scmp.ge.s32.totalorder %s17, 4
      %s24 = sphi 0, %s36
      %s25 = sphi 0, %s32
      %s26 = sphi 0, %s24
      %s27 = sphi 0, %s25
      %s28 = sphi 0, %s26
      %s29 = sphi 0, %s27
      %s41 = sphi 0, %s43
      %s44 = sphi 0, %s41
      %s45 = sphi 0, %s44
      %s61 = sphi 0, %s45
      %s69 = sphi 0, %s71
      %s72 = sphi 0, %s69
      %s73 = sphi 0, %s72
      %s89 = sphi 0, %s73
      %s93 = sphi 0, %s93
      %s95 = sphi 0, %s93
      %s96 = sphi 0, %s95
      %s110 = sphi 0, %s96
      %s114 = sphi 0, %s114
      %s116 = sphi 0, %s114
      %s117 = sphi 0, %s116
      %s131 = sphi 0, %s117
      %s135 = sphi 0, %s135
      %s137 = sphi 0, %s135
      %s138 = sphi 0, %s137
      %s152 = sphi 0, %s138
      %s156 = sphi 0, %s156
      %s158 = sphi 0, %s156
      %s159 = sphi 0, %s158
      %s173 = sphi 0, %s159
      %s177 = sphi 0, %s177
      %s179 = sphi 0, %s177
      %s180 = sphi 0, %s179
      %s194 = sphi 0, %s180
      %s198 = sphi 0, %s198
      %s200 = sphi 0, %s198
      %s201 = sphi 0, %s200
      %s215 = sphi 0, %s201
      %s223 = sphi 0, %s225
      %s226 = sphi 0, %s223
      %s227 = sphi 0, %s226
      %s243 = sphi 0, %s227
    $region4: #{resnet_block.1} parent=1 // loop_header_branch
      %20 = sbr.rel (%p18) target = $region8
    $region5: #{resnet_block.1} parent=1 // loop_body
      %s22 = ssub.s32 %s17, 1
      %s23 = ssub.s32 %s17, 2
      %s30 = sadd.s32 1, %s25
      %p31 = scmp.ge.s32.totalorder %s30, 1
      %s32 = scalar_select %p31, 0, %s30
      %s33 = sadd.s32 1, %s24
      %s34 = scalar_select %p31, %s33, %s24
      %p35 = scmp.ge.s32.totalorder %s34, 2
      %s36 = scalar_select %p35, 0, %s34
      %s37 = ssub.s32 %s24, %s36
      %s38 = ssub.s32 %s25, %s32
      %s39 = sor.u32 %s37, %s38
      %p40 = scmp.eq.s32.totalorder %s39, 0
      %s42 = sadd.s32 %s41, 1
      %s43 = scalar_select %p40, %s41, %s42
      %p46 = pneg %p40
      %p47 = scmp.eq.s32.totalorder %s17, 1
      %p48 = por %p46, %p47
      %p49 = scmp.ne.s32.totalorder %s41, %s44
      %p50 = scmp.eq.s32.totalorder %s17, 0
      %p51 = por %p49, %p50
      %p52 = scmp.ne.s32.totalorder %s41, %s44
      %p53 = scmp.eq.s32.totalorder %s22, 1
      %p54 = por %p52, %p53
      %p55 = scmp.ne.s32.totalorder %s44, %s45
      %p56 = scmp.eq.s32.totalorder %s22, 0
      %p57 = por %p55, %p56
      %p58 = scmp.ne.s32.totalorder %s44, %s45
      %p59 = scmp.eq.s32.totalorder %s23, 1
      %p60 = por %p58, %p59
      %p62 = scmp.ne.s32.totalorder %s45, %s61
      %p63 = scmp.eq.s32.totalorder %s23, 0
      %p64 = por %p62, %p63
      %s65 = ssub.s32 %s24, %s36
      %s66 = ssub.s32 %s25, %s32
      %s67 = sor.u32 %s65, %s66
      %p68 = scmp.eq.s32.totalorder %s67, 0
      %s70 = sadd.s32 %s69, 1
      %s71 = scalar_select %p68, %s69, %s70
      %p74 = pneg %p68
      %p75 = scmp.eq.s32.totalorder %s17, 1
      %p76 = por %p74, %p75
      %p77 = scmp.ne.s32.totalorder %s69, %s72
      %p78 = scmp.eq.s32.totalorder %s17, 0
      %p79 = por %p77, %p78
      %p80 = scmp.ne.s32.totalorder %s69, %s72
      %p81 = scmp.eq.s32.totalorder %s22, 1
      %p82 = por %p80, %p81
      %p83 = scmp.ne.s32.totalorder %s72, %s73
      %p84 = scmp.eq.s32.totalorder %s22, 0
      %p85 = por %p83, %p84
      %p86 = scmp.ne.s32.totalorder %s72, %s73
      %p87 = scmp.eq.s32.totalorder %s23, 1
      %p88 = por %p86, %p87
      %p90 = scmp.ne.s32.totalorder %s73, %s89
      %p91 = scmp.eq.s32.totalorder %s23, 0
      %p92 = por %p90, %p91
      %s94 = sadd.s32 %s93, 1
      %p97 = scmp.eq.s32.totalorder %s17, 1
      %p98 = scmp.ne.s32.totalorder %s93, %s95
      %p99 = scmp.eq.s32.totalorder %s17, 0
      %p100 = por %p98, %p99
      %p101 = scmp.ne.s32.totalorder %s93, %s95
      %p102 = scmp.eq.s32.totalorder %s22, 1
      %p103 = por %p101, %p102
      %p104 = scmp.ne.s32.totalorder %s95, %s96
      %p105 = scmp.eq.s32.totalorder %s22, 0
      %p106 = por %p104, %p105
      %p107 = scmp.ne.s32.totalorder %s95, %s96
      %p108 = scmp.eq.s32.totalorder %s23, 1
      %p109 = por %p107, %p108
      %p111 = scmp.ne.s32.totalorder %s96, %s110
      %p112 = scmp.eq.s32.totalorder %s23, 0
      %p113 = por %p111, %p112
      %s115 = sadd.s32 %s114, 1
      %p118 = scmp.eq.s32.totalorder %s17, 1
      %p119 = scmp.ne.s32.totalorder %s114, %s116
      %p120 = scmp.eq.s32.totalorder %s17, 0
      %p121 = por %p119, %p120
      %p122 = scmp.ne.s32.totalorder %s114, %s116
      %p123 = scmp.eq.s32.totalorder %s22, 1
      %p124 = por %p122, %p123
      %p125 = scmp.ne.s32.totalorder %s116, %s117
      %p126 = scmp.eq.s32.totalorder %s22, 0
      %p127 = por %p125, %p126
      %p128 = scmp.ne.s32.totalorder %s116, %s117
      %p129 = scmp.eq.s32.totalorder %s23, 1
      %p130 = por %p128, %p129
      %p132 = scmp.ne.s32.totalorder %s117, %s131
      %p133 = scmp.eq.s32.totalorder %s23, 0
      %p134 = por %p132, %p133
      %s136 = sadd.s32 %s135, 1
      %p139 = scmp.eq.s32.totalorder %s17, 1
      %p140 = scmp.ne.s32.totalorder %s135, %s137
      %p141 = scmp.eq.s32.totalorder %s17, 0
      %p142 = por %p140, %p141
      %p143 = scmp.ne.s32.totalorder %s135, %s137
      %p144 = scmp.eq.s32.totalorder %s22, 1
      %p145 = por %p143, %p144
      %p146 = scmp.ne.s32.totalorder %s137, %s138
      %p147 = scmp.eq.s32.totalorder %s22, 0
      %p148 = por %p146, %p147
      %p149 = scmp.ne.s32.totalorder %s137, %s138
      %p150 = scmp.eq.s32.totalorder %s23, 1
      %p151 = por %p149, %p150
      %p153 = scmp.ne.s32.totalorder %s138, %s152
      %p154 = scmp.eq.s32.totalorder %s23, 0
      %p155 = por %p153, %p154
      %s157 = sadd.s32 %s156, 1
      %p160 = scmp.eq.s32.totalorder %s17, 1
      %p161 = scmp.ne.s32.totalorder %s156, %s158
      %p162 = scmp.eq.s32.totalorder %s17, 0
      %p163 = por %p161, %p162
      %p164 = scmp.ne.s32.totalorder %s156, %s158
      %p165 = scmp.eq.s32.totalorder %s22, 1
      %p166 = por %p164, %p165
      %p167 = scmp.ne.s32.totalorder %s158, %s159
      %p168 = scmp.eq.s32.totalorder %s22, 0
      %p169 = por %p167, %p168
      %p170 = scmp.ne.s32.totalorder %s158, %s159
      %p171 = scmp.eq.s32.totalorder %s23, 1
      %p172 = por %p170, %p171
      %p174 = scmp.ne.s32.totalorder %s159, %s173
      %p175 = scmp.eq.s32.totalorder %s23, 0
      %p176 = por %p174, %p175
      %s178 = sadd.s32 %s177, 1
      %p181 = scmp.eq.s32.totalorder %s17, 1
      %p182 = scmp.ne.s32.totalorder %s177, %s179
      %p183 = scmp.eq.s32.totalorder %s17, 0
      %p184 = por %p182, %p183
      %p185 = scmp.ne.s32.totalorder %s177, %s179
      %p186 = scmp.eq.s32.totalorder %s22, 1
      %p187 = por %p185, %p186
      %p188 = scmp.ne.s32.totalorder %s179, %s180
      %p189 = scmp.eq.s32.totalorder %s22, 0
      %p190 = por %p188, %p189
      %p191 = scmp.ne.s32.totalorder %s179, %s180
      %p192 = scmp.eq.s32.totalorder %s23, 1
      %p193 = por %p191, %p192
      %p195 = scmp.ne.s32.totalorder %s180, %s194
      %p196 = scmp.eq.s32.totalorder %s23, 0
      %p197 = por %p195, %p196
      %s199 = sadd.s32 %s198, 1
      %p202 = scmp.eq.s32.totalorder %s17, 1
      %p203 = scmp.ne.s32.totalorder %s198, %s200
      %p204 = scmp.eq.s32.totalorder %s17, 0
      %p205 = por %p203, %p204
      %p206 = scmp.ne.s32.totalorder %s198, %s200
      %p207 = scmp.eq.s32.totalorder %s22, 1
      %p208 = por %p206, %p207
      %p209 = scmp.ne.s32.totalorder %s200, %s201
      %p210 = scmp.eq.s32.totalorder %s22, 0
      %p211 = por %p209, %p210
      %p212 = scmp.ne.s32.totalorder %s200, %s201
      %p213 = scmp.eq.s32.totalorder %s23, 1
      %p214 = por %p212, %p213
      %p216 = scmp.ne.s32.totalorder %s201, %s215
      %p217 = scmp.eq.s32.totalorder %s23, 0
      %p218 = por %p216, %p217
      %s219 = ssub.s32 %s24, %s36
      %s220 = ssub.s32 %s25, %s32
      %s221 = sor.u32 %s219, %s220
      %p222 = scmp.eq.s32.totalorder %s221, 0
      %s224 = sadd.s32 %s223, 1
      %s225 = scalar_select %p222, %s223, %s224
      %p228 = pneg %p222
      %p229 = scmp.eq.s32.totalorder %s17, 1
      %p230 = por %p228, %p229
      %p231 = scmp.ne.s32.totalorder %s223, %s226
      %p232 = scmp.eq.s32.totalorder %s17, 0
      %p233 = por %p231, %p232
      %p234 = scmp.ne.s32.totalorder %s223, %s226
      %p235 = scmp.eq.s32.totalorder %s22, 1
      %p236 = por %p234, %p235
      %p237 = scmp.ne.s32.totalorder %s226, %s227
      %p238 = scmp.eq.s32.totalorder %s22, 0
      %p239 = por %p237, %p238
      %p240 = scmp.ne.s32.totalorder %s226, %s227
      %p241 = scmp.eq.s32.totalorder %s23, 1
      %p242 = por %p240, %p241
      %p244 = scmp.ne.s32.totalorder %s227, %s243
      %p245 = scmp.eq.s32.totalorder %s23, 0
      %p246 = por %p244, %p245
      %p247 = scmp.le.s32.totalorder 1, %s17
      %p248 = scmp.lt.s32.totalorder %s17, 3
      %p249 = pnand %p247, %p248
      %p250 = pneg %p249
      // Predicated region
      $region9: #{resnet_block.1} parent=5 // pred_check
        _
      $region10: #{resnet_block.1} parent=5 // pred_check_branch
        %252 = sbr.rel (%p249) target = $region12
      $region11: #{resnet_block.1} parent=5 // pred_region
        %s253 = ssub.s32 %s17, 1
        // Predicated region
        $region13: #{resnet_block.1} parent=11 // pred_check
          %p254 = pneg %p106
        $region14: #{resnet_block.1} parent=11 // pred_check_branch
          %256 = sbr.rel (%p254) target = $region16
        $region15: #{resnet_block.1} parent=11 // pred_region
          _
        $region16: #{resnet_block.1} parent=11 // pred_fallthru
          _
        // Predicated region
        $region17: #{resnet_block.1} parent=11 // pred_check
          %p257 = pneg %p127
        $region18: #{resnet_block.1} parent=11 // pred_check_branch
          %259 = sbr.rel (%p257) target = $region20
        $region19: #{resnet_block.1} parent=11 // pred_region
          _
        $region20: #{resnet_block.1} parent=11 // pred_fallthru
          _
        // Predicated region
        $region21: #{resnet_block.1} parent=11 // pred_check
          %p260 = pneg %p148
        $region22: #{resnet_block.1} parent=11 // pred_check_branch
          %262 = sbr.rel (%p260) target = $region24
        $region23: #{resnet_block.1} parent=11 // pred_region
          _
        $region24: #{resnet_block.1} parent=11 // pred_fallthru
          _
        // Predicated region
        $region25: #{resnet_block.1} parent=11 // pred_check
          %p263 = pneg %p169
        $region26: #{resnet_block.1} parent=11 // pred_check_branch
          %265 = sbr.rel (%p263) target = $region28
        $region27: #{resnet_block.1} parent=11 // pred_region
          _
        $region28: #{resnet_block.1} parent=11 // pred_fallthru
          _
        // Predicated region
        $region29: #{resnet_block.1} parent=11 // pred_check
          %p266 = pneg %p190
        $region30: #{resnet_block.1} parent=11 // pred_check_branch
          %268 = sbr.rel (%p266) target = $region32
        $region31: #{resnet_block.1} parent=11 // pred_region
          _
        $region32: #{resnet_block.1} parent=11 // pred_fallthru
          _
        // Predicated region
        $region33: #{resnet_block.1} parent=11 // pred_check
          %p269 = pneg %p211
        $region34: #{resnet_block.1} parent=11 // pred_check_branch
          %271 = sbr.rel (%p269) target = $region36
        $region35: #{resnet_block.1} parent=11 // pred_region
          _
        $region36: #{resnet_block.1} parent=11 // pred_fallthru
          _
      $region12: #{resnet_block.1} parent=5 // pred_fallthru
        _
      %p272 = scmp.lt.s32.totalorder %s17, 2
      // Predicated region
      $region37: #{resnet_block.1} parent=5 // pred_check
        %p273 = pneg %p272
      $region38: #{resnet_block.1} parent=5 // pred_check_branch
        %275 = sbr.rel (%p273) target = $region40
      $region39: #{resnet_block.1} parent=5 // pred_region
        // Predicated region
        $region41: #{resnet_block.1} parent=39 // pred_check
          %p276 = pneg %p51
        $region42: #{resnet_block.1} parent=39 // pred_check_branch
          %278 = sbr.rel (%p276) target = $region44
        $region43: #{resnet_block.1} parent=39 // pred_region
          %s279 = smul.u32 16, %s25
          %p280 = scmp.lt.s32.totalorder %s24, 1
          %s281 = scalar_select %p280, %s24, 1
          %p282 = scmp.lt.s32.totalorder %s279, 15
          %s283 = scalar_select %p282, %s279, 15
          %s284 = smul.addr %s283, 8
          %s285 = smul.addr %s281, 128
          %s286 = sadd.s32 %s284, %s285
          %s287 = smul.addr %s286, 4
          %s288 = scalar_lea.vmem %s0, %s287
          %s289 = smul.u32 16, %s25
        $region44: #{resnet_block.1} parent=39 // pred_fallthru
          _
        // Predicated region
        $region45: #{resnet_block.1} parent=39 // pred_check
          %p290 = pneg %p79
        $region46: #{resnet_block.1} parent=39 // pred_check_branch
          %292 = sbr.rel (%p290) target = $region48
        $region47: #{resnet_block.1} parent=39 // pred_region
          %p293 = scmp.lt.s32.totalorder %s24, 1
          %s294 = scalar_select %p293, %s24, 1
          %p295 = scmp.lt.s32.totalorder %s25, 0
          %s296 = scalar_select %p295, %s25, 0
          %s297 = smul.addr %s296, 16
          %s298 = smul.addr %s294, 16
          %s299 = sadd.s32 %s297, %s298
          %s300 = smul.addr %s299, 4
          %s301 = scalar_lea.vmem %s1, %s300
        $region48: #{resnet_block.1} parent=39 // pred_fallthru
          _
      $region40: #{resnet_block.1} parent=5 // pred_fallthru
        _
      %p302 = scmp.le.s32.totalorder 1, %s17
      %p303 = scmp.lt.s32.totalorder %s17, 3
      %p304 = pnand %p302, %p303
      %p305 = pneg %p304
      // Predicated region
      $region49: #{resnet_block.1} parent=5 // pred_check
        _
      $region50: #{resnet_block.1} parent=5 // pred_check_branch
        %307 = sbr.rel (%p304) target = $region52
      $region51: #{resnet_block.1} parent=5 // pred_region
        %s308 = ssub.s32 %s17, 1
        %s309 = smul.u32 16, %s27
        %p310 = scmp.lt.s32.totalorder %s26, 1
        %s311 = scalar_select %p310, %s26, 1
        %p312 = scmp.lt.s32.totalorder %s309, 15
        %s313 = scalar_select %p312, %s309, 15
        %s314 = smul.addr %s313, 8
        %s315 = smul.addr %s311, 128
        %s316 = sadd.s32 %s314, %s315
        %s317 = smul.addr %s316, 4
        %s318 = scalar_lea.vmem %s0, %s317
        %p319 = pneg %p57
        %p320 = pneg %p54
        %p321 = scmp.lt.s32.totalorder %s26, 1
        %s322 = scalar_select %p321, %s26, 1
        %p323 = scmp.lt.s32.totalorder %s27, 0
        %s324 = scalar_select %p323, %s27, 0
        %s325 = smul.addr %s324, 16
        %s326 = smul.addr %s322, 16
        %s327 = sadd.s32 %s325, %s326
        %s328 = smul.addr %s327, 4
        %s329 = scalar_lea.vmem %s1, %s328
        %p330 = pneg %p85
        %p331 = pneg %p82
        %p332 = pneg %p106
        %p333 = pneg %p103
        %p334 = pneg %p127
        %p335 = pneg %p124
        %p336 = pneg %p148
        %p337 = pneg %p145
        %p338 = pneg %p169
        %p339 = pneg %p166
        %p340 = pneg %p190
        %p341 = pneg %p187
        %p342 = pneg %p211
        %p343 = pneg %p208
        %p344 = pneg %p239
        %p345 = pneg %p236
        %s346 = sand.u32 %s226, 1
        %s347 = scalar_lea.sflag [#allocation3], %s346
        %s348 = sand.u32 %s226, 1
        %s349 = smul.addr %s348, 1024
        %s350 = scalar_lea.vmem [#allocation2], %s349
        %s351 = smul.u32 16, %s27
        %p352 = scmp.lt.s32.totalorder %s26, 1
        %s353 = scalar_select %p352, %s26, 1
        %p354 = scmp.lt.s32.totalorder %s351, 15
        %s355 = scalar_select %p354, %s351, 15
        %s356 = smul.addr %s355, 8
        %s357 = smul.addr %s353, 128
        %s358 = sadd.s32 %s356, %s357
        %s359 = smul.addr %s358, 4
        %s360 = scalar_lea.vmem %s0, %s359
        %s361 = smul.u32 16, %s27
        %p362 = scmp.lt.s32.totalorder %s26, 1
        %s363 = scalar_select %p362, %s26, 1
        %p364 = scmp.lt.s32.totalorder %s27, 0
        %s365 = scalar_select %p364, %s27, 0
        %s366 = smul.addr %s365, 16
        %s367 = smul.addr %s363, 16
        %s368 = sadd.s32 %s366, %s367
        %s369 = smul.addr %s368, 4
        %s370 = scalar_lea.vmem %s1, %s369
        %s371 = smul.u32 16, %s27
        %v373 = vld [vmem:[%s360] sm:$0xff]
        %v374 = vld [vmem:[%s360 + $0x8] sm:$0xff]
        %v375 = vld [vmem:[%s360 + $0x10] sm:$0xff]
        %v376 = vld [vmem:[%s360 + $0x18] sm:$0xff]
        %v377 = vld [vmem:[%s360 + $0x20] sm:$0xff]
        %v378 = vld [vmem:[%s360 + $0x28] sm:$0xff]
        %v379 = vld [vmem:[%s360 + $0x30] sm:$0xff]
        %v380 = vld [vmem:[%s360 + $0x38] sm:$0xff]
        %v381 = vld [vmem:[%s360 + $0x40] sm:$0xff]
        %v382 = vld [vmem:[%s360 + $0x48] sm:$0xff]
        %v383 = vld [vmem:[%s360 + $0x50] sm:$0xff]
        %v384 = vld [vmem:[%s360 + $0x58] sm:$0xff]
        %v385 = vld [vmem:[%s360 + $0x60] sm:$0xff]
        %v386 = vld [vmem:[%s360 + $0x68] sm:$0xff]
        %v387 = vld [vmem:[%s360 + $0x70] sm:$0xff]
        %v388 = vld [vmem:[%s360 + $0x78] sm:$0xff]
        %v389 = vld [vmem:[%s360 + $0x80] sm:$0xff]
        %v390 = vld [vmem:[%s360 + $0x88] sm:$0xff]
        %v391 = vld [vmem:[%s360 + $0x90] sm:$0xff]
        %v392 = vld [vmem:[%s360 + $0x98] sm:$0xff]
        %v393 = vld [vmem:[%s360 + $0xa0] sm:$0xff]
        %v394 = vld [vmem:[%s360 + $0xa8] sm:$0xff]
        %v395 = vld [vmem:[%s360 + $0xb0] sm:$0xff]
        %v396 = vld [vmem:[%s360 + $0xb8] sm:$0xff]
        %v397 = vld [vmem:[%s360 + $0xc0] sm:$0xff]
        %v398 = vld [vmem:[%s360 + $0xc8] sm:$0xff]
        %v399 = vld [vmem:[%s360 + $0xd0] sm:$0xff]
        %v400 = vld [vmem:[%s360 + $0xd8] sm:$0xff]
        %v401 = vld [vmem:[%s360 + $0xe0] sm:$0xff]
        %v402 = vld [vmem:[%s360 + $0xe8] sm:$0xff]
        %v403 = vld [vmem:[%s360 + $0xf0] sm:$0xff]
        %v404 = vld [vmem:[%s360 + $0xf8] sm:$0xff]
        %v405 = vld [vmem:[%s360 + $0x100] sm:$0xff]
        %v406 = vld [vmem:[%s360 + $0x108] sm:$0xff]
        %v407 = vld [vmem:[%s360 + $0x110] sm:$0xff]
        %v408 = vld [vmem:[%s360 + $0x118] sm:$0xff]
        %v409 = vld [vmem:[%s360 + $0x120] sm:$0xff]
        %v410 = vld [vmem:[%s360 + $0x128] sm:$0xff]
        %v411 = vld [vmem:[%s360 + $0x130] sm:$0xff]
        %v412 = vld [vmem:[%s360 + $0x138] sm:$0xff]
        %v413 = vld [vmem:[%s360 + $0x140] sm:$0xff]
        %v414 = vld [vmem:[%s360 + $0x148] sm:$0xff]
        %v415 = vld [vmem:[%s360 + $0x150] sm:$0xff]
        %v416 = vld [vmem:[%s360 + $0x158] sm:$0xff]
        %v417 = vld [vmem:[%s360 + $0x160] sm:$0xff]
        %v418 = vld [vmem:[%s360 + $0x168] sm:$0xff]
        %v419 = vld [vmem:[%s360 + $0x170] sm:$0xff]
        %v420 = vld [vmem:[%s360 + $0x178] sm:$0xff]
        %v421 = vld [vmem:[%s360 + $0x180] sm:$0xff]
        %v422 = vld [vmem:[%s360 + $0x188] sm:$0xff]
        %v423 = vld [vmem:[%s360 + $0x190] sm:$0xff]
        %v424 = vld [vmem:[%s360 + $0x198] sm:$0xff]
        %v425 = vld [vmem:[%s360 + $0x1a0] sm:$0xff]
        %v426 = vld [vmem:[%s360 + $0x1a8] sm:$0xff]
        %v427 = vld [vmem:[%s360 + $0x1b0] sm:$0xff]
        %v428 = vld [vmem:[%s360 + $0x1b8] sm:$0xff]
        %v429 = vld [vmem:[%s360 + $0x1c0] sm:$0xff]
        %v430 = vld [vmem:[%s360 + $0x1c8] sm:$0xff]
        %v431 = vld [vmem:[%s360 + $0x1d0] sm:$0xff]
        %v432 = vld [vmem:[%s360 + $0x1d8] sm:$0xff]
        %v433 = vld [vmem:[%s360 + $0x1e0] sm:$0xff]
        %v434 = vld [vmem:[%s360 + $0x1e8] sm:$0xff]
        %v435 = vld [vmem:[%s360 + $0x1f0] sm:$0xff]
        %v436 = vld [vmem:[%s360 + $0x1f8] sm:$0xff]
        %v437 = vld [vmem:[%s370] sm:$0xff]
        %v438 = vld [vmem:[%s370 + $0x8] sm:$0xff]
        %v439 = vld [vmem:[%s370 + $0x10] sm:$0xff]
        %v440 = vld [vmem:[%s370 + $0x18] sm:$0xff]
        %v441 = vld [vmem:[%s370 + $0x20] sm:$0xff]
        %v442 = vld [vmem:[%s370 + $0x28] sm:$0xff]
        %v443 = vld [vmem:[%s370 + $0x30] sm:$0xff]
        %v444 = vld [vmem:[%s370 + $0x38] sm:$0xff]
        %v445 = vld [vmem:[%s2] sm:$0xf]
        %v446 = vld [vmem:[%s2 + $0x4] sm:$0xf]
        %v447 = vld [vmem:[%s2 + $0x8] sm:$0xf]
        %v448 = vld [vmem:[%s2 + $0xc] sm:$0xf]
        %v449 = vld [vmem:[%s2 + $0x10] sm:$0xf]
        %v450 = vld [vmem:[%s2 + $0x14] sm:$0xf]
        %v451 = vld [vmem:[%s2 + $0x18] sm:$0xf]
        %v452 = vld [vmem:[%s2 + $0x1c] sm:$0xf]
        %v453 = vld [vmem:[%s2 + $0x20] sm:$0xf]
        %v454 = vld [vmem:[%s2 + $0x24] sm:$0xf]
        %v455 = vld [vmem:[%s2 + $0x28] sm:$0xf]
        %v456 = vld [vmem:[%s2 + $0x2c] sm:$0xf]
        %v457 = vld [vmem:[%s2 + $0x30] sm:$0xf]
        %v458 = vld [vmem:[%s2 + $0x34] sm:$0xf]
        %v459 = vld [vmem:[%s2 + $0x38] sm:$0xf]
        %v460 = vld [vmem:[%s2 + $0x3c] sm:$0xf]
        %v461 = vld [vmem:[%s2 + $0x40] sm:$0xf]
        %v462 = vld [vmem:[%s2 + $0x44] sm:$0xf]
        %v463 = vld [vmem:[%s2 + $0x48] sm:$0xf]
        %v464 = vld [vmem:[%s2 + $0x4c] sm:$0xf]
        %v465 = vld [vmem:[%s2 + $0x50] sm:$0xf]
        %v466 = vld [vmem:[%s2 + $0x54] sm:$0xf]
        %v467 = vld [vmem:[%s2 + $0x58] sm:$0xf]
        %v468 = vld [vmem:[%s2 + $0x5c] sm:$0xf]
        %v469 = vld [vmem:[%s2 + $0x60] sm:$0xf]
        %v470 = vld [vmem:[%s2 + $0x64] sm:$0xf]
        %v471 = vld [vmem:[%s2 + $0x68] sm:$0xf]
        %v472 = vld [vmem:[%s2 + $0x6c] sm:$0xf]
        %v473 = vld [vmem:[%s2 + $0x70] sm:$0xf]
        %v474 = vld [vmem:[%s2 + $0x74] sm:$0xf]
        %v475 = vld [vmem:[%s2 + $0x78] sm:$0xf]
        %v476 = vld [vmem:[%s2 + $0x7c] sm:$0xf]
        %v477 = vld [vmem:[%s2 + $0x80] sm:$0xf]
        %v478 = vld [vmem:[%s2 + $0x84] sm:$0xf]
        %v479 = vld [vmem:[%s2 + $0x88] sm:$0xf]
        %v480 = vld [vmem:[%s2 + $0x8c] sm:$0xf]
        %v481 = vld [vmem:[%s2 + $0x90] sm:$0xf]
        %v482 = vld [vmem:[%s2 + $0x94] sm:$0xf]
        %v483 = vld [vmem:[%s2 + $0x98] sm:$0xf]
        %v484 = vld [vmem:[%s2 + $0x9c] sm:$0xf]
        %v485 = vld [vmem:[%s2 + $0xa0] sm:$0xf]
        %v486 = vld [vmem:[%s2 + $0xa4] sm:$0xf]
        %v487 = vld [vmem:[%s2 + $0xa8] sm:$0xf]
        %v488 = vld [vmem:[%s2 + $0xac] sm:$0xf]
        %v489 = vld [vmem:[%s2 + $0xb0] sm:$0xf]
        %v490 = vld [vmem:[%s2 + $0xb4] sm:$0xf]
        %v491 = vld [vmem:[%s2 + $0xb8] sm:$0xf]
        %v492 = vld [vmem:[%s2 + $0xbc] sm:$0xf]
        %v493 = vld [vmem:[%s2 + $0xc0] sm:$0xf]
        %v494 = vld [vmem:[%s2 + $0xc4] sm:$0xf]
        %v495 = vld [vmem:[%s2 + $0xc8] sm:$0xf]
        %v496 = vld [vmem:[%s2 + $0xcc] sm:$0xf]
        %v497 = vld [vmem:[%s2 + $0xd0] sm:$0xf]
        %v498 = vld [vmem:[%s2 + $0xd4] sm:$0xf]
        %v499 = vld [vmem:[%s2 + $0xd8] sm:$0xf]
        %v500 = vld [vmem:[%s2 + $0xdc] sm:$0xf]
        %v501 = vld [vmem:[%s2 + $0xe0] sm:$0xf]
        %v502 = vld [vmem:[%s2 + $0xe4] sm:$0xf]
        %v503 = vld [vmem:[%s2 + $0xe8] sm:$0xf]
        %v504 = vld [vmem:[%s2 + $0xec] sm:$0xf]
        %v505 = vld [vmem:[%s2 + $0xf0] sm:$0xf]
        %v506 = vld [vmem:[%s2 + $0xf4] sm:$0xf]
        %v507 = vld [vmem:[%s2 + $0xf8] sm:$0xf]
        %v508 = vld [vmem:[%s2 + $0xfc] sm:$0xf]
        %v509 = vld [vmem:[%s3] sm:$0x1]
        %v511 = vlaneseq
        %v512 = vshrl.u32 %v511, 7
        %v513 = vsub.s32 0, %v512
        %v514 = vrot.slane %v509, %v513
        %v588 = vunpack.c.l.b16 %v437
        %v589 = vunpack.c.h.b16 %v437
        %v590 = vunpack.c.l.b16 %v438
        %v591 = vunpack.c.h.b16 %v438
        %v592 = vunpack.c.l.b16 %v439
        %v593 = vunpack.c.h.b16 %v439
        %v594 = vunpack.c.l.b16 %v440
        %v595 = vunpack.c.h.b16 %v440
        %v596 = vunpack.c.l.b16 %v373
        %v597 = vunpack.c.h.b16 %v373
        %v598 = vunpack.c.l.b16 %v374
        %v599 = vunpack.c.h.b16 %v374
        %v600 = vunpack.c.l.b16 %v375
        %v601 = vunpack.c.h.b16 %v375
        %v602 = vunpack.c.l.b16 %v376
        %v603 = vunpack.c.h.b16 %v376
        %v604 = vunpack.c.l.b16 %v377
        %v605 = vunpack.c.h.b16 %v377
        %v606 = vunpack.c.l.b16 %v378
        %v607 = vunpack.c.h.b16 %v378
        %v608 = vunpack.c.l.b16 %v379
        %v609 = vunpack.c.h.b16 %v379
        %v610 = vunpack.c.l.b16 %v380
        %v611 = vunpack.c.h.b16 %v380
        %v612 = vunpack.c.l.b16 %v381
        %v613 = vunpack.c.h.b16 %v381
        %v614 = vunpack.c.l.b16 %v382
        %v615 = vunpack.c.h.b16 %v382
        %v616 = vunpack.c.l.b16 %v383
        %v617 = vunpack.c.h.b16 %v383
        %v618 = vunpack.c.l.b16 %v384
        %v619 = vunpack.c.h.b16 %v384
        %v620 = vunpack.c.l.b16 %v385
        %v621 = vunpack.c.h.b16 %v385
        %v622 = vunpack.c.l.b16 %v386
        %v623 = vunpack.c.h.b16 %v386
        %v624 = vunpack.c.l.b16 %v387
        %v625 = vunpack.c.h.b16 %v387
        %v626 = vunpack.c.l.b16 %v388
        %v627 = vunpack.c.h.b16 %v388
        %v628 = vunpack.c.l.b16 %v389
        %v629 = vunpack.c.h.b16 %v389
        %v630 = vunpack.c.l.b16 %v390
        %v631 = vunpack.c.h.b16 %v390
        %v632 = vunpack.c.l.b16 %v391
        %v633 = vunpack.c.h.b16 %v391
        %v634 = vunpack.c.l.b16 %v392
        %v635 = vunpack.c.h.b16 %v392
        %v636 = vunpack.c.l.b16 %v393
        %v637 = vunpack.c.h.b16 %v393
        %v638 = vunpack.c.l.b16 %v394
        %v639 = vunpack.c.h.b16 %v394
        %v640 = vunpack.c.l.b16 %v395
        %v641 = vunpack.c.h.b16 %v395
        %v642 = vunpack.c.l.b16 %v396
        %v643 = vunpack.c.h.b16 %v396
        %v644 = vunpack.c.l.b16 %v397
        %v645 = vunpack.c.h.b16 %v397
        %v646 = vunpack.c.l.b16 %v398
        %v647 = vunpack.c.h.b16 %v398
        %v648 = vunpack.c.l.b16 %v399
        %v649 = vunpack.c.h.b16 %v399
        %v650 = vunpack.c.l.b16 %v400
        %v651 = vunpack.c.h.b16 %v400
        %v652 = vunpack.c.l.b16 %v401
        %v653 = vunpack.c.h.b16 %v401
        %v654 = vunpack.c.l.b16 %v402
        %v655 = vunpack.c.h.b16 %v402
        %v656 = vunpack.c.l.b16 %v403
        %v657 = vunpack.c.h.b16 %v403
        %v658 = vunpack.c.l.b16 %v404
        %v659 = vunpack.c.h.b16 %v404
        %v660 = vunpack.c.l.b16 %v405
        %v661 = vunpack.c.h.b16 %v405
        %v662 = vunpack.c.l.b16 %v406
        %v663 = vunpack.c.h.b16 %v406
        %v664 = vunpack.c.l.b16 %v407
        %v665 = vunpack.c.h.b16 %v407
        %v666 = vunpack.c.l.b16 %v408
        %v667 = vunpack.c.h.b16 %v408
        %v668 = vunpack.c.l.b16 %v409
        %v669 = vunpack.c.h.b16 %v409
        %v670 = vunpack.c.l.b16 %v410
        %v671 = vunpack.c.h.b16 %v410
        %v672 = vunpack.c.l.b16 %v411
        %v673 = vunpack.c.h.b16 %v411
        %v674 = vunpack.c.l.b16 %v412
        %v675 = vunpack.c.h.b16 %v412
        %v676 = vunpack.c.l.b16 %v413
        %v677 = vunpack.c.h.b16 %v413
        %v678 = vunpack.c.l.b16 %v414
        %v679 = vunpack.c.h.b16 %v414
        %v680 = vunpack.c.l.b16 %v415
        %v681 = vunpack.c.h.b16 %v415
        %v682 = vunpack.c.l.b16 %v416
        %v683 = vunpack.c.h.b16 %v416
        %v684 = vunpack.c.l.b16 %v417
        %v685 = vunpack.c.h.b16 %v417
        %v686 = vunpack.c.l.b16 %v418
        %v687 = vunpack.c.h.b16 %v418
        %v688 = vunpack.c.l.b16 %v419
        %v689 = vunpack.c.h.b16 %v419
        %v690 = vunpack.c.l.b16 %v420
        %v691 = vunpack.c.h.b16 %v420
        %v692 = vunpack.c.l.b16 %v421
        %v693 = vunpack.c.h.b16 %v421
        %v694 = vunpack.c.l.b16 %v422
        %v695 = vunpack.c.h.b16 %v422
        %v696 = vunpack.c.l.b16 %v423
        %v697 = vunpack.c.h.b16 %v423
        %v698 = vunpack.c.l.b16 %v424
        %v699 = vunpack.c.h.b16 %v424
        %v700 = vunpack.c.l.b16 %v425
        %v701 = vunpack.c.h.b16 %v425
        %v702 = vunpack.c.l.b16 %v426
        %v703 = vunpack.c.h.b16 %v426
        %v704 = vunpack.c.l.b16 %v427
        %v705 = vunpack.c.h.b16 %v427
        %v706 = vunpack.c.l.b16 %v428
        %v707 = vunpack.c.h.b16 %v428
        %v708 = vunpack.c.l.b16 %v429
        %v709 = vunpack.c.h.b16 %v429
        %v710 = vunpack.c.l.b16 %v430
        %v711 = vunpack.c.h.b16 %v430
        %v712 = vunpack.c.l.b16 %v431
        %v713 = vunpack.c.h.b16 %v431
        %v714 = vunpack.c.l.b16 %v432
        %v715 = vunpack.c.h.b16 %v432
        %v716 = vunpack.c.l.b16 %v433
        %v717 = vunpack.c.h.b16 %v433
        %v718 = vunpack.c.l.b16 %v434
        %v719 = vunpack.c.h.b16 %v434
        %v720 = vunpack.c.l.b16 %v435
        %v721 = vunpack.c.h.b16 %v435
        %v722 = vunpack.c.l.b16 %v436
        %v723 = vunpack.c.h.b16 %v436
        %v724 = vunpack.c.l.b16 %v441
        %v725 = vunpack.c.h.b16 %v441
        %v726 = vunpack.c.l.b16 %v442
        %v727 = vunpack.c.h.b16 %v442
        %v728 = vunpack.c.l.b16 %v443
        %v729 = vunpack.c.h.b16 %v443
        %v730 = vunpack.c.l.b16 %v444
        %v731 = vunpack.c.h.b16 %v444
        %v732 = vpack.c.b16 %v592, %v588
        %v733 = vpack.c.b16 %v593, %v589
        %v734 = vpack.c.b16 %v594, %v590
        %v735 = vpack.c.b16 %v595, %v591
        %v736 = vpack.c.b16 %v600, %v596
        %v737 = vpack.c.b16 %v601, %v597
        %v738 = vpack.c.b16 %v602, %v598
        %v739 = vpack.c.b16 %v603, %v599
        %v740 = vpack.c.b16 %v608, %v604
        %v741 = vpack.c.b16 %v609, %v605
        %v742 = vpack.c.b16 %v610, %v606
        %v743 = vpack.c.b16 %v611, %v607
        %v744 = vpack.c.b16 %v616, %v612
        %v745 = vpack.c.b16 %v617, %v613
        %v746 = vpack.c.b16 %v618, %v614
        %v747 = vpack.c.b16 %v619, %v615
        %v748 = vpack.c.b16 %v624, %v620
        %v749 = vpack.c.b16 %v625, %v621
        %v750 = vpack.c.b16 %v626, %v622
        %v751 = vpack.c.b16 %v627, %v623
        %v752 = vpack.c.b16 %v632, %v628
        %v753 = vpack.c.b16 %v633, %v629
        %v754 = vpack.c.b16 %v634, %v630
        %v755 = vpack.c.b16 %v635, %v631
        %v756 = vpack.c.b16 %v640, %v636
        %v757 = vpack.c.b16 %v641, %v637
        %v758 = vpack.c.b16 %v642, %v638
        %v759 = vpack.c.b16 %v643, %v639
        %v760 = vpack.c.b16 %v648, %v644
        %v761 = vpack.c.b16 %v649, %v645
        %v762 = vpack.c.b16 %v650, %v646
        %v763 = vpack.c.b16 %v651, %v647
        %v764 = vpack.c.b16 %v656, %v652
        %v765 = vpack.c.b16 %v657, %v653
        %v766 = vpack.c.b16 %v658, %v654
        %v767 = vpack.c.b16 %v659, %v655
        %v768 = vpack.c.b16 %v664, %v660
        %v769 = vpack.c.b16 %v665, %v661
        %v770 = vpack.c.b16 %v666, %v662
        %v771 = vpack.c.b16 %v667, %v663
        %v772 = vpack.c.b16 %v672, %v668
        %v773 = vpack.c.b16 %v673, %v669
        %v774 = vpack.c.b16 %v674, %v670
        %v775 = vpack.c.b16 %v675, %v671
        %v776 = vpack.c.b16 %v680, %v676
        %v777 = vpack.c.b16 %v681, %v677
        %v778 = vpack.c.b16 %v682, %v678
        %v779 = vpack.c.b16 %v683, %v679
        %v780 = vpack.c.b16 %v688, %v684
        %v781 = vpack.c.b16 %v689, %v685
        %v782 = vpack.c.b16 %v690, %v686
        %v783 = vpack.c.b16 %v691, %v687
        %v784 = vpack.c.b16 %v696, %v692
        %v785 = vpack.c.b16 %v697, %v693
        %v786 = vpack.c.b16 %v698, %v694
        %v787 = vpack.c.b16 %v699, %v695
        %v788 = vpack.c.b16 %v704, %v700
        %v789 = vpack.c.b16 %v705, %v701
        %v790 = vpack.c.b16 %v706, %v702
        %v791 = vpack.c.b16 %v707, %v703
        %v792 = vpack.c.b16 %v712, %v708
        %v793 = vpack.c.b16 %v713, %v709
        %v794 = vpack.c.b16 %v714, %v710
        %v795 = vpack.c.b16 %v715, %v711
        %v796 = vpack.c.b16 %v720, %v716
        %v797 = vpack.c.b16 %v721, %v717
        %v798 = vpack.c.b16 %v722, %v718
        %v799 = vpack.c.b16 %v723, %v719
        %v800 = vpack.c.b16 %v728, %v724
        %v801 = vpack.c.b16 %v729, %v725
        %v802 = vpack.c.b16 %v730, %v726
        %v803 = vpack.c.b16 %v731, %v727
        %v940 = vunpack.c.l.b16 %v445
        %v941 = vunpack.c.l.b16 %v446
        %v942 = vunpack.c.l.b16 %v447
        %v943 = vunpack.c.l.b16 %v448
        %v944 = vunpack.c.l.b16 %v449
        %v945 = vunpack.c.l.b16 %v450
        %v946 = vunpack.c.l.b16 %v451
        %v947 = vunpack.c.l.b16 %v452
        %v948 = vunpack.c.l.b16 %v453
        %v949 = vunpack.c.l.b16 %v454
        %v950 = vunpack.c.l.b16 %v455
        %v951 = vunpack.c.l.b16 %v456
        %v952 = vunpack.c.l.b16 %v457
        %v953 = vunpack.c.l.b16 %v458
        %v954 = vunpack.c.l.b16 %v459
        %v955 = vunpack.c.l.b16 %v460
        %v956 = vunpack.c.l.b16 %v461
        %v957 = vunpack.c.l.b16 %v462
        %v958 = vunpack.c.l.b16 %v463
        %v959 = vunpack.c.l.b16 %v464
        %v960 = vunpack.c.l.b16 %v465
        %v961 = vunpack.c.l.b16 %v466
        %v962 = vunpack.c.l.b16 %v467
        %v963 = vunpack.c.l.b16 %v468
        %v964 = vunpack.c.l.b16 %v469
        %v965 = vunpack.c.l.b16 %v470
        %v966 = vunpack.c.l.b16 %v471
        %v967 = vunpack.c.l.b16 %v472
        %v968 = vunpack.c.l.b16 %v473
        %v969 = vunpack.c.l.b16 %v474
        %v970 = vunpack.c.l.b16 %v475
        %v971 = vunpack.c.l.b16 %v476
        %v972 = vunpack.c.l.b16 %v477
        %v973 = vunpack.c.l.b16 %v478
        %v974 = vunpack.c.l.b16 %v479
        %v975 = vunpack.c.l.b16 %v480
        %v976 = vunpack.c.l.b16 %v481
        %v977 = vunpack.c.l.b16 %v482
        %v978 = vunpack.c.l.b16 %v483
        %v979 = vunpack.c.l.b16 %v484
        %v980 = vunpack.c.l.b16 %v485
        %v981 = vunpack.c.l.b16 %v486
        %v982 = vunpack.c.l.b16 %v487
        %v983 = vunpack.c.l.b16 %v488
        %v984 = vunpack.c.l.b16 %v489
        %v985 = vunpack.c.l.b16 %v490
        %v986 = vunpack.c.l.b16 %v491
        %v987 = vunpack.c.l.b16 %v492
        %v988 = vunpack.c.l.b16 %v493
        %v989 = vunpack.c.l.b16 %v494
        %v990 = vunpack.c.l.b16 %v495
        %v991 = vunpack.c.l.b16 %v496
        %v992 = vunpack.c.l.b16 %v497
        %v993 = vunpack.c.l.b16 %v498
        %v994 = vunpack.c.l.b16 %v499
        %v995 = vunpack.c.l.b16 %v500
        %v996 = vunpack.c.l.b16 %v501
        %v997 = vunpack.c.l.b16 %v502
        %v998 = vunpack.c.l.b16 %v503
        %v999 = vunpack.c.l.b16 %v504
        %v1000 = vunpack.c.l.b16 %v505
        %v1001 = vunpack.c.l.b16 %v506
        %v1002 = vunpack.c.l.b16 %v507
        %v1003 = vunpack.c.l.b16 %v508
        %v1004 = vpack.c.b16 %v941, %v940
        %v1005 = vpack.c.b16 %v943, %v942
        %v1006 = vpack.c.b16 %v945, %v944
        %v1007 = vpack.c.b16 %v947, %v946
        %v1008 = vpack.c.b16 %v949, %v948
        %v1009 = vpack.c.b16 %v951, %v950
        %v1010 = vpack.c.b16 %v953, %v952
        %v1011 = vpack.c.b16 %v955, %v954
        %v1012 = vpack.c.b16 %v957, %v956
        %v1013 = vpack.c.b16 %v959, %v958
        %v1014 = vpack.c.b16 %v961, %v960
        %v1015 = vpack.c.b16 %v963, %v962
        %v1016 = vpack.c.b16 %v965, %v964
        %v1017 = vpack.c.b16 %v967, %v966
        %v1018 = vpack.c.b16 %v969, %v968
        %v1019 = vpack.c.b16 %v971, %v970
        %v1020 = vpack.c.b16 %v973, %v972
        %v1021 = vpack.c.b16 %v975, %v974
        %v1022 = vpack.c.b16 %v977, %v976
        %v1023 = vpack.c.b16 %v979, %v978
        %v1024 = vpack.c.b16 %v981, %v980
        %v1025 = vpack.c.b16 %v983, %v982
        %v1026 = vpack.c.b16 %v985, %v984
        %v1027 = vpack.c.b16 %v987, %v986
        %v1028 = vpack.c.b16 %v989, %v988
        %v1029 = vpack.c.b16 %v991, %v990
        %v1030 = vpack.c.b16 %v993, %v992
        %v1031 = vpack.c.b16 %v995, %v994
        %v1032 = vpack.c.b16 %v997, %v996
        %v1033 = vpack.c.b16 %v999, %v998
        %v1034 = vpack.c.b16 %v1001, %v1000
        %v1035 = vpack.c.b16 %v1003, %v1002
        %1068 = vmatprep.subr.bf16.mxu0 0
        %1069 = vmatpush1.bf16.msra.mxu0 %v1004
        %1070 = vmatprep.subr.bf16.mxu0 0
        %1071 = vmatpush1.bf16.msra.mxu0 %v1005
        %1072 = vmatprep.subr.bf16.mxu0 0
        %1073 = vmatpush1.bf16.msra.mxu0 %v1006
        %1074 = vmatprep.subr.bf16.mxu0 0
        %1075 = vmatpush1.bf16.msra.mxu0 %v1007
        %1076 = vmatprep.subr.bf16.mxu0 0
        %1077 = vmatpush1.bf16.msra.mxu0 %v1008
        %1078 = vmatprep.subr.bf16.mxu0 0
        %1079 = vmatpush1.bf16.msra.mxu0 %v1009
        %1080 = vmatprep.subr.bf16.mxu0 0
        %1081 = vmatpush1.bf16.msra.mxu0 %v1010
        %1082 = vmatprep.subr.bf16.mxu0 0
        %1083 = vmatpush1.bf16.msra.mxu0 %v1011
        %1084 = vmatprep.subr.bf16.mxu0 0
        %1085 = vmatpush1.bf16.msra.mxu0 %v1012
        %1086 = vmatprep.subr.bf16.mxu0 0
        %1087 = vmatpush1.bf16.msra.mxu0 %v1013
        %1088 = vmatprep.subr.bf16.mxu0 0
        %1089 = vmatpush1.bf16.msra.mxu0 %v1014
        %1090 = vmatprep.subr.bf16.mxu0 0
        %1091 = vmatpush1.bf16.msra.mxu0 %v1015
        %1092 = vmatprep.subr.bf16.mxu0 0
        %1093 = vmatpush1.bf16.msra.mxu0 %v1016
        %1094 = vmatprep.subr.bf16.mxu0 0
        %1095 = vmatpush1.bf16.msra.mxu0 %v1017
        %1096 = vmatprep.subr.bf16.mxu0 0
        %1097 = vmatpush1.bf16.msra.mxu0 %v1018
        %1098 = vmatprep.subr.bf16.mxu0 0
        %1099 = vmatpush1.bf16.msra.mxu0 %v1019
        %1100 = vmatprep.mubr.bf16.mxu0 %v733
        %1101 = vmatmul.mubr.bf16.gmra.mrb[0].mxu0 %v732
        %v1102 = vpop.f32.mrb[0].mxu0
        %v1103 = vadd.f32 %v514, %v1102
        %v1104 = vpop.f32.mrb[0].mxu0
        %v1105 = vpop.f32.mrb[0].mxu0
        %v1106 = vadd.f32 %v514, %v1105
        %v1107 = vpop.f32.mrb[0].mxu0
        %1108 = vmatprep.mubr.bf16.mxu0 %v737
        %1109 = vmatmul.mubr.bf16.gmra.mrb[0].mxu0 %v736
        %v1110 = vpop.f32.mrb[0].mxu0
        %v1111 = vadd.f32 %v514, %v1110
        %v1112 = vpop.f32.mrb[0].mxu0
        %v1113 = vpop.f32.mrb[0].mxu0
        %v1114 = vadd.f32 %v514, %v1113
        %v1115 = vpop.f32.mrb[0].mxu0
        %1116 = vmatprep.mubr.bf16.mxu0 %v741
        %1117 = vmatmul.mubr.bf16.gmra.mrb[0].mxu0 %v740
        %v1118 = vpop.f32.mrb[0].mxu0
        %v1119 = vadd.f32 %v514, %v1118
        %v1120 = vpop.f32.mrb[0].mxu0
        %v1121 = vpop.f32.mrb[0].mxu0
        %v1122 = vadd.f32 %v514, %v1121
        %v1123 = vpop.f32.mrb[0].mxu0
        %1124 = vmatprep.mubr.bf16.mxu0 %v745
        %1125 = vmatmul.mubr.bf16.gmra.mrb[0].mxu0 %v744
        %v1126 = vpop.f32.mrb[0].mxu0
        %v1127 = vadd.f32 %v514, %v1126
        %v1128 = vpop.f32.mrb[0].mxu0
        %v1129 = vpop.f32.mrb[0].mxu0
        %v1130 = vadd.f32 %v514, %v1129
        %v1131 = vpop.f32.mrb[0].mxu0
        %1132 = vmatprep.mubr.bf16.mxu0 %v749
        %1133 = vmatmul.mubr.bf16.gmra.mrb[0].mxu0 %v748
        %v1134 = vpop.f32.mrb[0].mxu0
        %v1135 = vadd.f32 %v514, %v1134
        %v1136 = vpop.f32.mrb[0].mxu0
        %v1137 = vpop.f32.mrb[0].mxu0
        %v1138 = vadd.f32 %v514, %v1137
        %v1139 = vpop.f32.mrb[0].mxu0
        %1140 = vmatprep.mubr.bf16.mxu0 %v753
        %1141 = vmatmul.mubr.bf16.gmra.mrb[0].mxu0 %v752
        %v1142 = vpop.f32.mrb[0].mxu0
        %v1143 = vadd.f32 %v514, %v1142
        %v1144 = vpop.f32.mrb[0].mxu0
        %v1145 = vpop.f32.mrb[0].mxu0
        %v1146 = vadd.f32 %v514, %v1145
        %v1147 = vpop.f32.mrb[0].mxu0
        %1148 = vmatprep.mubr.bf16.mxu0 %v757
        %1149 = vmatmul.mubr.bf16.gmra.mrb[0].mxu0 %v756
        %v1150 = vpop.f32.mrb[0].mxu0
        %v1151 = vadd.f32 %v514, %v1150
        %v1152 = vpop.f32.mrb[0].mxu0
        %v1153 = vpop.f32.mrb[0].mxu0
        %v1154 = vadd.f32 %v514, %v1153
        %v1155 = vpop.f32.mrb[0].mxu0
        %1156 = vmatprep.mubr.bf16.mxu0 %v761
        %1157 = vmatmul.mubr.bf16.gmra.mrb[0].mxu0 %v760
        %v1158 = vpop.f32.mrb[0].mxu0
        %v1159 = vadd.f32 %v514, %v1158
        %v1160 = vpop.f32.mrb[0].mxu0
        %v1161 = vpop.f32.mrb[0].mxu0
        %v1162 = vadd.f32 %v514, %v1161
        %v1163 = vpop.f32.mrb[0].mxu0
        %1164 = vmatprep.mubr.bf16.mxu0 %v765
        %1165 = vmatmul.mubr.bf16.gmra.mrb[0].mxu0 %v764
        %v1166 = vpop.f32.mrb[0].mxu0
        %v1167 = vadd.f32 %v514, %v1166
        %v1168 = vpop.f32.mrb[0].mxu0
        %v1169 = vpop.f32.mrb[0].mxu0
        %v1170 = vadd.f32 %v514, %v1169
        %v1171 = vpop.f32.mrb[0].mxu0
        %1172 = vmatprep.mubr.bf16.mxu0 %v769
        %1173 = vmatmul.mubr.bf16.gmra.mrb[0].mxu0 %v768
        %v1174 = vpop.f32.mrb[0].mxu0
        %v1175 = vadd.f32 %v514, %v1174
        %v1176 = vpop.f32.mrb[0].mxu0
        %v1177 = vpop.f32.mrb[0].mxu0
        %v1178 = vadd.f32 %v514, %v1177
        %v1179 = vpop.f32.mrb[0].mxu0
        %1180 = vmatprep.mubr.bf16.mxu0 %v773
        %1181 = vmatmul.mubr.bf16.gmra.mrb[0].mxu0 %v772
        %v1182 = vpop.f32.mrb[0].mxu0
        %v1183 = vadd.f32 %v514, %v1182
        %v1184 = vpop.f32.mrb[0].mxu0
        %v1185 = vpop.f32.mrb[0].mxu0
        %v1186 = vadd.f32 %v514, %v1185
        %v1187 = vpop.f32.mrb[0].mxu0
        %1188 = vmatprep.mubr.bf16.mxu0 %v777
        %1189 = vmatmul.mubr.bf16.gmra.mrb[0].mxu0 %v776
        %v1190 = vpop.f32.mrb[0].mxu0
        %v1191 = vadd.f32 %v514, %v1190
        %v1192 = vpop.f32.mrb[0].mxu0
        %v1193 = vpop.f32.mrb[0].mxu0
        %v1194 = vadd.f32 %v514, %v1193
        %v1195 = vpop.f32.mrb[0].mxu0
        %1196 = vmatprep.mubr.bf16.mxu0 %v781
        %1197 = vmatmul.mubr.bf16.gmra.mrb[0].mxu0 %v780
        %v1198 = vpop.f32.mrb[0].mxu0
        %v1199 = vadd.f32 %v514, %v1198
        %v1200 = vpop.f32.mrb[0].mxu0
        %v1201 = vpop.f32.mrb[0].mxu0
        %v1202 = vadd.f32 %v514, %v1201
        %v1203 = vpop.f32.mrb[0].mxu0
        %1204 = vmatprep.mubr.bf16.mxu0 %v785
        %1205 = vmatmul.mubr.bf16.gmra.mrb[0].mxu0 %v784
        %v1206 = vpop.f32.mrb[0].mxu0
        %v1207 = vadd.f32 %v514, %v1206
        %v1208 = vpop.f32.mrb[0].mxu0
        %v1209 = vpop.f32.mrb[0].mxu0
        %v1210 = vadd.f32 %v514, %v1209
        %v1211 = vpop.f32.mrb[0].mxu0
        %1212 = vmatprep.mubr.bf16.mxu0 %v789
        %1213 = vmatmul.mubr.bf16.gmra.mrb[0].mxu0 %v788
        %v1214 = vpop.f32.mrb[0].mxu0
        %v1215 = vadd.f32 %v514, %v1214
        %v1216 = vpop.f32.mrb[0].mxu0
        %v1217 = vpop.f32.mrb[0].mxu0
        %v1218 = vadd.f32 %v514, %v1217
        %v1219 = vpop.f32.mrb[0].mxu0
        %1220 = vmatprep.mubr.bf16.mxu0 %v793
        %1221 = vmatmul.mubr.bf16.gmra.mrb[0].mxu0 %v792
        %v1222 = vpop.f32.mrb[0].mxu0
        %v1223 = vadd.f32 %v514, %v1222
        %v1224 = vpop.f32.mrb[0].mxu0
        %v1225 = vpop.f32.mrb[0].mxu0
        %v1226 = vadd.f32 %v514, %v1225
        %v1227 = vpop.f32.mrb[0].mxu0
        %1228 = vmatprep.mubr.bf16.mxu0 %v797
        %1229 = vmatmul.mubr.bf16.gmra.mrb[0].mxu0 %v796
        %v1230 = vpop.f32.mrb[0].mxu0
        %v1231 = vadd.f32 %v514, %v1230
        %v1232 = vpop.f32.mrb[0].mxu0
        %v1233 = vpop.f32.mrb[0].mxu0
        %v1234 = vadd.f32 %v514, %v1233
        %v1235 = vpop.f32.mrb[0].mxu0
        %1236 = vmatprep.mubr.bf16.mxu0 %v801
        %1237 = vmatmul.mubr.bf16.gmra.mrb[0].mxu0 %v800
        %v1238 = vpop.f32.mrb[0].mxu0
        %v1239 = vadd.f32 %v514, %v1238
        %v1240 = vpop.f32.mrb[0].mxu0
        %v1241 = vpop.f32.mrb[0].mxu0
        %v1242 = vadd.f32 %v514, %v1241
        %v1243 = vpop.f32.mrb[0].mxu0
        %1244 = vdwg.mxu0
        %1245 = vmatprep.subr.bf16.mxu0 0
        %1246 = vmatpush1.bf16.msra.mxu0 %v1020
        %1247 = vmatprep.subr.bf16.mxu0 0
        %1248 = vmatpush1.bf16.msra.mxu0 %v1021
        %1249 = vmatprep.subr.bf16.mxu0 0
        %1250 = vmatpush1.bf16.msra.mxu0 %v1022
        %1251 = vmatprep.subr.bf16.mxu0 0
        %1252 = vmatpush1.bf16.msra.mxu0 %v1023
        %1253 = vmatprep.subr.bf16.mxu0 0
        %1254 = vmatpush1.bf16.msra.mxu0 %v1024
        %1255 = vmatprep.subr.bf16.mxu0 0
        %1256 = vmatpush1.bf16.msra.mxu0 %v1025
        %1257 = vmatprep.subr.bf16.mxu0 0
        %1258 = vmatpush1.bf16.msra.mxu0 %v1026
        %1259 = vmatprep.subr.bf16.mxu0 0
        %1260 = vmatpush1.bf16.msra.mxu0 %v1027
        %1261 = vmatprep.subr.bf16.mxu0 0
        %1262 = vmatpush1.bf16.msra.mxu0 %v1028
        %1263 = vmatprep.subr.bf16.mxu0 0
        %1264 = vmatpush1.bf16.msra.mxu0 %v1029
        %1265 = vmatprep.subr.bf16.mxu0 0
        %1266 = vmatpush1.bf16.msra.mxu0 %v1030
        %1267 = vmatprep.subr.bf16.mxu0 0
        %1268 = vmatpush1.bf16.msra.mxu0 %v1031
        %1269 = vmatprep.subr.bf16.mxu0 0
        %1270 = vmatpush1.bf16.msra.mxu0 %v1032
        %1271 = vmatprep.subr.bf16.mxu0 0
        %1272 = vmatpush1.bf16.msra.mxu0 %v1033
        %1273 = vmatprep.subr.bf16.mxu0 0
        %1274 = vmatpush1.bf16.msra.mxu0 %v1034
        %1275 = vmatprep.subr.bf16.mxu0 0
        %1276 = vmatpush1.bf16.msra.mxu0 %v1035
        %1277 = vmatprep.mubr.bf16.mxu0 %v735
        %1278 = vmatmul.mubr.bf16.gmra.mrb[0].mxu0 %v734
        %v1279 = vpop.f32.mrb[0].mxu0
        %v1280 = vadd.f32 %v1103, %v1279
        %v1281 = vpop.f32.mrb[0].mxu0
        %v1282 = vpop.f32.mrb[0].mxu0
        %v1283 = vadd.f32 %v1106, %v1282
        %v1284 = vpop.f32.mrb[0].mxu0
        %1285 = vmatprep.mubr.bf16.mxu0 %v739
        %1286 = vmatmul.mubr.bf16.gmra.mrb[0].mxu0 %v738
        %v1287 = vpop.f32.mrb[0].mxu0
        %v1288 = vadd.f32 %v1111, %v1287
        %v1289 = vpop.f32.mrb[0].mxu0
        %v1290 = vpop.f32.mrb[0].mxu0
        %v1291 = vadd.f32 %v1114, %v1290
        %v1292 = vpop.f32.mrb[0].mxu0
        %1293 = vmatprep.mubr.bf16.mxu0 %v743
        %1294 = vmatmul.mubr.bf16.gmra.mrb[0].mxu0 %v742
        %v1295 = vpop.f32.mrb[0].mxu0
        %v1296 = vadd.f32 %v1119, %v1295
        %v1297 = vpop.f32.mrb[0].mxu0
        %v1298 = vpop.f32.mrb[0].mxu0
        %v1299 = vadd.f32 %v1122, %v1298
        %v1300 = vpop.f32.mrb[0].mxu0
        %1301 = vmatprep.mubr.bf16.mxu0 %v747
        %1302 = vmatmul.mubr.bf16.gmra.mrb[0].mxu0 %v746
        %v1303 = vpop.f32.mrb[0].mxu0
        %v1304 = vadd.f32 %v1127, %v1303
        %v1305 = vpop.f32.mrb[0].mxu0
        %v1306 = vpop.f32.mrb[0].mxu0
        %v1307 = vadd.f32 %v1130, %v1306
        %v1308 = vpop.f32.mrb[0].mxu0
        %1309 = vmatprep.mubr.bf16.mxu0 %v751
        %1310 = vmatmul.mubr.bf16.gmra.mrb[0].mxu0 %v750
        %v1311 = vpop.f32.mrb[0].mxu0
        %v1312 = vadd.f32 %v1135, %v1311
        %v1313 = vpop.f32.mrb[0].mxu0
        %v1314 = vpop.f32.mrb[0].mxu0
        %v1315 = vadd.f32 %v1138, %v1314
        %v1316 = vpop.f32.mrb[0].mxu0
        %1317 = vmatprep.mubr.bf16.mxu0 %v755
        %1318 = vmatmul.mubr.bf16.gmra.mrb[0].mxu0 %v754
        %v1319 = vpop.f32.mrb[0].mxu0
        %v1320 = vadd.f32 %v1143, %v1319
        %v1321 = vpop.f32.mrb[0].mxu0
        %v1322 = vpop.f32.mrb[0].mxu0
        %v1323 = vadd.f32 %v1146, %v1322
        %v1324 = vpop.f32.mrb[0].mxu0
        %1325 = vmatprep.mubr.bf16.mxu0 %v759
        %1326 = vmatmul.mubr.bf16.gmra.mrb[0].mxu0 %v758
        %v1327 = vpop.f32.mrb[0].mxu0
        %v1328 = vadd.f32 %v1151, %v1327
        %v1329 = vpop.f32.mrb[0].mxu0
        %v1330 = vpop.f32.mrb[0].mxu0
        %v1331 = vadd.f32 %v1154, %v1330
        %v1332 = vpop.f32.mrb[0].mxu0
        %1333 = vmatprep.mubr.bf16.mxu0 %v763
        %1334 = vmatmul.mubr.bf16.gmra.mrb[0].mxu0 %v762
        %v1335 = vpop.f32.mrb[0].mxu0
        %v1336 = vadd.f32 %v1159, %v1335
        %v1337 = vpop.f32.mrb[0].mxu0
        %v1338 = vpop.f32.mrb[0].mxu0
        %v1339 = vadd.f32 %v1162, %v1338
        %v1340 = vpop.f32.mrb[0].mxu0
        %1341 = vmatprep.mubr.bf16.mxu0 %v767
        %1342 = vmatmul.mubr.bf16.gmra.mrb[0].mxu0 %v766
        %v1343 = vpop.f32.mrb[0].mxu0
        %v1344 = vadd.f32 %v1167, %v1343
        %v1345 = vpop.f32.mrb[0].mxu0
        %v1346 = vpop.f32.mrb[0].mxu0
        %v1347 = vadd.f32 %v1170, %v1346
        %v1348 = vpop.f32.mrb[0].mxu0
        %1349 = vmatprep.mubr.bf16.mxu0 %v771
        %1350 = vmatmul.mubr.bf16.gmra.mrb[0].mxu0 %v770
        %v1351 = vpop.f32.mrb[0].mxu0
        %v1352 = vadd.f32 %v1175, %v1351
        %v1353 = vpop.f32.mrb[0].mxu0
        %v1354 = vpop.f32.mrb[0].mxu0
        %v1355 = vadd.f32 %v1178, %v1354
        %v1356 = vpop.f32.mrb[0].mxu0
        %1357 = vmatprep.mubr.bf16.mxu0 %v775
        %1358 = vmatmul.mubr.bf16.gmra.mrb[0].mxu0 %v774
        %v1359 = vpop.f32.mrb[0].mxu0
        %v1360 = vadd.f32 %v1183, %v1359
        %v1361 = vpop.f32.mrb[0].mxu0
        %v1362 = vpop.f32.mrb[0].mxu0
        %v1363 = vadd.f32 %v1186, %v1362
        %v1364 = vpop.f32.mrb[0].mxu0
        %1365 = vmatprep.mubr.bf16.mxu0 %v779
        %1366 = vmatmul.mubr.bf16.gmra.mrb[0].mxu0 %v778
        %v1367 = vpop.f32.mrb[0].mxu0
        %v1368 = vadd.f32 %v1191, %v1367
        %v1369 = vpop.f32.mrb[0].mxu0
        %v1370 = vpop.f32.mrb[0].mxu0
        %v1371 = vadd.f32 %v1194, %v1370
        %v1372 = vpop.f32.mrb[0].mxu0
        %1373 = vmatprep.mubr.bf16.mxu0 %v783
        %1374 = vmatmul.mubr.bf16.gmra.mrb[0].mxu0 %v782
        %v1375 = vpop.f32.mrb[0].mxu0
        %v1376 = vadd.f32 %v1199, %v1375
        %v1377 = vpop.f32.mrb[0].mxu0
        %v1378 = vpop.f32.mrb[0].mxu0
        %v1379 = vadd.f32 %v1202, %v1378
        %v1380 = vpop.f32.mrb[0].mxu0
        %1381 = vmatprep.mubr.bf16.mxu0 %v787
        %1382 = vmatmul.mubr.bf16.gmra.mrb[0].mxu0 %v786
        %v1383 = vpop.f32.mrb[0].mxu0
        %v1384 = vadd.f32 %v1207, %v1383
        %v1385 = vpop.f32.mrb[0].mxu0
        %v1386 = vpop.f32.mrb[0].mxu0
        %v1387 = vadd.f32 %v1210, %v1386
        %v1388 = vpop.f32.mrb[0].mxu0
        %1389 = vmatprep.mubr.bf16.mxu0 %v791
        %1390 = vmatmul.mubr.bf16.gmra.mrb[0].mxu0 %v790
        %v1391 = vpop.f32.mrb[0].mxu0
        %v1392 = vadd.f32 %v1215, %v1391
        %v1393 = vpop.f32.mrb[0].mxu0
        %v1394 = vpop.f32.mrb[0].mxu0
        %v1395 = vadd.f32 %v1218, %v1394
        %v1396 = vpop.f32.mrb[0].mxu0
        %1397 = vmatprep.mubr.bf16.mxu0 %v795
        %1398 = vmatmul.mubr.bf16.gmra.mrb[0].mxu0 %v794
        %v1399 = vpop.f32.mrb[0].mxu0
        %v1400 = vadd.f32 %v1223, %v1399
        %v1401 = vpop.f32.mrb[0].mxu0
        %v1402 = vpop.f32.mrb[0].mxu0
        %v1403 = vadd.f32 %v1226, %v1402
        %v1404 = vpop.f32.mrb[0].mxu0
        %1405 = vmatprep.mubr.bf16.mxu0 %v799
        %1406 = vmatmul.mubr.bf16.gmra.mrb[0].mxu0 %v798
        %v1407 = vpop.f32.mrb[0].mxu0
        %v1408 = vadd.f32 %v1231, %v1407
        %v1409 = vpop.f32.mrb[0].mxu0
        %v1410 = vpop.f32.mrb[0].mxu0
        %v1411 = vadd.f32 %v1234, %v1410
        %v1412 = vpop.f32.mrb[0].mxu0
        %1413 = vmatprep.mubr.bf16.mxu0 %v803
        %1414 = vmatmul.mubr.bf16.gmra.mrb[0].mxu0 %v802
        %v1415 = vpop.f32.mrb[0].mxu0
        %v1416 = vadd.f32 %v1239, %v1415
        %v1417 = vpop.f32.mrb[0].mxu0
        %v1418 = vpop.f32.mrb[0].mxu0
        %v1419 = vadd.f32 %v1242, %v1418
        %v1420 = vpop.f32.mrb[0].mxu0
        %1421 = vdwg.mxu0
        %v1422 = vmax.f32 %v1280, 0.0
        %v1423 = vmax.f32 %v1283, 0.0
        %v1424 = vmax.f32 %v1288, 0.0
        %v1425 = vmax.f32 %v1291, 0.0
        %v1426 = vmax.f32 %v1296, 0.0
        %v1427 = vmax.f32 %v1299, 0.0
        %v1428 = vmax.f32 %v1304, 0.0
        %v1429 = vmax.f32 %v1307, 0.0
        %v1430 = vmax.f32 %v1312, 0.0
        %v1431 = vmax.f32 %v1315, 0.0
        %v1432 = vmax.f32 %v1320, 0.0
        %v1433 = vmax.f32 %v1323, 0.0
        %v1434 = vmax.f32 %v1328, 0.0
        %v1435 = vmax.f32 %v1331, 0.0
        %v1436 = vmax.f32 %v1336, 0.0
        %v1437 = vmax.f32 %v1339, 0.0
        %v1438 = vmax.f32 %v1344, 0.0
        %v1439 = vmax.f32 %v1347, 0.0
        %v1440 = vmax.f32 %v1352, 0.0
        %v1441 = vmax.f32 %v1355, 0.0
        %v1442 = vmax.f32 %v1360, 0.0
        %v1443 = vmax.f32 %v1363, 0.0
        %v1444 = vmax.f32 %v1368, 0.0
        %v1445 = vmax.f32 %v1371, 0.0
        %v1446 = vmax.f32 %v1376, 0.0
        %v1447 = vmax.f32 %v1379, 0.0
        %v1448 = vmax.f32 %v1384, 0.0
        %v1449 = vmax.f32 %v1387, 0.0
        %v1450 = vmax.f32 %v1392, 0.0
        %v1451 = vmax.f32 %v1395, 0.0
        %v1452 = vmax.f32 %v1400, 0.0
        %v1453 = vmax.f32 %v1403, 0.0
        %v1454 = vmax.f32 %v1408, 0.0
        %v1455 = vmax.f32 %v1411, 0.0
        %v1456 = vmax.f32 %v1416, 0.0
        %v1457 = vmax.f32 %v1419, 0.0
        %p1458 = scmp.gt.s32.totalorder %s27, 0
        %s1459 = scalar_select %p1458, 1, 0
        %v1460 = vstv %s1459
        %vm1461 = vcmp.eq.s32.totalorder %v1460, 1
        %p1462 = scmp.lt.s32.totalorder %s27, 0
        %s1463 = scalar_select %p1462, 1, 0
        %v1464 = vstv %s1463
        %vm1465 = vcmp.eq.s32.totalorder %v1464, 1
        %v1466 = vsel %vm1461, 1, 0
        %v1467 = vsel %vm1465, 1, 0
        %vm1468 = vcmp.eq.s32.totalorder %v1466, 1
        %vm1469 = vcmp.eq.s32.totalorder %v1467, 1
        %v1470 = vsel %vm1468, %v1422, 0.0
        %v1471 = vsel %vm1468, %v1423, 0.0
        %v1472 = vsel 1, %v1424, 0.0
        %v1473 = vsel 1, %v1425, 0.0
        %v1474 = vsel 1, %v1426, 0.0
        %v1475 = vsel 1, %v1427, 0.0
        %v1476 = vsel 1, %v1428, 0.0
        %v1477 = vsel 1, %v1429, 0.0
        %v1478 = vsel 1, %v1430, 0.0
        %v1479 = vsel 1, %v1431, 0.0
        %v1480 = vsel 1, %v1432, 0.0
        %v1481 = vsel 1, %v1433, 0.0
        %v1482 = vsel 1, %v1434, 0.0
        %v1483 = vsel 1, %v1435, 0.0
        %v1484 = vsel 1, %v1436, 0.0
        %v1485 = vsel 1, %v1437, 0.0
        %v1486 = vsel 1, %v1438, 0.0
        %v1487 = vsel 1, %v1439, 0.0
        %v1488 = vsel 1, %v1440, 0.0
        %v1489 = vsel 1, %v1441, 0.0
        %v1490 = vsel 1, %v1442, 0.0
        %v1491 = vsel 1, %v1443, 0.0
        %v1492 = vsel 1, %v1444, 0.0
        %v1493 = vsel 1, %v1445, 0.0
        %v1494 = vsel 1, %v1446, 0.0
        %v1495 = vsel 1, %v1447, 0.0
        %v1496 = vsel 1, %v1448, 0.0
        %v1497 = vsel 1, %v1449, 0.0
        %v1498 = vsel 1, %v1450, 0.0
        %v1499 = vsel 1, %v1451, 0.0
        %v1500 = vsel 1, %v1452, 0.0
        %v1501 = vsel 1, %v1453, 0.0
        %v1502 = vsel 1, %v1454, 0.0
        %v1503 = vsel 1, %v1455, 0.0
        %v1504 = vsel %vm1469, %v1456, 0.0
        %v1505 = vsel %vm1469, %v1457, 0.0
        %v1506 = vpack.c.bf16 %v1471, %v1470
        %v1507 = vpack.c.bf16 %v1473, %v1472
        %v1508 = vpack.c.bf16 %v1475, %v1474
        %v1509 = vpack.c.bf16 %v1477, %v1476
        %v1510 = vpack.c.bf16 %v1479, %v1478
        %v1511 = vpack.c.bf16 %v1481, %v1480
        %v1512 = vpack.c.bf16 %v1483, %v1482
        %v1513 = vpack.c.bf16 %v1485, %v1484
        %v1514 = vpack.c.bf16 %v1487, %v1486
        %v1515 = vpack.c.bf16 %v1489, %v1488
        %v1516 = vpack.c.bf16 %v1491, %v1490
        %v1517 = vpack.c.bf16 %v1493, %v1492
        %v1518 = vpack.c.bf16 %v1495, %v1494
        %v1519 = vpack.c.bf16 %v1497, %v1496
        %v1520 = vpack.c.bf16 %v1499, %v1498
        %v1521 = vpack.c.bf16 %v1501, %v1500
        %v1522 = vpack.c.bf16 %v1503, %v1502
        %v1523 = vpack.c.bf16 %v1505, %v1504
        %v1525 = vshrl.u32 %v1506, 16
        %v1527 = vrot.slane %v1525, 7
        %v1528 = vshll.u32 %v1506, 16
        %v1530 = vor.u32 %v1527, %v1528
        %v1532 = vshrl.u32 %v1507, 16
        %v1534 = vrot.slane %v1532, 7
        %v1535 = vshll.u32 %v1507, 16
        %v1537 = vor.u32 %v1534, %v1535
        %v1539 = vshrl.u32 %v1508, 16
        %v1541 = vrot.slane %v1539, 7
        %v1542 = vshll.u32 %v1508, 16
        %v1544 = vor.u32 %v1541, %v1542
        %v1546 = vshrl.u32 %v1509, 16
        %v1548 = vrot.slane %v1546, 7
        %v1549 = vshll.u32 %v1509, 16
        %v1551 = vor.u32 %v1548, %v1549
        %v1553 = vshrl.u32 %v1510, 16
        %v1555 = vrot.slane %v1553, 7
        %v1556 = vshll.u32 %v1510, 16
        %v1558 = vor.u32 %v1555, %v1556
        %v1560 = vshrl.u32 %v1511, 16
        %v1562 = vrot.slane %v1560, 7
        %v1563 = vshll.u32 %v1511, 16
        %v1565 = vor.u32 %v1562, %v1563
        %v1567 = vshrl.u32 %v1512, 16
        %v1569 = vrot.slane %v1567, 7
        %v1570 = vshll.u32 %v1512, 16
        %v1572 = vor.u32 %v1569, %v1570
        %v1574 = vshrl.u32 %v1513, 16
        %v1576 = vrot.slane %v1574, 7
        %v1577 = vshll.u32 %v1513, 16
        %v1579 = vor.u32 %v1576, %v1577
        %v1581 = vshrl.u32 %v1514, 16
        %v1583 = vrot.slane %v1581, 7
        %v1584 = vshll.u32 %v1514, 16
        %v1586 = vor.u32 %v1583, %v1584
        %v1588 = vshrl.u32 %v1515, 16
        %v1590 = vrot.slane %v1588, 7
        %v1591 = vshll.u32 %v1515, 16
        %v1593 = vor.u32 %v1590, %v1591
        %v1595 = vshrl.u32 %v1516, 16
        %v1597 = vrot.slane %v1595, 7
        %v1598 = vshll.u32 %v1516, 16
        %v1600 = vor.u32 %v1597, %v1598
        %v1602 = vshrl.u32 %v1517, 16
        %v1604 = vrot.slane %v1602, 7
        %v1605 = vshll.u32 %v1517, 16
        %v1607 = vor.u32 %v1604, %v1605
        %v1609 = vshrl.u32 %v1518, 16
        %v1611 = vrot.slane %v1609, 7
        %v1612 = vshll.u32 %v1518, 16
        %v1614 = vor.u32 %v1611, %v1612
        %v1616 = vshrl.u32 %v1519, 16
        %v1618 = vrot.slane %v1616, 7
        %v1619 = vshll.u32 %v1519, 16
        %v1621 = vor.u32 %v1618, %v1619
        %v1623 = vshrl.u32 %v1520, 16
        %v1625 = vrot.slane %v1623, 7
        %v1626 = vshll.u32 %v1520, 16
        %v1628 = vor.u32 %v1625, %v1626
        %v1630 = vshrl.u32 %v1521, 16
        %v1632 = vrot.slane %v1630, 7
        %v1633 = vshll.u32 %v1521, 16
        %v1635 = vor.u32 %v1632, %v1633
        %v1637 = vshrl.u32 %v1522, 16
        %v1639 = vrot.slane %v1637, 7
        %v1640 = vshll.u32 %v1522, 16
        %v1642 = vor.u32 %v1639, %v1640
        %v1644 = vshrl.u32 %v1523, 16
        %v1646 = vrot.slane %v1644, 7
        %v1647 = vshll.u32 %v1523, 16
        %v1649 = vor.u32 %v1646, %v1647
        %vm1686 = vcmask 1040384
        %vm1687 = vsmask.f32 256
        %vm1688 = vmand %vm1686, %vm1687
        %v1689 = vsel %vm1688, 0, %v1530
        %v1690 = vsel %vm1688, 0, %v1537
        %v1691 = vsel %vm1688, 0, %v1544
        %v1692 = vsel %vm1688, 0, %v1551
        %v1693 = vsel %vm1688, 0, %v1558
        %v1694 = vsel %vm1688, 0, %v1565
        %v1695 = vsel %vm1688, 0, %v1572
        %v1696 = vsel %vm1688, 0, %v1579
        %v1697 = vsel %vm1688, 0, %v1586
        %v1698 = vsel %vm1688, 0, %v1593
        %v1699 = vsel %vm1688, 0, %v1600
        %v1700 = vsel %vm1688, 0, %v1607
        %v1701 = vsel %vm1688, 0, %v1614
        %v1702 = vsel %vm1688, 0, %v1621
        %v1703 = vsel %vm1688, 0, %v1628
        %v1704 = vsel %vm1688, 0, %v1635
        %v1705 = vsel %vm1688, 0, %v1642
        %v1706 = vsel %vm1688, 0, %v1649
        %v1707 = vsel %vm1688, %v1527, 0
        %v1708 = vsel %vm1688, %v1534, 0
        %v1709 = vsel %vm1688, %v1541, 0
        %v1710 = vsel %vm1688, %v1548, 0
        %v1711 = vsel %vm1688, %v1555, 0
        %v1712 = vsel %vm1688, %v1562, 0
        %v1713 = vsel %vm1688, %v1569, 0
        %v1714 = vsel %vm1688, %v1576, 0
        %v1715 = vsel %vm1688, %v1583, 0
        %v1716 = vsel %vm1688, %v1590, 0
        %v1717 = vsel %vm1688, %v1597, 0
        %v1718 = vsel %vm1688, %v1604, 0
        %v1719 = vsel %vm1688, %v1611, 0
        %v1720 = vsel %vm1688, %v1618, 0
        %v1721 = vsel %vm1688, %v1625, 0
        %v1722 = vsel %vm1688, %v1632, 0
        %v1723 = vsel %vm1688, %v1639, 0
        %v1724 = vsel %vm1688, %v1646, 0
        %vm1725 = vsmask.f32 7424
        %v1727 = vshrl.u32 %v1689, 16
        %v1729 = vshll.u32 %v1689, 16
        %v1731 = vrot.slane %v1729, 1
        %v1732 = vor.u32 %v1727, %v1731
        %v1734 = vshll.u32 %v1707, 16
        %v1736 = vrot.slane %v1734, 1
        %v1737 = vsel %vm1725, %v1732, %v1736
        %v1739 = vshrl.u32 %v1690, 16
        %v1741 = vshll.u32 %v1690, 16
        %v1743 = vrot.slane %v1741, 1
        %v1744 = vor.u32 %v1739, %v1743
        %v1746 = vshll.u32 %v1708, 16
        %v1748 = vrot.slane %v1746, 1
        %v1749 = vsel %vm1725, %v1744, %v1748
        %v1751 = vshrl.u32 %v1691, 16
        %v1753 = vshll.u32 %v1691, 16
        %v1755 = vrot.slane %v1753, 1
        %v1756 = vor.u32 %v1751, %v1755
        %v1758 = vshll.u32 %v1709, 16
        %v1760 = vrot.slane %v1758, 1
        %v1761 = vsel %vm1725, %v1756, %v1760
        %v1763 = vshrl.u32 %v1692, 16
        %v1765 = vshll.u32 %v1692, 16
        %v1767 = vrot.slane %v1765, 1
        %v1768 = vor.u32 %v1763, %v1767
        %v1770 = vshll.u32 %v1710, 16
        %v1772 = vrot.slane %v1770, 1
        %v1773 = vsel %vm1725, %v1768, %v1772
        %v1775 = vshrl.u32 %v1693, 16
        %v1777 = vshll.u32 %v1693, 16
        %v1779 = vrot.slane %v1777, 1
        %v1780 = vor.u32 %v1775, %v1779
        %v1782 = vshll.u32 %v1711, 16
        %v1784 = vrot.slane %v1782, 1
        %v1785 = vsel %vm1725, %v1780, %v1784
        %v1787 = vshrl.u32 %v1694, 16
        %v1789 = vshll.u32 %v1694, 16
        %v1791 = vrot.slane %v1789, 1
        %v1792 = vor.u32 %v1787, %v1791
        %v1794 = vshll.u32 %v1712, 16
        %v1796 = vrot.slane %v1794, 1
        %v1797 = vsel %vm1725, %v1792, %v1796
        %v1799 = vshrl.u32 %v1695, 16
        %v1801 = vshll.u32 %v1695, 16
        %v1803 = vrot.slane %v1801, 1
        %v1804 = vor.u32 %v1799, %v1803
        %v1806 = vshll.u32 %v1713, 16
        %v1808 = vrot.slane %v1806, 1
        %v1809 = vsel %vm1725, %v1804, %v1808
        %v1811 = vshrl.u32 %v1696, 16
        %v1813 = vshll.u32 %v1696, 16
        %v1815 = vrot.slane %v1813, 1
        %v1816 = vor.u32 %v1811, %v1815
        %v1818 = vshll.u32 %v1714, 16
        %v1820 = vrot.slane %v1818, 1
        %v1821 = vsel %vm1725, %v1816, %v1820
        %v1823 = vshrl.u32 %v1697, 16
        %v1825 = vshll.u32 %v1697, 16
        %v1827 = vrot.slane %v1825, 1
        %v1828 = vor.u32 %v1823, %v1827
        %v1830 = vshll.u32 %v1715, 16
        %v1832 = vrot.slane %v1830, 1
        %v1833 = vsel %vm1725, %v1828, %v1832
        %v1835 = vshrl.u32 %v1698, 16
        %v1837 = vshll.u32 %v1698, 16
        %v1839 = vrot.slane %v1837, 1
        %v1840 = vor.u32 %v1835, %v1839
        %v1842 = vshll.u32 %v1716, 16
        %v1844 = vrot.slane %v1842, 1
        %v1845 = vsel %vm1725, %v1840, %v1844
        %v1847 = vshrl.u32 %v1699, 16
        %v1849 = vshll.u32 %v1699, 16
        %v1851 = vrot.slane %v1849, 1
        %v1852 = vor.u32 %v1847, %v1851
        %v1854 = vshll.u32 %v1717, 16
        %v1856 = vrot.slane %v1854, 1
        %v1857 = vsel %vm1725, %v1852, %v1856
        %v1859 = vshrl.u32 %v1700, 16
        %v1861 = vshll.u32 %v1700, 16
        %v1863 = vrot.slane %v1861, 1
        %v1864 = vor.u32 %v1859, %v1863
        %v1866 = vshll.u32 %v1718, 16
        %v1868 = vrot.slane %v1866, 1
        %v1869 = vsel %vm1725, %v1864, %v1868
        %v1871 = vshrl.u32 %v1701, 16
        %v1873 = vshll.u32 %v1701, 16
        %v1875 = vrot.slane %v1873, 1
        %v1876 = vor.u32 %v1871, %v1875
        %v1878 = vshll.u32 %v1719, 16
        %v1880 = vrot.slane %v1878, 1
        %v1881 = vsel %vm1725, %v1876, %v1880
        %v1883 = vshrl.u32 %v1702, 16
        %v1885 = vshll.u32 %v1702, 16
        %v1887 = vrot.slane %v1885, 1
        %v1888 = vor.u32 %v1883, %v1887
        %v1890 = vshll.u32 %v1720, 16
        %v1892 = vrot.slane %v1890, 1
        %v1893 = vsel %vm1725, %v1888, %v1892
        %v1895 = vshrl.u32 %v1703, 16
        %v1897 = vshll.u32 %v1703, 16
        %v1899 = vrot.slane %v1897, 1
        %v1900 = vor.u32 %v1895, %v1899
        %v1902 = vshll.u32 %v1721, 16
        %v1904 = vrot.slane %v1902, 1
        %v1905 = vsel %vm1725, %v1900, %v1904
        %v1907 = vshrl.u32 %v1704, 16
        %v1909 = vshll.u32 %v1704, 16
        %v1911 = vrot.slane %v1909, 1
        %v1912 = vor.u32 %v1907, %v1911
        %v1914 = vshll.u32 %v1722, 16
        %v1916 = vrot.slane %v1914, 1
        %v1917 = vsel %vm1725, %v1912, %v1916
        %vm1966 = vcmask 1046528
        %v1967 = vrot.slane %v1689, 1
        %v1968 = vrot.slane %v1707, 1
        %v1969 = vsel %vm1966, %v1967, %v1968
        %v1970 = vrot.slane %v1690, 1
        %v1971 = vrot.slane %v1708, 1
        %v1972 = vsel %vm1966, %v1970, %v1971
        %v1973 = vrot.slane %v1691, 1
        %v1974 = vrot.slane %v1709, 1
        %v1975 = vsel %vm1966, %v1973, %v1974
        %v1976 = vrot.slane %v1692, 1
        %v1977 = vrot.slane %v1710, 1
        %v1978 = vsel %vm1966, %v1976, %v1977
        %v1979 = vrot.slane %v1693, 1
        %v1980 = vrot.slane %v1711, 1
        %v1981 = vsel %vm1966, %v1979, %v1980
        %v1982 = vrot.slane %v1694, 1
        %v1983 = vrot.slane %v1712, 1
        %v1984 = vsel %vm1966, %v1982, %v1983
        %v1985 = vrot.slane %v1695, 1
        %v1986 = vrot.slane %v1713, 1
        %v1987 = vsel %vm1966, %v1985, %v1986
        %v1988 = vrot.slane %v1696, 1
        %v1989 = vrot.slane %v1714, 1
        %v1990 = vsel %vm1966, %v1988, %v1989
        %v1991 = vrot.slane %v1697, 1
        %v1992 = vrot.slane %v1715, 1
        %v1993 = vsel %vm1966, %v1991, %v1992
        %v1994 = vrot.slane %v1698, 1
        %v1995 = vrot.slane %v1716, 1
        %v1996 = vsel %vm1966, %v1994, %v1995
        %v1997 = vrot.slane %v1699, 1
        %v1998 = vrot.slane %v1717, 1
        %v1999 = vsel %vm1966, %v1997, %v1998
        %v2000 = vrot.slane %v1700, 1
        %v2001 = vrot.slane %v1718, 1
        %v2002 = vsel %vm1966, %v2000, %v2001
        %v2003 = vrot.slane %v1701, 1
        %v2004 = vrot.slane %v1719, 1
        %v2005 = vsel %vm1966, %v2003, %v2004
        %v2006 = vrot.slane %v1702, 1
        %v2007 = vrot.slane %v1720, 1
        %v2008 = vsel %vm1966, %v2006, %v2007
        %v2009 = vrot.slane %v1703, 1
        %v2010 = vrot.slane %v1721, 1
        %v2011 = vsel %vm1966, %v2009, %v2010
        %v2012 = vrot.slane %v1704, 1
        %v2013 = vrot.slane %v1722, 1
        %v2014 = vsel %vm1966, %v2012, %v2013
        %v2032 = vshrl.u32 %v1705, 16
        %v2034 = vshll.u32 %v1705, 16
        %v2036 = vrot.slane %v2034, 1
        %v2037 = vor.u32 %v2032, %v2036
        %v2039 = vshll.u32 %v1723, 16
        %v2041 = vrot.slane %v2039, 1
        %v2042 = vsel %vm1725, %v2037, %v2041
        %v2046 = vrot.slane %v1705, 1
        %v2047 = vrot.slane %v1723, 1
        %v2048 = vsel %vm1966, %v2046, %v2047
        %v2051 = vshrl.u32 %v1706, 16
        %v2053 = vshll.u32 %v1706, 16
        %v2055 = vrot.slane %v2053, 1
        %v2056 = vor.u32 %v2051, %v2055
        %v2058 = vshll.u32 %v1724, 16
        %v2060 = vrot.slane %v2058, 1
        %v2061 = vsel %vm1725, %v2056, %v2060
        %v2065 = vrot.slane %v1706, 1
        %v2066 = vrot.slane %v1724, 1
        %v2067 = vsel %vm1966, %v2065, %v2066
        %v2069 = vld [vmem:[%s4] sm:$0xf]
        %v2070 = vld [vmem:[%s4 + $0x4] sm:$0xf]
        %v2071 = vld [vmem:[%s4 + $0x8] sm:$0xf]
        %v2072 = vld [vmem:[%s4 + $0xc] sm:$0xf]
        %v2073 = vld [vmem:[%s4 + $0x10] sm:$0xf]
        %v2074 = vld [vmem:[%s4 + $0x14] sm:$0xf]
        %v2075 = vld [vmem:[%s4 + $0x18] sm:$0xf]
        %v2076 = vld [vmem:[%s4 + $0x1c] sm:$0xf]
        %v2077 = vld [vmem:[%s4 + $0x20] sm:$0xf]
        %v2078 = vld [vmem:[%s4 + $0x24] sm:$0xf]
        %v2079 = vld [vmem:[%s4 + $0x28] sm:$0xf]
        %v2080 = vld [vmem:[%s4 + $0x2c] sm:$0xf]
        %v2081 = vld [vmem:[%s4 + $0x30] sm:$0xf]
        %v2082 = vld [vmem:[%s4 + $0x34] sm:$0xf]
        %v2083 = vld [vmem:[%s4 + $0x38] sm:$0xf]
        %v2084 = vld [vmem:[%s4 + $0x3c] sm:$0xf]
        %v2085 = vld [vmem:[%s4 + $0x40] sm:$0xf]
        %v2086 = vld [vmem:[%s4 + $0x44] sm:$0xf]
        %v2087 = vld [vmem:[%s4 + $0x48] sm:$0xf]
        %v2088 = vld [vmem:[%s4 + $0x4c] sm:$0xf]
        %v2089 = vld [vmem:[%s4 + $0x50] sm:$0xf]
        %v2090 = vld [vmem:[%s4 + $0x54] sm:$0xf]
        %v2091 = vld [vmem:[%s4 + $0x58] sm:$0xf]
        %v2092 = vld [vmem:[%s4 + $0x5c] sm:$0xf]
        %v2093 = vld [vmem:[%s4 + $0x60] sm:$0xf]
        %v2094 = vld [vmem:[%s4 + $0x64] sm:$0xf]
        %v2095 = vld [vmem:[%s4 + $0x68] sm:$0xf]
        %v2096 = vld [vmem:[%s4 + $0x6c] sm:$0xf]
        %v2097 = vld [vmem:[%s4 + $0x70] sm:$0xf]
        %v2098 = vld [vmem:[%s4 + $0x74] sm:$0xf]
        %v2099 = vld [vmem:[%s4 + $0x78] sm:$0xf]
        %v2100 = vld [vmem:[%s4 + $0x7c] sm:$0xf]
        %v2101 = vld [vmem:[%s4 + $0x80] sm:$0xf]
        %v2102 = vld [vmem:[%s4 + $0x84] sm:$0xf]
        %v2103 = vld [vmem:[%s4 + $0x88] sm:$0xf]
        %v2104 = vld [vmem:[%s4 + $0x8c] sm:$0xf]
        %v2105 = vld [vmem:[%s4 + $0x90] sm:$0xf]
        %v2106 = vld [vmem:[%s4 + $0x94] sm:$0xf]
        %v2107 = vld [vmem:[%s4 + $0x98] sm:$0xf]
        %v2108 = vld [vmem:[%s4 + $0x9c] sm:$0xf]
        %v2109 = vld [vmem:[%s4 + $0xa0] sm:$0xf]
        %v2110 = vld [vmem:[%s4 + $0xa4] sm:$0xf]
        %v2111 = vld [vmem:[%s4 + $0xa8] sm:$0xf]
        %v2112 = vld [vmem:[%s4 + $0xac] sm:$0xf]
        %v2113 = vld [vmem:[%s4 + $0xb0] sm:$0xf]
        %v2114 = vld [vmem:[%s4 + $0xb4] sm:$0xf]
        %v2115 = vld [vmem:[%s4 + $0xb8] sm:$0xf]
        %v2116 = vld [vmem:[%s4 + $0xbc] sm:$0xf]
        %v2117 = vld [vmem:[%s4 + $0xc0] sm:$0xf]
        %v2118 = vld [vmem:[%s4 + $0xc4] sm:$0xf]
        %v2119 = vld [vmem:[%s4 + $0xc8] sm:$0xf]
        %v2120 = vld [vmem:[%s4 + $0xcc] sm:$0xf]
        %v2121 = vld [vmem:[%s4 + $0xd0] sm:$0xf]
        %v2122 = vld [vmem:[%s4 + $0xd4] sm:$0xf]
        %v2123 = vld [vmem:[%s4 + $0xd8] sm:$0xf]
        %v2124 = vld [vmem:[%s4 + $0xdc] sm:$0xf]
        %v2125 = vld [vmem:[%s4 + $0xe0] sm:$0xf]
        %v2126 = vld [vmem:[%s4 + $0xe4] sm:$0xf]
        %v2127 = vld [vmem:[%s4 + $0xe8] sm:$0xf]
        %v2128 = vld [vmem:[%s4 + $0xec] sm:$0xf]
        %v2129 = vld [vmem:[%s4 + $0xf0] sm:$0xf]
        %v2130 = vld [vmem:[%s4 + $0xf4] sm:$0xf]
        %v2131 = vld [vmem:[%s4 + $0xf8] sm:$0xf]
        %v2132 = vld [vmem:[%s4 + $0xfc] sm:$0xf]
        %v2133 = vld [vmem:[%s4 + $0x100] sm:$0xf]
        %v2134 = vld [vmem:[%s4 + $0x104] sm:$0xf]
        %v2135 = vld [vmem:[%s4 + $0x108] sm:$0xf]
        %v2136 = vld [vmem:[%s4 + $0x10c] sm:$0xf]
        %v2137 = vld [vmem:[%s4 + $0x110] sm:$0xf]
        %v2138 = vld [vmem:[%s4 + $0x114] sm:$0xf]
        %v2139 = vld [vmem:[%s4 + $0x118] sm:$0xf]
        %v2140 = vld [vmem:[%s4 + $0x11c] sm:$0xf]
        %v2141 = vld [vmem:[%s4 + $0x120] sm:$0xf]
        %v2142 = vld [vmem:[%s4 + $0x124] sm:$0xf]
        %v2143 = vld [vmem:[%s4 + $0x128] sm:$0xf]
        %v2144 = vld [vmem:[%s4 + $0x12c] sm:$0xf]
        %v2145 = vld [vmem:[%s4 + $0x130] sm:$0xf]
        %v2146 = vld [vmem:[%s4 + $0x134] sm:$0xf]
        %v2147 = vld [vmem:[%s4 + $0x138] sm:$0xf]
        %v2148 = vld [vmem:[%s4 + $0x13c] sm:$0xf]
        %v2149 = vld [vmem:[%s4 + $0x140] sm:$0xf]
        %v2150 = vld [vmem:[%s4 + $0x144] sm:$0xf]
        %v2151 = vld [vmem:[%s4 + $0x148] sm:$0xf]
        %v2152 = vld [vmem:[%s4 + $0x14c] sm:$0xf]
        %v2153 = vld [vmem:[%s4 + $0x150] sm:$0xf]
        %v2154 = vld [vmem:[%s4 + $0x154] sm:$0xf]
        %v2155 = vld [vmem:[%s4 + $0x158] sm:$0xf]
        %v2156 = vld [vmem:[%s4 + $0x15c] sm:$0xf]
        %v2157 = vld [vmem:[%s4 + $0x160] sm:$0xf]
        %v2158 = vld [vmem:[%s4 + $0x164] sm:$0xf]
        %v2159 = vld [vmem:[%s4 + $0x168] sm:$0xf]
        %v2160 = vld [vmem:[%s4 + $0x16c] sm:$0xf]
        %v2161 = vld [vmem:[%s4 + $0x170] sm:$0xf]
        %v2162 = vld [vmem:[%s4 + $0x174] sm:$0xf]
        %v2163 = vld [vmem:[%s4 + $0x178] sm:$0xf]
        %v2164 = vld [vmem:[%s4 + $0x17c] sm:$0xf]
        %v2165 = vld [vmem:[%s4 + $0x180] sm:$0xf]
        %v2166 = vld [vmem:[%s4 + $0x184] sm:$0xf]
        %v2167 = vld [vmem:[%s4 + $0x188] sm:$0xf]
        %v2168 = vld [vmem:[%s4 + $0x18c] sm:$0xf]
        %v2169 = vld [vmem:[%s4 + $0x190] sm:$0xf]
        %v2170 = vld [vmem:[%s4 + $0x194] sm:$0xf]
        %v2171 = vld [vmem:[%s4 + $0x198] sm:$0xf]
        %v2172 = vld [vmem:[%s4 + $0x19c] sm:$0xf]
        %v2173 = vld [vmem:[%s4 + $0x1a0] sm:$0xf]
        %v2174 = vld [vmem:[%s4 + $0x1a4] sm:$0xf]
        %v2175 = vld [vmem:[%s4 + $0x1a8] sm:$0xf]
        %v2176 = vld [vmem:[%s4 + $0x1ac] sm:$0xf]
        %v2177 = vld [vmem:[%s4 + $0x1b0] sm:$0xf]
        %v2178 = vld [vmem:[%s4 + $0x1b4] sm:$0xf]
        %v2179 = vld [vmem:[%s4 + $0x1b8] sm:$0xf]
        %v2180 = vld [vmem:[%s4 + $0x1bc] sm:$0xf]
        %v2181 = vld [vmem:[%s4 + $0x1c0] sm:$0xf]
        %v2182 = vld [vmem:[%s4 + $0x1c4] sm:$0xf]
        %v2183 = vld [vmem:[%s4 + $0x1c8] sm:$0xf]
        %v2184 = vld [vmem:[%s4 + $0x1cc] sm:$0xf]
        %v2185 = vld [vmem:[%s4 + $0x1d0] sm:$0xf]
        %v2186 = vld [vmem:[%s4 + $0x1d4] sm:$0xf]
        %v2187 = vld [vmem:[%s4 + $0x1d8] sm:$0xf]
        %v2188 = vld [vmem:[%s4 + $0x1dc] sm:$0xf]
        %v2189 = vld [vmem:[%s4 + $0x1e0] sm:$0xf]
        %v2190 = vld [vmem:[%s4 + $0x1e4] sm:$0xf]
        %v2191 = vld [vmem:[%s4 + $0x1e8] sm:$0xf]
        %v2192 = vld [vmem:[%s4 + $0x1ec] sm:$0xf]
        %v2193 = vld [vmem:[%s4 + $0x1f0] sm:$0xf]
        %v2194 = vld [vmem:[%s4 + $0x1f4] sm:$0xf]
        %v2195 = vld [vmem:[%s4 + $0x1f8] sm:$0xf]
        %v2196 = vld [vmem:[%s4 + $0x1fc] sm:$0xf]
        %v2197 = vld [vmem:[%s4 + $0x200] sm:$0xf]
        %v2198 = vld [vmem:[%s4 + $0x204] sm:$0xf]
        %v2199 = vld [vmem:[%s4 + $0x208] sm:$0xf]
        %v2200 = vld [vmem:[%s4 + $0x20c] sm:$0xf]
        %v2201 = vld [vmem:[%s4 + $0x210] sm:$0xf]
        %v2202 = vld [vmem:[%s4 + $0x214] sm:$0xf]
        %v2203 = vld [vmem:[%s4 + $0x218] sm:$0xf]
        %v2204 = vld [vmem:[%s4 + $0x21c] sm:$0xf]
        %v2205 = vld [vmem:[%s4 + $0x220] sm:$0xf]
        %v2206 = vld [vmem:[%s4 + $0x224] sm:$0xf]
        %v2207 = vld [vmem:[%s4 + $0x228] sm:$0xf]
        %v2208 = vld [vmem:[%s4 + $0x22c] sm:$0xf]
        %v2209 = vld [vmem:[%s4 + $0x230] sm:$0xf]
        %v2210 = vld [vmem:[%s4 + $0x234] sm:$0xf]
        %v2211 = vld [vmem:[%s4 + $0x238] sm:$0xf]
        %v2212 = vld [vmem:[%s4 + $0x23c] sm:$0xf]
        %v2213 = vld [vmem:[%s5] sm:$0x1]
        %v2215 = vlaneseq
        %v2216 = vshrl.u32 %v2215, 7
        %v2217 = vsub.s32 0, %v2216
        %v2218 = vrot.slane %v2213, %v2217
        %v2364 = vunpack.c.l.b16 %v2069
        %v2365 = vunpack.c.l.b16 %v2070
        %v2366 = vunpack.c.l.b16 %v2071
        %v2367 = vunpack.c.l.b16 %v2072
        %v2368 = vunpack.c.l.b16 %v2073
        %v2369 = vunpack.c.l.b16 %v2074
        %v2370 = vunpack.c.l.b16 %v2075
        %v2371 = vunpack.c.l.b16 %v2076
        %v2372 = vunpack.c.l.b16 %v2077
        %v2373 = vunpack.c.l.b16 %v2078
        %v2374 = vunpack.c.l.b16 %v2079
        %v2375 = vunpack.c.l.b16 %v2080
        %v2376 = vunpack.c.l.b16 %v2081
        %v2377 = vunpack.c.l.b16 %v2082
        %v2378 = vunpack.c.l.b16 %v2083
        %v2379 = vunpack.c.l.b16 %v2084
        %v2380 = vunpack.c.l.b16 %v2085
        %v2381 = vunpack.c.l.b16 %v2086
        %v2382 = vunpack.c.l.b16 %v2087
        %v2383 = vunpack.c.l.b16 %v2088
        %v2384 = vunpack.c.l.b16 %v2089
        %v2385 = vunpack.c.l.b16 %v2090
        %v2386 = vunpack.c.l.b16 %v2091
        %v2387 = vunpack.c.l.b16 %v2092
        %v2388 = vunpack.c.l.b16 %v2093
        %v2389 = vunpack.c.l.b16 %v2094
        %v2390 = vunpack.c.l.b16 %v2095
        %v2391 = vunpack.c.l.b16 %v2096
        %v2392 = vunpack.c.l.b16 %v2097
        %v2393 = vunpack.c.l.b16 %v2098
        %v2394 = vunpack.c.l.b16 %v2099
        %v2395 = vunpack.c.l.b16 %v2100
        %v2396 = vunpack.c.l.b16 %v2101
        %v2397 = vunpack.c.l.b16 %v2102
        %v2398 = vunpack.c.l.b16 %v2103
        %v2399 = vunpack.c.l.b16 %v2104
        %v2400 = vunpack.c.l.b16 %v2105
        %v2401 = vunpack.c.l.b16 %v2106
        %v2402 = vunpack.c.l.b16 %v2107
        %v2403 = vunpack.c.l.b16 %v2108
        %v2404 = vunpack.c.l.b16 %v2109
        %v2405 = vunpack.c.l.b16 %v2110
        %v2406 = vunpack.c.l.b16 %v2111
        %v2407 = vunpack.c.l.b16 %v2112
        %v2408 = vunpack.c.l.b16 %v2113
        %v2409 = vunpack.c.l.b16 %v2114
        %v2410 = vunpack.c.l.b16 %v2115
        %v2411 = vunpack.c.l.b16 %v2116
        %v2412 = vunpack.c.l.b16 %v2117
        %v2413 = vunpack.c.l.b16 %v2118
        %v2414 = vunpack.c.l.b16 %v2119
        %v2415 = vunpack.c.l.b16 %v2120
        %v2416 = vunpack.c.l.b16 %v2121
        %v2417 = vunpack.c.l.b16 %v2122
        %v2418 = vunpack.c.l.b16 %v2123
        %v2419 = vunpack.c.l.b16 %v2124
        %v2420 = vunpack.c.l.b16 %v2125
        %v2421 = vunpack.c.l.b16 %v2126
        %v2422 = vunpack.c.l.b16 %v2127
        %v2423 = vunpack.c.l.b16 %v2128
        %v2424 = vunpack.c.l.b16 %v2129
        %v2425 = vunpack.c.l.b16 %v2130
        %v2426 = vunpack.c.l.b16 %v2131
        %v2427 = vunpack.c.l.b16 %v2132
        %v2428 = vunpack.c.l.b16 %v2133
        %v2429 = vunpack.c.l.b16 %v2134
        %v2430 = vunpack.c.l.b16 %v2135
        %v2431 = vunpack.c.l.b16 %v2136
        %v2432 = vunpack.c.l.b16 %v2137
        %v2433 = vunpack.c.l.b16 %v2138
        %v2434 = vunpack.c.l.b16 %v2139
        %v2435 = vunpack.c.l.b16 %v2140
        %v2436 = vunpack.c.l.b16 %v2141
        %v2437 = vunpack.c.l.b16 %v2142
        %v2438 = vunpack.c.l.b16 %v2143
        %v2439 = vunpack.c.l.b16 %v2144
        %v2440 = vunpack.c.l.b16 %v2145
        %v2441 = vunpack.c.l.b16 %v2146
        %v2442 = vunpack.c.l.b16 %v2147
        %v2443 = vunpack.c.l.b16 %v2148
        %v2444 = vunpack.c.l.b16 %v2149
        %v2445 = vunpack.c.l.b16 %v2150
        %v2446 = vunpack.c.l.b16 %v2151
        %v2447 = vunpack.c.l.b16 %v2152
        %v2448 = vunpack.c.l.b16 %v2153
        %v2449 = vunpack.c.l.b16 %v2154
        %v2450 = vunpack.c.l.b16 %v2155
        %v2451 = vunpack.c.l.b16 %v2156
        %v2452 = vunpack.c.l.b16 %v2157
        %v2453 = vunpack.c.l.b16 %v2158
        %v2454 = vunpack.c.l.b16 %v2159
        %v2455 = vunpack.c.l.b16 %v2160
        %v2456 = vunpack.c.l.b16 %v2161
        %v2457 = vunpack.c.l.b16 %v2162
        %v2458 = vunpack.c.l.b16 %v2163
        %v2459 = vunpack.c.l.b16 %v2164
        %v2460 = vunpack.c.l.b16 %v2165
        %v2461 = vunpack.c.l.b16 %v2166
        %v2462 = vunpack.c.l.b16 %v2167
        %v2463 = vunpack.c.l.b16 %v2168
        %v2464 = vunpack.c.l.b16 %v2169
        %v2465 = vunpack.c.l.b16 %v2170
        %v2466 = vunpack.c.l.b16 %v2171
        %v2467 = vunpack.c.l.b16 %v2172
        %v2468 = vunpack.c.l.b16 %v2173
        %v2469 = vunpack.c.l.b16 %v2174
        %v2470 = vunpack.c.l.b16 %v2175
        %v2471 = vunpack.c.l.b16 %v2176
        %v2472 = vunpack.c.l.b16 %v2177
        %v2473 = vunpack.c.l.b16 %v2178
        %v2474 = vunpack.c.l.b16 %v2179
        %v2475 = vunpack.c.l.b16 %v2180
        %v2476 = vunpack.c.l.b16 %v2181
        %v2477 = vunpack.c.l.b16 %v2182
        %v2478 = vunpack.c.l.b16 %v2183
        %v2479 = vunpack.c.l.b16 %v2184
        %v2480 = vunpack.c.l.b16 %v2185
        %v2481 = vunpack.c.l.b16 %v2186
        %v2482 = vunpack.c.l.b16 %v2187
        %v2483 = vunpack.c.l.b16 %v2188
        %v2484 = vunpack.c.l.b16 %v2189
        %v2485 = vunpack.c.l.b16 %v2190
        %v2486 = vunpack.c.l.b16 %v2191
        %v2487 = vunpack.c.l.b16 %v2192
        %v2488 = vunpack.c.l.b16 %v2193
        %v2489 = vunpack.c.l.b16 %v2194
        %v2490 = vunpack.c.l.b16 %v2195
        %v2491 = vunpack.c.l.b16 %v2196
        %v2492 = vunpack.c.l.b16 %v2197
        %v2493 = vunpack.c.l.b16 %v2198
        %v2494 = vunpack.c.l.b16 %v2199
        %v2495 = vunpack.c.l.b16 %v2200
        %v2496 = vunpack.c.l.b16 %v2201
        %v2497 = vunpack.c.l.b16 %v2202
        %v2498 = vunpack.c.l.b16 %v2203
        %v2499 = vunpack.c.l.b16 %v2204
        %v2500 = vunpack.c.l.b16 %v2205
        %v2501 = vunpack.c.l.b16 %v2206
        %v2502 = vunpack.c.l.b16 %v2207
        %v2503 = vunpack.c.l.b16 %v2208
        %v2504 = vunpack.c.l.b16 %v2209
        %v2505 = vunpack.c.l.b16 %v2210
        %v2506 = vunpack.c.l.b16 %v2211
        %v2507 = vunpack.c.l.b16 %v2212
        %v2508 = vpack.c.b16 %v2365, %v2364
        %v2509 = vpack.c.b16 %v2367, %v2366
        %v2510 = vpack.c.b16 %v2369, %v2368
        %v2511 = vpack.c.b16 %v2371, %v2370
        %v2512 = vpack.c.b16 %v2373, %v2372
        %v2513 = vpack.c.b16 %v2375, %v2374
        %v2514 = vpack.c.b16 %v2377, %v2376
        %v2515 = vpack.c.b16 %v2379, %v2378
        %v2516 = vpack.c.b16 %v2381, %v2380
        %v2517 = vpack.c.b16 %v2383, %v2382
        %v2518 = vpack.c.b16 %v2385, %v2384
        %v2519 = vpack.c.b16 %v2387, %v2386
        %v2520 = vpack.c.b16 %v2389, %v2388
        %v2521 = vpack.c.b16 %v2391, %v2390
        %v2522 = vpack.c.b16 %v2393, %v2392
        %v2523 = vpack.c.b16 %v2395, %v2394
        %v2524 = vpack.c.b16 %v2397, %v2396
        %v2525 = vpack.c.b16 %v2399, %v2398
        %v2526 = vpack.c.b16 %v2401, %v2400
        %v2527 = vpack.c.b16 %v2403, %v2402
        %v2528 = vpack.c.b16 %v2405, %v2404
        %v2529 = vpack.c.b16 %v2407, %v2406
        %v2530 = vpack.c.b16 %v2409, %v2408
        %v2531 = vpack.c.b16 %v2411, %v2410
        %v2532 = vpack.c.b16 %v2413, %v2412
        %v2533 = vpack.c.b16 %v2415, %v2414
        %v2534 = vpack.c.b16 %v2417, %v2416
        %v2535 = vpack.c.b16 %v2419, %v2418
        %v2536 = vpack.c.b16 %v2421, %v2420
        %v2537 = vpack.c.b16 %v2423, %v2422
        %v2538 = vpack.c.b16 %v2425, %v2424
        %v2539 = vpack.c.b16 %v2427, %v2426
        %v2540 = vpack.c.b16 %v2429, %v2428
        %v2541 = vpack.c.b16 %v2431, %v2430
        %v2542 = vpack.c.b16 %v2433, %v2432
        %v2543 = vpack.c.b16 %v2435, %v2434
        %v2544 = vpack.c.b16 %v2437, %v2436
        %v2545 = vpack.c.b16 %v2439, %v2438
        %v2546 = vpack.c.b16 %v2441, %v2440
        %v2547 = vpack.c.b16 %v2443, %v2442
        %v2548 = vpack.c.b16 %v2445, %v2444
        %v2549 = vpack.c.b16 %v2447, %v2446
        %v2550 = vpack.c.b16 %v2449, %v2448
        %v2551 = vpack.c.b16 %v2451, %v2450
        %v2552 = vpack.c.b16 %v2453, %v2452
        %v2553 = vpack.c.b16 %v2455, %v2454
        %v2554 = vpack.c.b16 %v2457, %v2456
        %v2555 = vpack.c.b16 %v2459, %v2458
        %v2556 = vpack.c.b16 %v2461, %v2460
        %v2557 = vpack.c.b16 %v2463, %v2462
        %v2558 = vpack.c.b16 %v2465, %v2464
        %v2559 = vpack.c.b16 %v2467, %v2466
        %v2560 = vpack.c.b16 %v2469, %v2468
        %v2561 = vpack.c.b16 %v2471, %v2470
        %v2562 = vpack.c.b16 %v2473, %v2472
        %v2563 = vpack.c.b16 %v2475, %v2474
        %v2564 = vpack.c.b16 %v2477, %v2476
        %v2565 = vpack.c.b16 %v2479, %v2478
        %v2566 = vpack.c.b16 %v2481, %v2480
        %v2567 = vpack.c.b16 %v2483, %v2482
        %v2568 = vpack.c.b16 %v2485, %v2484
        %v2569 = vpack.c.b16 %v2487, %v2486
        %v2570 = vpack.c.b16 %v2489, %v2488
        %v2571 = vpack.c.b16 %v2491, %v2490
        %v2572 = vpack.c.b16 %v2493, %v2492
        %v2573 = vpack.c.b16 %v2495, %v2494
        %v2574 = vpack.c.b16 %v2497, %v2496
        %v2575 = vpack.c.b16 %v2499, %v2498
        %v2576 = vpack.c.b16 %v2501, %v2500
        %v2577 = vpack.c.b16 %v2503, %v2502
        %v2578 = vpack.c.b16 %v2505, %v2504
        %v2579 = vpack.c.b16 %v2507, %v2506
        %2652 = vmatprep.subr.bf16.mxu0 0
        %2653 = vmatpush1.bf16.msra.mxu0 %v2508
        %2654 = vmatprep.subr.bf16.mxu0 0
        %2655 = vmatpush1.bf16.msra.mxu0 %v2509
        %2656 = vmatprep.subr.bf16.mxu0 0
        %2657 = vmatpush1.bf16.msra.mxu0 %v2510
        %2658 = vmatprep.subr.bf16.mxu0 0
        %2659 = vmatpush1.bf16.msra.mxu0 %v2511
        %2660 = vmatprep.subr.bf16.mxu0 0
        %2661 = vmatpush1.bf16.msra.mxu0 %v2512
        %2662 = vmatprep.subr.bf16.mxu0 0
        %2663 = vmatpush1.bf16.msra.mxu0 %v2513
        %2664 = vmatprep.subr.bf16.mxu0 0
        %2665 = vmatpush1.bf16.msra.mxu0 %v2514
        %2666 = vmatprep.subr.bf16.mxu0 0
        %2667 = vmatpush1.bf16.msra.mxu0 %v2515
        %2668 = vmatprep.subr.bf16.mxu0 0
        %2669 = vmatpush1.bf16.msra.mxu0 %v2516
        %2670 = vmatprep.subr.bf16.mxu0 0
        %2671 = vmatpush1.bf16.msra.mxu0 %v2517
        %2672 = vmatprep.subr.bf16.mxu0 0
        %2673 = vmatpush1.bf16.msra.mxu0 %v2518
        %2674 = vmatprep.subr.bf16.mxu0 0
        %2675 = vmatpush1.bf16.msra.mxu0 %v2519
        %2676 = vmatprep.subr.bf16.mxu0 0
        %2677 = vmatpush1.bf16.msra.mxu0 %v2520
        %2678 = vmatprep.subr.bf16.mxu0 0
        %2679 = vmatpush1.bf16.msra.mxu0 %v2521
        %2680 = vmatprep.subr.bf16.mxu0 0
        %2681 = vmatpush1.bf16.msra.mxu0 %v2522
        %2682 = vmatprep.subr.bf16.mxu0 0
        %2683 = vmatpush1.bf16.msra.mxu0 %v2523
        %2684 = vmatprep.mubr.bf16.mxu0 %v1737
        %2685 = vmatmul.mubr.bf16.gmra.mrb[0].mxu0 %v1689
        %v2686 = vpop.f32.mrb[0].mxu0
        %v2687 = vadd.f32 %v2218, %v2686
        %v2688 = vpop.f32.mrb[0].mxu0
        %v2689 = vpop.f32.mrb[0].mxu0
        %v2690 = vadd.f32 %v2218, %v2689
        %v2691 = vpop.f32.mrb[0].mxu0
        %2692 = vmatprep.mubr.bf16.mxu0 %v1749
        %2693 = vmatmul.mubr.bf16.gmra.mrb[0].mxu0 %v1690
        %v2694 = vpop.f32.mrb[0].mxu0
        %v2695 = vadd.f32 %v2218, %v2694
        %v2696 = vpop.f32.mrb[0].mxu0
        %v2697 = vpop.f32.mrb[0].mxu0
        %v2698 = vadd.f32 %v2218, %v2697
        %v2699 = vpop.f32.mrb[0].mxu0
        %2700 = vmatprep.mubr.bf16.mxu0 %v1761
        %2701 = vmatmul.mubr.bf16.gmra.mrb[0].mxu0 %v1691
        %v2702 = vpop.f32.mrb[0].mxu0
        %v2703 = vadd.f32 %v2218, %v2702
        %v2704 = vpop.f32.mrb[0].mxu0
        %v2705 = vpop.f32.mrb[0].mxu0
        %v2706 = vadd.f32 %v2218, %v2705
        %v2707 = vpop.f32.mrb[0].mxu0
        %2708 = vmatprep.mubr.bf16.mxu0 %v1773
        %2709 = vmatmul.mubr.bf16.gmra.mrb[0].mxu0 %v1692
        %v2710 = vpop.f32.mrb[0].mxu0
        %v2711 = vadd.f32 %v2218, %v2710
        %v2712 = vpop.f32.mrb[0].mxu0
        %v2713 = vpop.f32.mrb[0].mxu0
        %v2714 = vadd.f32 %v2218, %v2713
        %v2715 = vpop.f32.mrb[0].mxu0
        %2716 = vmatprep.mubr.bf16.mxu0 %v1785
        %2717 = vmatmul.mubr.bf16.gmra.mrb[0].mxu0 %v1693
        %v2718 = vpop.f32.mrb[0].mxu0
        %v2719 = vadd.f32 %v2218, %v2718
        %v2720 = vpop.f32.mrb[0].mxu0
        %v2721 = vpop.f32.mrb[0].mxu0
        %v2722 = vadd.f32 %v2218, %v2721
        %v2723 = vpop.f32.mrb[0].mxu0
        %2724 = vmatprep.mubr.bf16.mxu0 %v1797
        %2725 = vmatmul.mubr.bf16.gmra.mrb[0].mxu0 %v1694
        %v2726 = vpop.f32.mrb[0].mxu0
        %v2727 = vadd.f32 %v2218, %v2726
        %v2728 = vpop.f32.mrb[0].mxu0
        %v2729 = vpop.f32.mrb[0].mxu0
        %v2730 = vadd.f32 %v2218, %v2729
        %v2731 = vpop.f32.mrb[0].mxu0
        %2732 = vmatprep.mubr.bf16.mxu0 %v1809
        %2733 = vmatmul.mubr.bf16.gmra.mrb[0].mxu0 %v1695
        %v2734 = vpop.f32.mrb[0].mxu0
        %v2735 = vadd.f32 %v2218, %v2734
        %v2736 = vpop.f32.mrb[0].mxu0
        %v2737 = vpop.f32.mrb[0].mxu0
        %v2738 = vadd.f32 %v2218, %v2737
        %v2739 = vpop.f32.mrb[0].mxu0
        %2740 = vmatprep.mubr.bf16.mxu0 %v1821
        %2741 = vmatmul.mubr.bf16.gmra.mrb[0].mxu0 %v1696
        %v2742 = vpop.f32.mrb[0].mxu0
        %v2743 = vadd.f32 %v2218, %v2742
        %v2744 = vpop.f32.mrb[0].mxu0
        %v2745 = vpop.f32.mrb[0].mxu0
        %v2746 = vadd.f32 %v2218, %v2745
        %v2747 = vpop.f32.mrb[0].mxu0
        %2748 = vmatprep.mubr.bf16.mxu0 %v1833
        %2749 = vmatmul.mubr.bf16.gmra.mrb[0].mxu0 %v1697
        %v2750 = vpop.f32.mrb[0].mxu0
        %v2751 = vadd.f32 %v2218, %v2750
        %v2752 = vpop.f32.mrb[0].mxu0
        %v2753 = vpop.f32.mrb[0].mxu0
        %v2754 = vadd.f32 %v2218, %v2753
        %v2755 = vpop.f32.mrb[0].mxu0
        %2756 = vmatprep.mubr.bf16.mxu0 %v1845
        %2757 = vmatmul.mubr.bf16.gmra.mrb[0].mxu0 %v1698
        %v2758 = vpop.f32.mrb[0].mxu0
        %v2759 = vadd.f32 %v2218, %v2758
        %v2760 = vpop.f32.mrb[0].mxu0
        %v2761 = vpop.f32.mrb[0].mxu0
        %v2762 = vadd.f32 %v2218, %v2761
        %v2763 = vpop.f32.mrb[0].mxu0
        %2764 = vmatprep.mubr.bf16.mxu0 %v1857
        %2765 = vmatmul.mubr.bf16.gmra.mrb[0].mxu0 %v1699
        %v2766 = vpop.f32.mrb[0].mxu0
        %v2767 = vadd.f32 %v2218, %v2766
        %v2768 = vpop.f32.mrb[0].mxu0
        %v2769 = vpop.f32.mrb[0].mxu0
        %v2770 = vadd.f32 %v2218, %v2769
        %v2771 = vpop.f32.mrb[0].mxu0
        %2772 = vmatprep.mubr.bf16.mxu0 %v1869
        %2773 = vmatmul.mubr.bf16.gmra.mrb[0].mxu0 %v1700
        %v2774 = vpop.f32.mrb[0].mxu0
        %v2775 = vadd.f32 %v2218, %v2774
        %v2776 = vpop.f32.mrb[0].mxu0
        %v2777 = vpop.f32.mrb[0].mxu0
        %v2778 = vadd.f32 %v2218, %v2777
        %v2779 = vpop.f32.mrb[0].mxu0
        %2780 = vmatprep.mubr.bf16.mxu0 %v1881
        %2781 = vmatmul.mubr.bf16.gmra.mrb[0].mxu0 %v1701
        %v2782 = vpop.f32.mrb[0].mxu0
        %v2783 = vadd.f32 %v2218, %v2782
        %v2784 = vpop.f32.mrb[0].mxu0
        %v2785 = vpop.f32.mrb[0].mxu0
        %v2786 = vadd.f32 %v2218, %v2785
        %v2787 = vpop.f32.mrb[0].mxu0
        %2788 = vmatprep.mubr.bf16.mxu0 %v1893
        %2789 = vmatmul.mubr.bf16.gmra.mrb[0].mxu0 %v1702
        %v2790 = vpop.f32.mrb[0].mxu0
        %v2791 = vadd.f32 %v2218, %v2790
        %v2792 = vpop.f32.mrb[0].mxu0
        %v2793 = vpop.f32.mrb[0].mxu0
        %v2794 = vadd.f32 %v2218, %v2793
        %v2795 = vpop.f32.mrb[0].mxu0
        %2796 = vmatprep.mubr.bf16.mxu0 %v1905
        %2797 = vmatmul.mubr.bf16.gmra.mrb[0].mxu0 %v1703
        %v2798 = vpop.f32.mrb[0].mxu0
        %v2799 = vadd.f32 %v2218, %v2798
        %v2800 = vpop.f32.mrb[0].mxu0
        %v2801 = vpop.f32.mrb[0].mxu0
        %v2802 = vadd.f32 %v2218, %v2801
        %v2803 = vpop.f32.mrb[0].mxu0
        %2804 = vmatprep.mubr.bf16.mxu0 %v1917
        %2805 = vmatmul.mubr.bf16.gmra.mrb[0].mxu0 %v1704
        %v2806 = vpop.f32.mrb[0].mxu0
        %v2807 = vadd.f32 %v2218, %v2806
        %v2808 = vpop.f32.mrb[0].mxu0
        %v2809 = vpop.f32.mrb[0].mxu0
        %v2810 = vadd.f32 %v2218, %v2809
        %v2811 = vpop.f32.mrb[0].mxu0
        %2812 = vdwg.mxu0
        %2813 = vmatprep.subr.bf16.mxu0 0
        %2814 = vmatpush1.bf16.msra.mxu0 %v2524
        %2815 = vmatprep.subr.bf16.mxu0 0
        %2816 = vmatpush1.bf16.msra.mxu0 %v2525
        %2817 = vmatprep.subr.bf16.mxu0 0
        %2818 = vmatpush1.bf16.msra.mxu0 %v2526
        %2819 = vmatprep.subr.bf16.mxu0 0
        %2820 = vmatpush1.bf16.msra.mxu0 %v2527
        %2821 = vmatprep.subr.bf16.mxu0 0
        %2822 = vmatpush1.bf16.msra.mxu0 %v2528
        %2823 = vmatprep.subr.bf16.mxu0 0
        %2824 = vmatpush1.bf16.msra.mxu0 %v2529
        %2825 = vmatprep.subr.bf16.mxu0 0
        %2826 = vmatpush1.bf16.msra.mxu0 %v2530
        %2827 = vmatprep.subr.bf16.mxu0 0
        %2828 = vmatpush1.bf16.msra.mxu0 %v2531
        %2829 = vmatprep.subr.bf16.mxu0 0
        %2830 = vmatpush1.bf16.msra.mxu0 %v2532
        %2831 = vmatprep.subr.bf16.mxu0 0
        %2832 = vmatpush1.bf16.msra.mxu0 %v2533
        %2833 = vmatprep.subr.bf16.mxu0 0
        %2834 = vmatpush1.bf16.msra.mxu0 %v2534
        %2835 = vmatprep.subr.bf16.mxu0 0
        %2836 = vmatpush1.bf16.msra.mxu0 %v2535
        %2837 = vmatprep.subr.bf16.mxu0 0
        %2838 = vmatpush1.bf16.msra.mxu0 %v2536
        %2839 = vmatprep.subr.bf16.mxu0 0
        %2840 = vmatpush1.bf16.msra.mxu0 %v2537
        %2841 = vmatprep.subr.bf16.mxu0 0
        %2842 = vmatpush1.bf16.msra.mxu0 %v2538
        %2843 = vmatprep.subr.bf16.mxu0 0
        %2844 = vmatpush1.bf16.msra.mxu0 %v2539
        %2845 = vmatprep.mubr.bf16.mxu0 %v1690
        %2846 = vmatmul.mubr.bf16.gmra.mrb[0].mxu0 %v1969
        %v2847 = vpop.f32.mrb[0].mxu0
        %v2848 = vadd.f32 %v2687, %v2847
        %v2849 = vpop.f32.mrb[0].mxu0
        %v2850 = vpop.f32.mrb[0].mxu0
        %v2851 = vadd.f32 %v2690, %v2850
        %v2852 = vpop.f32.mrb[0].mxu0
        %2853 = vmatprep.mubr.bf16.mxu0 %v1691
        %2854 = vmatmul.mubr.bf16.gmra.mrb[0].mxu0 %v1972
        %v2855 = vpop.f32.mrb[0].mxu0
        %v2856 = vadd.f32 %v2695, %v2855
        %v2857 = vpop.f32.mrb[0].mxu0
        %v2858 = vpop.f32.mrb[0].mxu0
        %v2859 = vadd.f32 %v2698, %v2858
        %v2860 = vpop.f32.mrb[0].mxu0
        %2861 = vmatprep.mubr.bf16.mxu0 %v1692
        %2862 = vmatmul.mubr.bf16.gmra.mrb[0].mxu0 %v1975
        %v2863 = vpop.f32.mrb[0].mxu0
        %v2864 = vadd.f32 %v2703, %v2863
        %v2865 = vpop.f32.mrb[0].mxu0
        %v2866 = vpop.f32.mrb[0].mxu0
        %v2867 = vadd.f32 %v2706, %v2866
        %v2868 = vpop.f32.mrb[0].mxu0
        %2869 = vmatprep.mubr.bf16.mxu0 %v1693
        %2870 = vmatmul.mubr.bf16.gmra.mrb[0].mxu0 %v1978
        %v2871 = vpop.f32.mrb[0].mxu0
        %v2872 = vadd.f32 %v2711, %v2871
        %v2873 = vpop.f32.mrb[0].mxu0
        %v2874 = vpop.f32.mrb[0].mxu0
        %v2875 = vadd.f32 %v2714, %v2874
        %v2876 = vpop.f32.mrb[0].mxu0
        %2877 = vmatprep.mubr.bf16.mxu0 %v1694
        %2878 = vmatmul.mubr.bf16.gmra.mrb[0].mxu0 %v1981
        %v2879 = vpop.f32.mrb[0].mxu0
        %v2880 = vadd.f32 %v2719, %v2879
        %v2881 = vpop.f32.mrb[0].mxu0
        %v2882 = vpop.f32.mrb[0].mxu0
        %v2883 = vadd.f32 %v2722, %v2882
        %v2884 = vpop.f32.mrb[0].mxu0
        %2885 = vmatprep.mubr.bf16.mxu0 %v1695
        %2886 = vmatmul.mubr.bf16.gmra.mrb[0].mxu0 %v1984
        %v2887 = vpop.f32.mrb[0].mxu0
        %v2888 = vadd.f32 %v2727, %v2887
        %v2889 = vpop.f32.mrb[0].mxu0
        %v2890 = vpop.f32.mrb[0].mxu0
        %v2891 = vadd.f32 %v2730, %v2890
        %v2892 = vpop.f32.mrb[0].mxu0
        %2893 = vmatprep.mubr.bf16.mxu0 %v1696
        %2894 = vmatmul.mubr.bf16.gmra.mrb[0].mxu0 %v1987
        %v2895 = vpop.f32.mrb[0].mxu0
        %v2896 = vadd.f32 %v2735, %v2895
        %v2897 = vpop.f32.mrb[0].mxu0
        %v2898 = vpop.f32.mrb[0].mxu0
        %v2899 = vadd.f32 %v2738, %v2898
        %v2900 = vpop.f32.mrb[0].mxu0
        %2901 = vmatprep.mubr.bf16.mxu0 %v1697
        %2902 = vmatmul.mubr.bf16.gmra.mrb[0].mxu0 %v1990
        %v2903 = vpop.f32.mrb[0].mxu0
        %v2904 = vadd.f32 %v2743, %v2903
        %v2905 = vpop.f32.mrb[0].mxu0
        %v2906 = vpop.f32.mrb[0].mxu0
        %v2907 = vadd.f32 %v2746, %v2906
        %v2908 = vpop.f32.mrb[0].mxu0
        %2909 = vmatprep.mubr.bf16.mxu0 %v1698
        %2910 = vmatmul.mubr.bf16.gmra.mrb[0].mxu0 %v1993
        %v2911 = vpop.f32.mrb[0].mxu0
        %v2912 = vadd.f32 %v2751, %v2911
        %v2913 = vpop.f32.mrb[0].mxu0
        %v2914 = vpop.f32.mrb[0].mxu0
        %v2915 = vadd.f32 %v2754, %v2914
        %v2916 = vpop.f32.mrb[0].mxu0
        %2917 = vmatprep.mubr.bf16.mxu0 %v1699
        %2918 = vmatmul.mubr.bf16.gmra.mrb[0].mxu0 %v1996
        %v2919 = vpop.f32.mrb[0].mxu0
        %v2920 = vadd.f32 %v2759, %v2919
        %v2921 = vpop.f32.mrb[0].mxu0
        %v2922 = vpop.f32.mrb[0].mxu0
        %v2923 = vadd.f32 %v2762, %v2922
        %v2924 = vpop.f32.mrb[0].mxu0
        %2925 = vmatprep.mubr.bf16.mxu0 %v1700
        %2926 = vmatmul.mubr.bf16.gmra.mrb[0].mxu0 %v1999
        %v2927 = vpop.f32.mrb[0].mxu0
        %v2928 = vadd.f32 %v2767, %v2927
        %v2929 = vpop.f32.mrb[0].mxu0
        %v2930 = vpop.f32.mrb[0].mxu0
        %v2931 = vadd.f32 %v2770, %v2930
        %v2932 = vpop.f32.mrb[0].mxu0
        %2933 = vmatprep.mubr.bf16.mxu0 %v1701
        %2934 = vmatmul.mubr.bf16.gmra.mrb[0].mxu0 %v2002
        %v2935 = vpop.f32.mrb[0].mxu0
        %v2936 = vadd.f32 %v2775, %v2935
        %v2937 = vpop.f32.mrb[0].mxu0
        %v2938 = vpop.f32.mrb[0].mxu0
        %v2939 = vadd.f32 %v2778, %v2938
        %v2940 = vpop.f32.mrb[0].mxu0
        %2941 = vmatprep.mubr.bf16.mxu0 %v1702
        %2942 = vmatmul.mubr.bf16.gmra.mrb[0].mxu0 %v2005
        %v2943 = vpop.f32.mrb[0].mxu0
        %v2944 = vadd.f32 %v2783, %v2943
        %v2945 = vpop.f32.mrb[0].mxu0
        %v2946 = vpop.f32.mrb[0].mxu0
        %v2947 = vadd.f32 %v2786, %v2946
        %v2948 = vpop.f32.mrb[0].mxu0
        %2949 = vmatprep.mubr.bf16.mxu0 %v1703
        %2950 = vmatmul.mubr.bf16.gmra.mrb[0].mxu0 %v2008
        %v2951 = vpop.f32.mrb[0].mxu0
        %v2952 = vadd.f32 %v2791, %v2951
        %v2953 = vpop.f32.mrb[0].mxu0
        %v2954 = vpop.f32.mrb[0].mxu0
        %v2955 = vadd.f32 %v2794, %v2954
        %v2956 = vpop.f32.mrb[0].mxu0
        %2957 = vmatprep.mubr.bf16.mxu0 %v1704
        %2958 = vmatmul.mubr.bf16.gmra.mrb[0].mxu0 %v2011
        %v2959 = vpop.f32.mrb[0].mxu0
        %v2960 = vadd.f32 %v2799, %v2959
        %v2961 = vpop.f32.mrb[0].mxu0
        %v2962 = vpop.f32.mrb[0].mxu0
        %v2963 = vadd.f32 %v2802, %v2962
        %v2964 = vpop.f32.mrb[0].mxu0
        %2965 = vmatprep.mubr.bf16.mxu0 %v1705
        %2966 = vmatmul.mubr.bf16.gmra.mrb[0].mxu0 %v2014
        %v2967 = vpop.f32.mrb[0].mxu0
        %v2968 = vadd.f32 %v2807, %v2967
        %v2969 = vpop.f32.mrb[0].mxu0
        %v2970 = vpop.f32.mrb[0].mxu0
        %v2971 = vadd.f32 %v2810, %v2970
        %v2972 = vpop.f32.mrb[0].mxu0
        %2973 = vdwg.mxu0
        %2974 = vmatprep.subr.bf16.mxu0 0
        %2975 = vmatpush1.bf16.msra.mxu0 %v2540
        %2976 = vmatprep.subr.bf16.mxu0 0
        %2977 = vmatpush1.bf16.msra.mxu0 %v2541
        %2978 = vmatprep.subr.bf16.mxu0 0
        %2979 = vmatpush1.bf16.msra.mxu0 %v2542
        %2980 = vmatprep.subr.bf16.mxu0 0
        %2981 = vmatpush1.bf16.msra.mxu0 %v2543
        %2982 = vmatprep.subr.bf16.mxu0 0
        %2983 = vmatpush1.bf16.msra.mxu0 %v2544
        %2984 = vmatprep.subr.bf16.mxu0 0
        %2985 = vmatpush1.bf16.msra.mxu0 %v2545
        %2986 = vmatprep.subr.bf16.mxu0 0
        %2987 = vmatpush1.bf16.msra.mxu0 %v2546
        %2988 = vmatprep.subr.bf16.mxu0 0
        %2989 = vmatpush1.bf16.msra.mxu0 %v2547
        %2990 = vmatprep.subr.bf16.mxu0 0
        %2991 = vmatpush1.bf16.msra.mxu0 %v2548
        %2992 = vmatprep.subr.bf16.mxu0 0
        %2993 = vmatpush1.bf16.msra.mxu0 %v2549
        %2994 = vmatprep.subr.bf16.mxu0 0
        %2995 = vmatpush1.bf16.msra.mxu0 %v2550
        %2996 = vmatprep.subr.bf16.mxu0 0
        %2997 = vmatpush1.bf16.msra.mxu0 %v2551
        %2998 = vmatprep.subr.bf16.mxu0 0
        %2999 = vmatpush1.bf16.msra.mxu0 %v2552
        %3000 = vmatprep.subr.bf16.mxu0 0
        %3001 = vmatpush1.bf16.msra.mxu0 %v2553
        %3002 = vmatprep.subr.bf16.mxu0 0
        %3003 = vmatpush1.bf16.msra.mxu0 %v2554
        %3004 = vmatprep.subr.bf16.mxu0 0
        %3005 = vmatpush1.bf16.msra.mxu0 %v2555
        %3006 = vmatprep.mubr.bf16.mxu0 %v1972
        %3007 = vmatmul.mubr.bf16.gmra.mrb[0].mxu0 %v1749
        %v3008 = vpop.f32.mrb[0].mxu0
        %v3009 = vadd.f32 %v2848, %v3008
        %v3010 = vpop.f32.mrb[0].mxu0
        %v3011 = vpop.f32.mrb[0].mxu0
        %v3012 = vadd.f32 %v2851, %v3011
        %v3013 = vpop.f32.mrb[0].mxu0
        %3014 = vmatprep.mubr.bf16.mxu0 %v1975
        %3015 = vmatmul.mubr.bf16.gmra.mrb[0].mxu0 %v1761
        %v3016 = vpop.f32.mrb[0].mxu0
        %v3017 = vadd.f32 %v2856, %v3016
        %v3018 = vpop.f32.mrb[0].mxu0
        %v3019 = vpop.f32.mrb[0].mxu0
        %v3020 = vadd.f32 %v2859, %v3019
        %v3021 = vpop.f32.mrb[0].mxu0
        %3022 = vmatprep.mubr.bf16.mxu0 %v1978
        %3023 = vmatmul.mubr.bf16.gmra.mrb[0].mxu0 %v1773
        %v3024 = vpop.f32.mrb[0].mxu0
        %v3025 = vadd.f32 %v2864, %v3024
        %v3026 = vpop.f32.mrb[0].mxu0
        %v3027 = vpop.f32.mrb[0].mxu0
        %v3028 = vadd.f32 %v2867, %v3027
        %v3029 = vpop.f32.mrb[0].mxu0
        %3030 = vmatprep.mubr.bf16.mxu0 %v1981
        %3031 = vmatmul.mubr.bf16.gmra.mrb[0].mxu0 %v1785
        %v3032 = vpop.f32.mrb[0].mxu0
        %v3033 = vadd.f32 %v2872, %v3032
        %v3034 = vpop.f32.mrb[0].mxu0
        %v3035 = vpop.f32.mrb[0].mxu0
        %v3036 = vadd.f32 %v2875, %v3035
        %v3037 = vpop.f32.mrb[0].mxu0
        %3038 = vmatprep.mubr.bf16.mxu0 %v1984
        %3039 = vmatmul.mubr.bf16.gmra.mrb[0].mxu0 %v1797
        %v3040 = vpop.f32.mrb[0].mxu0
        %v3041 = vadd.f32 %v2880, %v3040
        %v3042 = vpop.f32.mrb[0].mxu0
        %v3043 = vpop.f32.mrb[0].mxu0
        %v3044 = vadd.f32 %v2883, %v3043
        %v3045 = vpop.f32.mrb[0].mxu0
        %3046 = vmatprep.mubr.bf16.mxu0 %v1987
        %3047 = vmatmul.mubr.bf16.gmra.mrb[0].mxu0 %v1809
        %v3048 = vpop.f32.mrb[0].mxu0
        %v3049 = vadd.f32 %v2888, %v3048
        %v3050 = vpop.f32.mrb[0].mxu0
        %v3051 = vpop.f32.mrb[0].mxu0
        %v3052 = vadd.f32 %v2891, %v3051
        %v3053 = vpop.f32.mrb[0].mxu0
        %3054 = vmatprep.mubr.bf16.mxu0 %v1990
        %3055 = vmatmul.mubr.bf16.gmra.mrb[0].mxu0 %v1821
        %v3056 = vpop.f32.mrb[0].mxu0
        %v3057 = vadd.f32 %v2896, %v3056
        %v3058 = vpop.f32.mrb[0].mxu0
        %v3059 = vpop.f32.mrb[0].mxu0
        %v3060 = vadd.f32 %v2899, %v3059
        %v3061 = vpop.f32.mrb[0].mxu0
        %3062 = vmatprep.mubr.bf16.mxu0 %v1993
        %3063 = vmatmul.mubr.bf16.gmra.mrb[0].mxu0 %v1833
        %v3064 = vpop.f32.mrb[0].mxu0
        %v3065 = vadd.f32 %v2904, %v3064
        %v3066 = vpop.f32.mrb[0].mxu0
        %v3067 = vpop.f32.mrb[0].mxu0
        %v3068 = vadd.f32 %v2907, %v3067
        %v3069 = vpop.f32.mrb[0].mxu0
        %3070 = vmatprep.mubr.bf16.mxu0 %v1996
        %3071 = vmatmul.mubr.bf16.gmra.mrb[0].mxu0 %v1845
        %v3072 = vpop.f32.mrb[0].mxu0
        %v3073 = vadd.f32 %v2912, %v3072
        %v3074 = vpop.f32.mrb[0].mxu0
        %v3075 = vpop.f32.mrb[0].mxu0
        %v3076 = vadd.f32 %v2915, %v3075
        %v3077 = vpop.f32.mrb[0].mxu0
        %3078 = vmatprep.mubr.bf16.mxu0 %v1999
        %3079 = vmatmul.mubr.bf16.gmra.mrb[0].mxu0 %v1857
        %v3080 = vpop.f32.mrb[0].mxu0
        %v3081 = vadd.f32 %v2920, %v3080
        %v3082 = vpop.f32.mrb[0].mxu0
        %v3083 = vpop.f32.mrb[0].mxu0
        %v3084 = vadd.f32 %v2923, %v3083
        %v3085 = vpop.f32.mrb[0].mxu0
        %3086 = vmatprep.mubr.bf16.mxu0 %v2002
        %3087 = vmatmul.mubr.bf16.gmra.mrb[0].mxu0 %v1869
        %v3088 = vpop.f32.mrb[0].mxu0
        %v3089 = vadd.f32 %v2928, %v3088
        %v3090 = vpop.f32.mrb[0].mxu0
        %v3091 = vpop.f32.mrb[0].mxu0
        %v3092 = vadd.f32 %v2931, %v3091
        %v3093 = vpop.f32.mrb[0].mxu0
        %3094 = vmatprep.mubr.bf16.mxu0 %v2005
        %3095 = vmatmul.mubr.bf16.gmra.mrb[0].mxu0 %v1881
        %v3096 = vpop.f32.mrb[0].mxu0
        %v3097 = vadd.f32 %v2936, %v3096
        %v3098 = vpop.f32.mrb[0].mxu0
        %v3099 = vpop.f32.mrb[0].mxu0
        %v3100 = vadd.f32 %v2939, %v3099
        %v3101 = vpop.f32.mrb[0].mxu0
        %3102 = vmatprep.mubr.bf16.mxu0 %v2008
        %3103 = vmatmul.mubr.bf16.gmra.mrb[0].mxu0 %v1893
        %v3104 = vpop.f32.mrb[0].mxu0
        %v3105 = vadd.f32 %v2944, %v3104
        %v3106 = vpop.f32.mrb[0].mxu0
        %v3107 = vpop.f32.mrb[0].mxu0
        %v3108 = vadd.f32 %v2947, %v3107
        %v3109 = vpop.f32.mrb[0].mxu0
        %3110 = vmatprep.mubr.bf16.mxu0 %v2011
        %3111 = vmatmul.mubr.bf16.gmra.mrb[0].mxu0 %v1905
        %v3112 = vpop.f32.mrb[0].mxu0
        %v3113 = vadd.f32 %v2952, %v3112
        %v3114 = vpop.f32.mrb[0].mxu0
        %v3115 = vpop.f32.mrb[0].mxu0
        %v3116 = vadd.f32 %v2955, %v3115
        %v3117 = vpop.f32.mrb[0].mxu0
        %3118 = vmatprep.mubr.bf16.mxu0 %v2014
        %3119 = vmatmul.mubr.bf16.gmra.mrb[0].mxu0 %v1917
        %v3120 = vpop.f32.mrb[0].mxu0
        %v3121 = vadd.f32 %v2960, %v3120
        %v3122 = vpop.f32.mrb[0].mxu0
        %v3123 = vpop.f32.mrb[0].mxu0
        %v3124 = vadd.f32 %v2963, %v3123
        %v3125 = vpop.f32.mrb[0].mxu0
        %3126 = vmatprep.mubr.bf16.mxu0 %v2048
        %3127 = vmatmul.mubr.bf16.gmra.mrb[0].mxu0 %v2042
        %v3128 = vpop.f32.mrb[0].mxu0
        %v3129 = vadd.f32 %v2968, %v3128
        %v3130 = vpop.f32.mrb[0].mxu0
        %v3131 = vpop.f32.mrb[0].mxu0
        %v3132 = vadd.f32 %v2971, %v3131
        %v3133 = vpop.f32.mrb[0].mxu0
        %3134 = vdwg.mxu0
        %3135 = vmatprep.subr.bf16.mxu0 0
        %3136 = vmatpush1.bf16.msra.mxu0 %v2556
        %3137 = vmatprep.subr.bf16.mxu0 0
        %3138 = vmatpush1.bf16.msra.mxu0 %v2557
        %3139 = vmatprep.subr.bf16.mxu0 0
        %3140 = vmatpush1.bf16.msra.mxu0 %v2558
        %3141 = vmatprep.subr.bf16.mxu0 0
        %3142 = vmatpush1.bf16.msra.mxu0 %v2559
        %3143 = vmatprep.subr.bf16.mxu0 0
        %3144 = vmatpush1.bf16.msra.mxu0 %v2560
        %3145 = vmatprep.subr.bf16.mxu0 0
        %3146 = vmatpush1.bf16.msra.mxu0 %v2561
        %3147 = vmatprep.subr.bf16.mxu0 0
        %3148 = vmatpush1.bf16.msra.mxu0 %v2562
        %3149 = vmatprep.subr.bf16.mxu0 0
        %3150 = vmatpush1.bf16.msra.mxu0 %v2563
        %3151 = vmatprep.subr.bf16.mxu0 0
        %3152 = vmatpush1.bf16.msra.mxu0 %v2564
        %3153 = vmatprep.subr.bf16.mxu0 0
        %3154 = vmatpush1.bf16.msra.mxu0 %v2565
        %3155 = vmatprep.subr.bf16.mxu0 0
        %3156 = vmatpush1.bf16.msra.mxu0 %v2566
        %3157 = vmatprep.subr.bf16.mxu0 0
        %3158 = vmatpush1.bf16.msra.mxu0 %v2567
        %3159 = vmatprep.subr.bf16.mxu0 0
        %3160 = vmatpush1.bf16.msra.mxu0 %v2568
        %3161 = vmatprep.subr.bf16.mxu0 0
        %3162 = vmatpush1.bf16.msra.mxu0 %v2569
        %3163 = vmatprep.subr.bf16.mxu0 0
        %3164 = vmatpush1.bf16.msra.mxu0 %v2570
        %3165 = vmatprep.subr.bf16.mxu0 0
        %3166 = vmatpush1.bf16.msra.mxu0 %v2571
        %3167 = vmatprep.mubr.bf16.mxu0 %v1761
        %3168 = vmatmul.mubr.bf16.gmra.mrb[0].mxu0 %v1691
        %v3169 = vpop.f32.mrb[0].mxu0
        %v3170 = vadd.f32 %v3009, %v3169
        %v3171 = vpop.f32.mrb[0].mxu0
        %v3172 = vpop.f32.mrb[0].mxu0
        %v3173 = vadd.f32 %v3012, %v3172
        %v3174 = vpop.f32.mrb[0].mxu0
        %3175 = vmatprep.mubr.bf16.mxu0 %v1773
        %3176 = vmatmul.mubr.bf16.gmra.mrb[0].mxu0 %v1692
        %v3177 = vpop.f32.mrb[0].mxu0
        %v3178 = vadd.f32 %v3017, %v3177
        %v3179 = vpop.f32.mrb[0].mxu0
        %v3180 = vpop.f32.mrb[0].mxu0
        %v3181 = vadd.f32 %v3020, %v3180
        %v3182 = vpop.f32.mrb[0].mxu0
        %3183 = vmatprep.mubr.bf16.mxu0 %v1785
        %3184 = vmatmul.mubr.bf16.gmra.mrb[0].mxu0 %v1693
        %v3185 = vpop.f32.mrb[0].mxu0
        %v3186 = vadd.f32 %v3025, %v3185
        %v3187 = vpop.f32.mrb[0].mxu0
        %v3188 = vpop.f32.mrb[0].mxu0
        %v3189 = vadd.f32 %v3028, %v3188
        %v3190 = vpop.f32.mrb[0].mxu0
        %3191 = vmatprep.mubr.bf16.mxu0 %v1797
        %3192 = vmatmul.mubr.bf16.gmra.mrb[0].mxu0 %v1694
        %v3193 = vpop.f32.mrb[0].mxu0
        %v3194 = vadd.f32 %v3033, %v3193
        %v3195 = vpop.f32.mrb[0].mxu0
        %v3196 = vpop.f32.mrb[0].mxu0
        %v3197 = vadd.f32 %v3036, %v3196
        %v3198 = vpop.f32.mrb[0].mxu0
        %3199 = vmatprep.mubr.bf16.mxu0 %v1809
        %3200 = vmatmul.mubr.bf16.gmra.mrb[0].mxu0 %v1695
        %v3201 = vpop.f32.mrb[0].mxu0
        %v3202 = vadd.f32 %v3041, %v3201
        %v3203 = vpop.f32.mrb[0].mxu0
        %v3204 = vpop.f32.mrb[0].mxu0
        %v3205 = vadd.f32 %v3044, %v3204
        %v3206 = vpop.f32.mrb[0].mxu0
        %3207 = vmatprep.mubr.bf16.mxu0 %v1821
        %3208 = vmatmul.mubr.bf16.gmra.mrb[0].mxu0 %v1696
        %v3209 = vpop.f32.mrb[0].mxu0
        %v3210 = vadd.f32 %v3049, %v3209
        %v3211 = vpop.f32.mrb[0].mxu0
        %v3212 = vpop.f32.mrb[0].mxu0
        %v3213 = vadd.f32 %v3052, %v3212
        %v3214 = vpop.f32.mrb[0].mxu0
        %3215 = vmatprep.mubr.bf16.mxu0 %v1833
        %3216 = vmatmul.mubr.bf16.gmra.mrb[0].mxu0 %v1697
        %v3217 = vpop.f32.mrb[0].mxu0
        %v3218 = vadd.f32 %v3057, %v3217
        %v3219 = vpop.f32.mrb[0].mxu0
        %v3220 = vpop.f32.mrb[0].mxu0
        %v3221 = vadd.f32 %v3060, %v3220
        %v3222 = vpop.f32.mrb[0].mxu0
        %3223 = vmatprep.mubr.bf16.mxu0 %v1845
        %3224 = vmatmul.mubr.bf16.gmra.mrb[0].mxu0 %v1698
        %v3225 = vpop.f32.mrb[0].mxu0
        %v3226 = vadd.f32 %v3065, %v3225
        %v3227 = vpop.f32.mrb[0].mxu0
        %v3228 = vpop.f32.mrb[0].mxu0
        %v3229 = vadd.f32 %v3068, %v3228
        %v3230 = vpop.f32.mrb[0].mxu0
        %3231 = vmatprep.mubr.bf16.mxu0 %v1857
        %3232 = vmatmul.mubr.bf16.gmra.mrb[0].mxu0 %v1699
        %v3233 = vpop.f32.mrb[0].mxu0
        %v3234 = vadd.f32 %v3073, %v3233
        %v3235 = vpop.f32.mrb[0].mxu0
        %v3236 = vpop.f32.mrb[0].mxu0
        %v3237 = vadd.f32 %v3076, %v3236
        %v3238 = vpop.f32.mrb[0].mxu0
        %3239 = vmatprep.mubr.bf16.mxu0 %v1869
        %3240 = vmatmul.mubr.bf16.gmra.mrb[0].mxu0 %v1700
        %v3241 = vpop.f32.mrb[0].mxu0
        %v3242 = vadd.f32 %v3081, %v3241
        %v3243 = vpop.f32.mrb[0].mxu0
        %v3244 = vpop.f32.mrb[0].mxu0
        %v3245 = vadd.f32 %v3084, %v3244
        %v3246 = vpop.f32.mrb[0].mxu0
        %3247 = vmatprep.mubr.bf16.mxu0 %v1881
        %3248 = vmatmul.mubr.bf16.gmra.mrb[0].mxu0 %v1701
        %v3249 = vpop.f32.mrb[0].mxu0
        %v3250 = vadd.f32 %v3089, %v3249
        %v3251 = vpop.f32.mrb[0].mxu0
        %v3252 = vpop.f32.mrb[0].mxu0
        %v3253 = vadd.f32 %v3092, %v3252
        %v3254 = vpop.f32.mrb[0].mxu0
        %3255 = vmatprep.mubr.bf16.mxu0 %v1893
        %3256 = vmatmul.mubr.bf16.gmra.mrb[0].mxu0 %v1702
        %v3257 = vpop.f32.mrb[0].mxu0
        %v3258 = vadd.f32 %v3097, %v3257
        %v3259 = vpop.f32.mrb[0].mxu0
        %v3260 = vpop.f32.mrb[0].mxu0
        %v3261 = vadd.f32 %v3100, %v3260
        %v3262 = vpop.f32.mrb[0].mxu0
        %3263 = vmatprep.mubr.bf16.mxu0 %v1905
        %3264 = vmatmul.mubr.bf16.gmra.mrb[0].mxu0 %v1703
        %v3265 = vpop.f32.mrb[0].mxu0
        %v3266 = vadd.f32 %v3105, %v3265
        %v3267 = vpop.f32.mrb[0].mxu0
        %v3268 = vpop.f32.mrb[0].mxu0
        %v3269 = vadd.f32 %v3108, %v3268
        %v3270 = vpop.f32.mrb[0].mxu0
        %3271 = vmatprep.mubr.bf16.mxu0 %v1917
        %3272 = vmatmul.mubr.bf16.gmra.mrb[0].mxu0 %v1704
        %v3273 = vpop.f32.mrb[0].mxu0
        %v3274 = vadd.f32 %v3113, %v3273
        %v3275 = vpop.f32.mrb[0].mxu0
        %v3276 = vpop.f32.mrb[0].mxu0
        %v3277 = vadd.f32 %v3116, %v3276
        %v3278 = vpop.f32.mrb[0].mxu0
        %3279 = vmatprep.mubr.bf16.mxu0 %v2042
        %3280 = vmatmul.mubr.bf16.gmra.mrb[0].mxu0 %v1705
        %v3281 = vpop.f32.mrb[0].mxu0
        %v3282 = vadd.f32 %v3121, %v3281
        %v3283 = vpop.f32.mrb[0].mxu0
        %v3284 = vpop.f32.mrb[0].mxu0
        %v3285 = vadd.f32 %v3124, %v3284
        %v3286 = vpop.f32.mrb[0].mxu0
        %3287 = vmatprep.mubr.bf16.mxu0 %v2061
        %3288 = vmatmul.mubr.bf16.gmra.mrb[0].mxu0 %v1706
        %v3289 = vpop.f32.mrb[0].mxu0
        %v3290 = vadd.f32 %v3129, %v3289
        %v3291 = vpop.f32.mrb[0].mxu0
        %v3292 = vpop.f32.mrb[0].mxu0
        %v3293 = vadd.f32 %v3132, %v3292
        %v3294 = vpop.f32.mrb[0].mxu0
        %3295 = vdwg.mxu0
        %3296 = vmatprep.subr.bf16.mxu0 0
        %3297 = vmatpush1.bf16.msra.mxu0 %v2572
        %3298 = vmatprep.subr.bf16.mxu0 0
        %3299 = vmatpush1.bf16.msra.mxu0 %v2573
        %3300 = vmatprep.subr.bf16.mxu0 0
        %3301 = vmatpush1.bf16.msra.mxu0 %v2574
        %3302 = vmatprep.subr.bf16.mxu0 0
        %3303 = vmatpush1.bf16.msra.mxu0 %v2575
        %3304 = vmatprep.subr.bf16.mxu0 0
        %3305 = vmatpush1.bf16.msra.mxu0 %v2576
        %3306 = vmatprep.subr.bf16.mxu0 0
        %3307 = vmatpush1.bf16.msra.mxu0 %v2577
        %3308 = vmatprep.subr.bf16.mxu0 0
        %3309 = vmatpush1.bf16.msra.mxu0 %v2578
        %3310 = vmatprep.subr.bf16.mxu0 0
        %3311 = vmatpush1.bf16.msra.mxu0 %v2579
        %3312 = vmatprep.subr.bf16.mxu0 0
        %3313 = vmatpush1.bf16.msra.mxu0 0
        %3314 = vmatprep.subr.bf16.mxu0 0
        %3315 = vmatpush1.bf16.msra.mxu0 0
        %3316 = vmatprep.subr.bf16.mxu0 0
        %3317 = vmatpush1.bf16.msra.mxu0 0
        %3318 = vmatprep.subr.bf16.mxu0 0
        %3319 = vmatpush1.bf16.msra.mxu0 0
        %3320 = vmatprep.subr.bf16.mxu0 0
        %3321 = vmatpush1.bf16.msra.mxu0 0
        %3322 = vmatprep.subr.bf16.mxu0 0
        %3323 = vmatpush1.bf16.msra.mxu0 0
        %3324 = vmatprep.subr.bf16.mxu0 0
        %3325 = vmatpush1.bf16.msra.mxu0 0
        %3326 = vmatprep.subr.bf16.mxu0 0
        %3327 = vmatpush1.bf16.msra.mxu0 0
        %3328 = vmatprep.mubr.bf16.mxu0 0
        %3329 = vmatmul.mubr.bf16.gmra.mrb[0].mxu0 %v1975
        %v3330 = vpop.f32.mrb[0].mxu0
        %v3331 = vadd.f32 %v3170, %v3330
        %v3332 = vpop.f32.mrb[0].mxu0
        %v3333 = vpop.f32.mrb[0].mxu0
        %v3334 = vadd.f32 %v3173, %v3333
        %v3335 = vpop.f32.mrb[0].mxu0
        %3336 = vmatprep.mubr.bf16.mxu0 0
        %3337 = vmatmul.mubr.bf16.gmra.mrb[0].mxu0 %v1978
        %v3338 = vpop.f32.mrb[0].mxu0
        %v3339 = vadd.f32 %v3178, %v3338
        %v3340 = vpop.f32.mrb[0].mxu0
        %v3341 = vpop.f32.mrb[0].mxu0
        %v3342 = vadd.f32 %v3181, %v3341
        %v3343 = vpop.f32.mrb[0].mxu0
        %3344 = vmatprep.mubr.bf16.mxu0 0
        %3345 = vmatmul.mubr.bf16.gmra.mrb[0].mxu0 %v1981
        %v3346 = vpop.f32.mrb[0].mxu0
        %v3347 = vadd.f32 %v3186, %v3346
        %v3348 = vpop.f32.mrb[0].mxu0
        %v3349 = vpop.f32.mrb[0].mxu0
        %v3350 = vadd.f32 %v3189, %v3349
        %v3351 = vpop.f32.mrb[0].mxu0
        %3352 = vmatprep.mubr.bf16.mxu0 0
        %3353 = vmatmul.mubr.bf16.gmra.mrb[0].mxu0 %v1984
        %v3354 = vpop.f32.mrb[0].mxu0
        %v3355 = vadd.f32 %v3194, %v3354
        %v3356 = vpop.f32.mrb[0].mxu0
        %v3357 = vpop.f32.mrb[0].mxu0
        %v3358 = vadd.f32 %v3197, %v3357
        %v3359 = vpop.f32.mrb[0].mxu0
        %3360 = vmatprep.mubr.bf16.mxu0 0
        %3361 = vmatmul.mubr.bf16.gmra.mrb[0].mxu0 %v1987
        %v3362 = vpop.f32.mrb[0].mxu0
        %v3363 = vadd.f32 %v3202, %v3362
        %v3364 = vpop.f32.mrb[0].mxu0
        %v3365 = vpop.f32.mrb[0].mxu0
        %v3366 = vadd.f32 %v3205, %v3365
        %v3367 = vpop.f32.mrb[0].mxu0
        %3368 = vmatprep.mubr.bf16.mxu0 0
        %3369 = vmatmul.mubr.bf16.gmra.mrb[0].mxu0 %v1990
        %v3370 = vpop.f32.mrb[0].mxu0
        %v3371 = vadd.f32 %v3210, %v3370
        %v3372 = vpop.f32.mrb[0].mxu0
        %v3373 = vpop.f32.mrb[0].mxu0
        %v3374 = vadd.f32 %v3213, %v3373
        %v3375 = vpop.f32.mrb[0].mxu0
        %3376 = vmatprep.mubr.bf16.mxu0 0
        %3377 = vmatmul.mubr.bf16.gmra.mrb[0].mxu0 %v1993
        %v3378 = vpop.f32.mrb[0].mxu0
        %v3379 = vadd.f32 %v3218, %v3378
        %v3380 = vpop.f32.mrb[0].mxu0
        %v3381 = vpop.f32.mrb[0].mxu0
        %v3382 = vadd.f32 %v3221, %v3381
        %v3383 = vpop.f32.mrb[0].mxu0
        %3384 = vmatprep.mubr.bf16.mxu0 0
        %3385 = vmatmul.mubr.bf16.gmra.mrb[0].mxu0 %v1996
        %v3386 = vpop.f32.mrb[0].mxu0
        %v3387 = vadd.f32 %v3226, %v3386
        %v3388 = vpop.f32.mrb[0].mxu0
        %v3389 = vpop.f32.mrb[0].mxu0
        %v3390 = vadd.f32 %v3229, %v3389
        %v3391 = vpop.f32.mrb[0].mxu0
        %3392 = vmatprep.mubr.bf16.mxu0 0
        %3393 = vmatmul.mubr.bf16.gmra.mrb[0].mxu0 %v1999
        %v3394 = vpop.f32.mrb[0].mxu0
        %v3395 = vadd.f32 %v3234, %v3394
        %v3396 = vpop.f32.mrb[0].mxu0
        %v3397 = vpop.f32.mrb[0].mxu0
        %v3398 = vadd.f32 %v3237, %v3397
        %v3399 = vpop.f32.mrb[0].mxu0
        %3400 = vmatprep.mubr.bf16.mxu0 0
        %3401 = vmatmul.mubr.bf16.gmra.mrb[0].mxu0 %v2002
        %v3402 = vpop.f32.mrb[0].mxu0
        %v3403 = vadd.f32 %v3242, %v3402
        %v3404 = vpop.f32.mrb[0].mxu0
        %v3405 = vpop.f32.mrb[0].mxu0
        %v3406 = vadd.f32 %v3245, %v3405
        %v3407 = vpop.f32.mrb[0].mxu0
        %3408 = vmatprep.mubr.bf16.mxu0 0
        %3409 = vmatmul.mubr.bf16.gmra.mrb[0].mxu0 %v2005
        %v3410 = vpop.f32.mrb[0].mxu0
        %v3411 = vadd.f32 %v3250, %v3410
        %v3412 = vpop.f32.mrb[0].mxu0
        %v3413 = vpop.f32.mrb[0].mxu0
        %v3414 = vadd.f32 %v3253, %v3413
        %v3415 = vpop.f32.mrb[0].mxu0
        %3416 = vmatprep.mubr.bf16.mxu0 0
        %3417 = vmatmul.mubr.bf16.gmra.mrb[0].mxu0 %v2008
        %v3418 = vpop.f32.mrb[0].mxu0
        %v3419 = vadd.f32 %v3258, %v3418
        %v3420 = vpop.f32.mrb[0].mxu0
        %v3421 = vpop.f32.mrb[0].mxu0
        %v3422 = vadd.f32 %v3261, %v3421
        %v3423 = vpop.f32.mrb[0].mxu0
        %3424 = vmatprep.mubr.bf16.mxu0 0
        %3425 = vmatmul.mubr.bf16.gmra.mrb[0].mxu0 %v2011
        %v3426 = vpop.f32.mrb[0].mxu0
        %v3427 = vadd.f32 %v3266, %v3426
        %v3428 = vpop.f32.mrb[0].mxu0
        %v3429 = vpop.f32.mrb[0].mxu0
        %v3430 = vadd.f32 %v3269, %v3429
        %v3431 = vpop.f32.mrb[0].mxu0
        %3432 = vmatprep.mubr.bf16.mxu0 0
        %3433 = vmatmul.mubr.bf16.gmra.mrb[0].mxu0 %v2014
        %v3434 = vpop.f32.mrb[0].mxu0
        %v3435 = vadd.f32 %v3274, %v3434
        %v3436 = vpop.f32.mrb[0].mxu0
        %v3437 = vpop.f32.mrb[0].mxu0
        %v3438 = vadd.f32 %v3277, %v3437
        %v3439 = vpop.f32.mrb[0].mxu0
        %3440 = vmatprep.mubr.bf16.mxu0 0
        %3441 = vmatmul.mubr.bf16.gmra.mrb[0].mxu0 %v2048
        %v3442 = vpop.f32.mrb[0].mxu0
        %v3443 = vadd.f32 %v3282, %v3442
        %v3444 = vpop.f32.mrb[0].mxu0
        %v3445 = vpop.f32.mrb[0].mxu0
        %v3446 = vadd.f32 %v3285, %v3445
        %v3447 = vpop.f32.mrb[0].mxu0
        %3448 = vmatprep.mubr.bf16.mxu0 0
        %3449 = vmatmul.mubr.bf16.gmra.mrb[0].mxu0 %v2067
        %v3450 = vpop.f32.mrb[0].mxu0
        %v3451 = vadd.f32 %v3290, %v3450
        %v3452 = vpop.f32.mrb[0].mxu0
        %v3453 = vpop.f32.mrb[0].mxu0
        %v3454 = vadd.f32 %v3293, %v3453
        %v3455 = vpop.f32.mrb[0].mxu0
        %3456 = vdwg.mxu0
        %v3457 = vmax.f32 %v3331, 0.0
        %v3458 = vmax.f32 %v3334, 0.0
        %v3459 = vmax.f32 %v3339, 0.0
        %v3460 = vmax.f32 %v3342, 0.0
        %v3461 = vmax.f32 %v3347, 0.0
        %v3462 = vmax.f32 %v3350, 0.0
        %v3463 = vmax.f32 %v3355, 0.0
        %v3464 = vmax.f32 %v3358, 0.0
        %v3465 = vmax.f32 %v3363, 0.0
        %v3466 = vmax.f32 %v3366, 0.0
        %v3467 = vmax.f32 %v3371, 0.0
        %v3468 = vmax.f32 %v3374, 0.0
        %v3469 = vmax.f32 %v3379, 0.0
        %v3470 = vmax.f32 %v3382, 0.0
        %v3471 = vmax.f32 %v3387, 0.0
        %v3472 = vmax.f32 %v3390, 0.0
        %v3473 = vmax.f32 %v3395, 0.0
        %v3474 = vmax.f32 %v3398, 0.0
        %v3475 = vmax.f32 %v3403, 0.0
        %v3476 = vmax.f32 %v3406, 0.0
        %v3477 = vmax.f32 %v3411, 0.0
        %v3478 = vmax.f32 %v3414, 0.0
        %v3479 = vmax.f32 %v3419, 0.0
        %v3480 = vmax.f32 %v3422, 0.0
        %v3481 = vmax.f32 %v3427, 0.0
        %v3482 = vmax.f32 %v3430, 0.0
        %v3483 = vmax.f32 %v3435, 0.0
        %v3484 = vmax.f32 %v3438, 0.0
        %v3485 = vmax.f32 %v3443, 0.0
        %v3486 = vmax.f32 %v3446, 0.0
        %v3487 = vmax.f32 %v3451, 0.0
        %v3488 = vmax.f32 %v3454, 0.0
        %v3489 = vpack.c.bf16 %v3458, %v3457
        %v3490 = vpack.c.bf16 %v3460, %v3459
        %v3491 = vpack.c.bf16 %v3462, %v3461
        %v3492 = vpack.c.bf16 %v3464, %v3463
        %v3493 = vpack.c.bf16 %v3466, %v3465
        %v3494 = vpack.c.bf16 %v3468, %v3467
        %v3495 = vpack.c.bf16 %v3470, %v3469
        %v3496 = vpack.c.bf16 %v3472, %v3471
        %v3497 = vpack.c.bf16 %v3474, %v3473
        %v3498 = vpack.c.bf16 %v3476, %v3475
        %v3499 = vpack.c.bf16 %v3478, %v3477
        %v3500 = vpack.c.bf16 %v3480, %v3479
        %v3501 = vpack.c.bf16 %v3482, %v3481
        %v3502 = vpack.c.bf16 %v3484, %v3483
        %v3503 = vpack.c.bf16 %v3486, %v3485
        %v3504 = vpack.c.bf16 %v3488, %v3487
        %v3505 = vld [vmem:[%s6] sm:$0xff]
        %v3506 = vld [vmem:[%s6 + $0x8] sm:$0xff]
        %v3507 = vld [vmem:[%s6 + $0x10] sm:$0xff]
        %v3508 = vld [vmem:[%s6 + $0x18] sm:$0xff]
        %v3509 = vld [vmem:[%s6 + $0x20] sm:$0xff]
        %v3510 = vld [vmem:[%s6 + $0x28] sm:$0xff]
        %v3511 = vld [vmem:[%s6 + $0x30] sm:$0xff]
        %v3512 = vld [vmem:[%s6 + $0x38] sm:$0xff]
        %v3513 = vld [vmem:[%s6 + $0x40] sm:$0xff]
        %v3514 = vld [vmem:[%s6 + $0x48] sm:$0xff]
        %v3515 = vld [vmem:[%s6 + $0x50] sm:$0xff]
        %v3516 = vld [vmem:[%s6 + $0x58] sm:$0xff]
        %v3517 = vld [vmem:[%s6 + $0x60] sm:$0xff]
        %v3518 = vld [vmem:[%s6 + $0x68] sm:$0xff]
        %v3519 = vld [vmem:[%s6 + $0x70] sm:$0xff]
        %v3520 = vld [vmem:[%s6 + $0x78] sm:$0xff]
        %v3521 = vld [vmem:[%s6 + $0x80] sm:$0xff]
        %v3522 = vld [vmem:[%s6 + $0x88] sm:$0xff]
        %v3523 = vld [vmem:[%s6 + $0x90] sm:$0xff]
        %v3524 = vld [vmem:[%s6 + $0x98] sm:$0xff]
        %v3525 = vld [vmem:[%s6 + $0xa0] sm:$0xff]
        %v3526 = vld [vmem:[%s6 + $0xa8] sm:$0xff]
        %v3527 = vld [vmem:[%s6 + $0xb0] sm:$0xff]
        %v3528 = vld [vmem:[%s6 + $0xb8] sm:$0xff]
        %v3529 = vld [vmem:[%s6 + $0xc0] sm:$0xff]
        %v3530 = vld [vmem:[%s6 + $0xc8] sm:$0xff]
        %v3531 = vld [vmem:[%s6 + $0xd0] sm:$0xff]
        %v3532 = vld [vmem:[%s6 + $0xd8] sm:$0xff]
        %v3533 = vld [vmem:[%s6 + $0xe0] sm:$0xff]
        %v3534 = vld [vmem:[%s6 + $0xe8] sm:$0xff]
        %v3535 = vld [vmem:[%s6 + $0xf0] sm:$0xff]
        %v3536 = vld [vmem:[%s6 + $0xf8] sm:$0xff]
        %v3537 = vld [vmem:[%s7] sm:$0xf]
        %v3539 = vlaneseq
        %v3540 = vshrl.u32 %v3539, 7
        %v3541 = vsub.s32 0, %v3540
        %v3542 = vrot.slane %v3537, %v3541
        %v3543 = vlaneseq
        %v3544 = vshrl.u32 %v3543, 7
        %v3545 = vsub.s32 1, %v3544
        %v3546 = vrot.slane %v3537, %v3545
        %v3547 = vlaneseq
        %v3548 = vshrl.u32 %v3547, 7
        %v3549 = vsub.s32 2, %v3548
        %v3550 = vrot.slane %v3537, %v3549
        %v3551 = vlaneseq
        %v3552 = vshrl.u32 %v3551, 7
        %v3553 = vsub.s32 3, %v3552
        %v3554 = vrot.slane %v3537, %v3553
        %v3591 = vunpack.c.l.b16 %v3505
        %v3592 = vunpack.c.h.b16 %v3505
        %v3593 = vunpack.c.l.b16 %v3506
        %v3594 = vunpack.c.h.b16 %v3506
        %v3595 = vunpack.c.l.b16 %v3507
        %v3596 = vunpack.c.h.b16 %v3507
        %v3597 = vunpack.c.l.b16 %v3508
        %v3598 = vunpack.c.h.b16 %v3508
        %v3599 = vunpack.c.l.b16 %v3509
        %v3600 = vunpack.c.h.b16 %v3509
        %v3601 = vunpack.c.l.b16 %v3510
        %v3602 = vunpack.c.h.b16 %v3510
        %v3603 = vunpack.c.l.b16 %v3511
        %v3604 = vunpack.c.h.b16 %v3511
        %v3605 = vunpack.c.l.b16 %v3512
        %v3606 = vunpack.c.h.b16 %v3512
        %v3607 = vunpack.c.l.b16 %v3513
        %v3608 = vunpack.c.h.b16 %v3513
        %v3609 = vunpack.c.l.b16 %v3514
        %v3610 = vunpack.c.h.b16 %v3514
        %v3611 = vunpack.c.l.b16 %v3515
        %v3612 = vunpack.c.h.b16 %v3515
        %v3613 = vunpack.c.l.b16 %v3516
        %v3614 = vunpack.c.h.b16 %v3516
        %v3615 = vunpack.c.l.b16 %v3517
        %v3616 = vunpack.c.h.b16 %v3517
        %v3617 = vunpack.c.l.b16 %v3518
        %v3618 = vunpack.c.h.b16 %v3518
        %v3619 = vunpack.c.l.b16 %v3519
        %v3620 = vunpack.c.h.b16 %v3519
        %v3621 = vunpack.c.l.b16 %v3520
        %v3622 = vunpack.c.h.b16 %v3520
        %v3623 = vunpack.c.l.b16 %v3521
        %v3624 = vunpack.c.h.b16 %v3521
        %v3625 = vunpack.c.l.b16 %v3522
        %v3626 = vunpack.c.h.b16 %v3522
        %v3627 = vunpack.c.l.b16 %v3523
        %v3628 = vunpack.c.h.b16 %v3523
        %v3629 = vunpack.c.l.b16 %v3524
        %v3630 = vunpack.c.h.b16 %v3524
        %v3631 = vunpack.c.l.b16 %v3525
        %v3632 = vunpack.c.h.b16 %v3525
        %v3633 = vunpack.c.l.b16 %v3526
        %v3634 = vunpack.c.h.b16 %v3526
        %v3635 = vunpack.c.l.b16 %v3527
        %v3636 = vunpack.c.h.b16 %v3527
        %v3637 = vunpack.c.l.b16 %v3528
        %v3638 = vunpack.c.h.b16 %v3528
        %v3639 = vunpack.c.l.b16 %v3529
        %v3640 = vunpack.c.h.b16 %v3529
        %v3641 = vunpack.c.l.b16 %v3530
        %v3642 = vunpack.c.h.b16 %v3530
        %v3643 = vunpack.c.l.b16 %v3531
        %v3644 = vunpack.c.h.b16 %v3531
        %v3645 = vunpack.c.l.b16 %v3532
        %v3646 = vunpack.c.h.b16 %v3532
        %v3647 = vunpack.c.l.b16 %v3533
        %v3648 = vunpack.c.h.b16 %v3533
        %v3649 = vunpack.c.l.b16 %v3534
        %v3650 = vunpack.c.h.b16 %v3534
        %v3651 = vunpack.c.l.b16 %v3535
        %v3652 = vunpack.c.h.b16 %v3535
        %v3653 = vunpack.c.l.b16 %v3536
        %v3654 = vunpack.c.h.b16 %v3536
        %v3655 = vpack.c.b16 %v3595, %v3591
        %v3656 = vpack.c.b16 %v3596, %v3592
        %v3657 = vpack.c.b16 %v3597, %v3593
        %v3658 = vpack.c.b16 %v3598, %v3594
        %v3659 = vpack.c.b16 %v3603, %v3599
        %v3660 = vpack.c.b16 %v3604, %v3600
        %v3661 = vpack.c.b16 %v3605, %v3601
        %v3662 = vpack.c.b16 %v3606, %v3602
        %v3663 = vpack.c.b16 %v3611, %v3607
        %v3664 = vpack.c.b16 %v3612, %v3608
        %v3665 = vpack.c.b16 %v3613, %v3609
        %v3666 = vpack.c.b16 %v3614, %v3610
        %v3667 = vpack.c.b16 %v3619, %v3615
        %v3668 = vpack.c.b16 %v3620, %v3616
        %v3669 = vpack.c.b16 %v3621, %v3617
        %v3670 = vpack.c.b16 %v3622, %v3618
        %v3671 = vpack.c.b16 %v3627, %v3623
        %v3672 = vpack.c.b16 %v3628, %v3624
        %v3673 = vpack.c.b16 %v3629, %v3625
        %v3674 = vpack.c.b16 %v3630, %v3626
        %v3675 = vpack.c.b16 %v3635, %v3631
        %v3676 = vpack.c.b16 %v3636, %v3632
        %v3677 = vpack.c.b16 %v3637, %v3633
        %v3678 = vpack.c.b16 %v3638, %v3634
        %v3679 = vpack.c.b16 %v3643, %v3639
        %v3680 = vpack.c.b16 %v3644, %v3640
        %v3681 = vpack.c.b16 %v3645, %v3641
        %v3682 = vpack.c.b16 %v3646, %v3642
        %v3683 = vpack.c.b16 %v3651, %v3647
        %v3684 = vpack.c.b16 %v3652, %v3648
        %v3685 = vpack.c.b16 %v3653, %v3649
        %v3686 = vpack.c.b16 %v3654, %v3650
        %3719 = vmatprep.subr.bf16.mxu0 %v3656
        %3720 = vmatpush1.bf16.msra.mxu0 %v3655
        %3721 = vmatprep.subr.bf16.mxu0 %v3660
        %3722 = vmatpush1.bf16.msra.mxu0 %v3659
        %3723 = vmatprep.subr.bf16.mxu0 %v3664
        %3724 = vmatpush1.bf16.msra.mxu0 %v3663
        %3725 = vmatprep.subr.bf16.mxu0 %v3668
        %3726 = vmatpush1.bf16.msra.mxu0 %v3667
        %3727 = vmatprep.subr.bf16.mxu0 %v3672
        %3728 = vmatpush1.bf16.msra.mxu0 %v3671
        %3729 = vmatprep.subr.bf16.mxu0 %v3676
        %3730 = vmatpush1.bf16.msra.mxu0 %v3675
        %3731 = vmatprep.subr.bf16.mxu0 %v3680
        %3732 = vmatpush1.bf16.msra.mxu0 %v3679
        %3733 = vmatprep.subr.bf16.mxu0 %v3684
        %3734 = vmatpush1.bf16.msra.mxu0 %v3683
        %3735 = vmatprep.subr.bf16.mxu0 0
        %3736 = vmatpush1.bf16.msra.mxu0 0
        %3737 = vmatprep.subr.bf16.mxu0 0
        %3738 = vmatpush1.bf16.msra.mxu0 0
        %3739 = vmatprep.subr.bf16.mxu0 0
        %3740 = vmatpush1.bf16.msra.mxu0 0
        %3741 = vmatprep.subr.bf16.mxu0 0
        %3742 = vmatpush1.bf16.msra.mxu0 0
        %3743 = vmatprep.subr.bf16.mxu0 0
        %3744 = vmatpush1.bf16.msra.mxu0 0
        %3745 = vmatprep.subr.bf16.mxu0 0
        %3746 = vmatpush1.bf16.msra.mxu0 0
        %3747 = vmatprep.subr.bf16.mxu0 0
        %3748 = vmatpush1.bf16.msra.mxu0 0
        %3749 = vmatprep.subr.bf16.mxu0 0
        %3750 = vmatpush1.bf16.msra.mxu0 0
        %3751 = vmatprep.mubr.bf16.mxu0 0
        %3752 = vmatmul.mubr.bf16.gmra.mrb[0].mxu0 %v3489
        %v3753 = vpop.f32.mrb[0].mxu0
        %v3754 = vadd.f32 %v3542, %v3753
        %v3755 = vpop.f32.mrb[0].mxu0
        %v3756 = vadd.f32 %v3546, %v3755
        %v3757 = vpop.f32.mrb[0].mxu0
        %v3758 = vadd.f32 %v3542, %v3757
        %v3759 = vpop.f32.mrb[0].mxu0
        %v3760 = vadd.f32 %v3546, %v3759
        %3761 = vmatprep.mubr.bf16.mxu0 0
        %3762 = vmatmul.mubr.bf16.gmra.mrb[0].mxu0 %v3490
        %v3763 = vpop.f32.mrb[0].mxu0
        %v3764 = vadd.f32 %v3542, %v3763
        %v3765 = vpop.f32.mrb[0].mxu0
        %v3766 = vadd.f32 %v3546, %v3765
        %v3767 = vpop.f32.mrb[0].mxu0
        %v3768 = vadd.f32 %v3542, %v3767
        %v3769 = vpop.f32.mrb[0].mxu0
        %v3770 = vadd.f32 %v3546, %v3769
        %3771 = vmatprep.mubr.bf16.mxu0 0
        %3772 = vmatmul.mubr.bf16.gmra.mrb[0].mxu0 %v3491
        %v3773 = vpop.f32.mrb[0].mxu0
        %v3774 = vadd.f32 %v3542, %v3773
        %v3775 = vpop.f32.mrb[0].mxu0
        %v3776 = vadd.f32 %v3546, %v3775
        %v3777 = vpop.f32.mrb[0].mxu0
        %v3778 = vadd.f32 %v3542, %v3777
        %v3779 = vpop.f32.mrb[0].mxu0
        %v3780 = vadd.f32 %v3546, %v3779
        %3781 = vmatprep.mubr.bf16.mxu0 0
        %3782 = vmatmul.mubr.bf16.gmra.mrb[0].mxu0 %v3492
        %v3783 = vpop.f32.mrb[0].mxu0
        %v3784 = vadd.f32 %v3542, %v3783
        %v3785 = vpop.f32.mrb[0].mxu0
        %v3786 = vadd.f32 %v3546, %v3785
        %v3787 = vpop.f32.mrb[0].mxu0
        %v3788 = vadd.f32 %v3542, %v3787
        %v3789 = vpop.f32.mrb[0].mxu0
        %v3790 = vadd.f32 %v3546, %v3789
        %3791 = vmatprep.mubr.bf16.mxu0 0
        %3792 = vmatmul.mubr.bf16.gmra.mrb[0].mxu0 %v3493
        %v3793 = vpop.f32.mrb[0].mxu0
        %v3794 = vadd.f32 %v3542, %v3793
        %v3795 = vpop.f32.mrb[0].mxu0
        %v3796 = vadd.f32 %v3546, %v3795
        %v3797 = vpop.f32.mrb[0].mxu0
        %v3798 = vadd.f32 %v3542, %v3797
        %v3799 = vpop.f32.mrb[0].mxu0
        %v3800 = vadd.f32 %v3546, %v3799
        %3801 = vmatprep.mubr.bf16.mxu0 0
        %3802 = vmatmul.mubr.bf16.gmra.mrb[0].mxu0 %v3494
        %v3803 = vpop.f32.mrb[0].mxu0
        %v3804 = vadd.f32 %v3542, %v3803
        %v3805 = vpop.f32.mrb[0].mxu0
        %v3806 = vadd.f32 %v3546, %v3805
        %v3807 = vpop.f32.mrb[0].mxu0
        %v3808 = vadd.f32 %v3542, %v3807
        %v3809 = vpop.f32.mrb[0].mxu0
        %v3810 = vadd.f32 %v3546, %v3809
        %3811 = vmatprep.mubr.bf16.mxu0 0
        %3812 = vmatmul.mubr.bf16.gmra.mrb[0].mxu0 %v3495
        %v3813 = vpop.f32.mrb[0].mxu0
        %v3814 = vadd.f32 %v3542, %v3813
        %v3815 = vpop.f32.mrb[0].mxu0
        %v3816 = vadd.f32 %v3546, %v3815
        %v3817 = vpop.f32.mrb[0].mxu0
        %v3818 = vadd.f32 %v3542, %v3817
        %v3819 = vpop.f32.mrb[0].mxu0
        %v3820 = vadd.f32 %v3546, %v3819
        %3821 = vmatprep.mubr.bf16.mxu0 0
        %3822 = vmatmul.mubr.bf16.gmra.mrb[0].mxu0 %v3496
        %v3823 = vpop.f32.mrb[0].mxu0
        %v3824 = vadd.f32 %v3542, %v3823
        %v3825 = vpop.f32.mrb[0].mxu0
        %v3826 = vadd.f32 %v3546, %v3825
        %v3827 = vpop.f32.mrb[0].mxu0
        %v3828 = vadd.f32 %v3542, %v3827
        %v3829 = vpop.f32.mrb[0].mxu0
        %v3830 = vadd.f32 %v3546, %v3829
        %3831 = vmatprep.mubr.bf16.mxu0 0
        %3832 = vmatmul.mubr.bf16.gmra.mrb[0].mxu0 %v3497
        %v3833 = vpop.f32.mrb[0].mxu0
        %v3834 = vadd.f32 %v3542, %v3833
        %v3835 = vpop.f32.mrb[0].mxu0
        %v3836 = vadd.f32 %v3546, %v3835
        %v3837 = vpop.f32.mrb[0].mxu0
        %v3838 = vadd.f32 %v3542, %v3837
        %v3839 = vpop.f32.mrb[0].mxu0
        %v3840 = vadd.f32 %v3546, %v3839
        %3841 = vmatprep.mubr.bf16.mxu0 0
        %3842 = vmatmul.mubr.bf16.gmra.mrb[0].mxu0 %v3498
        %v3843 = vpop.f32.mrb[0].mxu0
        %v3844 = vadd.f32 %v3542, %v3843
        %v3845 = vpop.f32.mrb[0].mxu0
        %v3846 = vadd.f32 %v3546, %v3845
        %v3847 = vpop.f32.mrb[0].mxu0
        %v3848 = vadd.f32 %v3542, %v3847
        %v3849 = vpop.f32.mrb[0].mxu0
        %v3850 = vadd.f32 %v3546, %v3849
        %3851 = vmatprep.mubr.bf16.mxu0 0
        %3852 = vmatmul.mubr.bf16.gmra.mrb[0].mxu0 %v3499
        %v3853 = vpop.f32.mrb[0].mxu0
        %v3854 = vadd.f32 %v3542, %v3853
        %v3855 = vpop.f32.mrb[0].mxu0
        %v3856 = vadd.f32 %v3546, %v3855
        %v3857 = vpop.f32.mrb[0].mxu0
        %v3858 = vadd.f32 %v3542, %v3857
        %v3859 = vpop.f32.mrb[0].mxu0
        %v3860 = vadd.f32 %v3546, %v3859
        %3861 = vmatprep.mubr.bf16.mxu0 0
        %3862 = vmatmul.mubr.bf16.gmra.mrb[0].mxu0 %v3500
        %v3863 = vpop.f32.mrb[0].mxu0
        %v3864 = vadd.f32 %v3542, %v3863
        %v3865 = vpop.f32.mrb[0].mxu0
        %v3866 = vadd.f32 %v3546, %v3865
        %v3867 = vpop.f32.mrb[0].mxu0
        %v3868 = vadd.f32 %v3542, %v3867
        %v3869 = vpop.f32.mrb[0].mxu0
        %v3870 = vadd.f32 %v3546, %v3869
        %3871 = vmatprep.mubr.bf16.mxu0 0
        %3872 = vmatmul.mubr.bf16.gmra.mrb[0].mxu0 %v3501
        %v3873 = vpop.f32.mrb[0].mxu0
        %v3874 = vadd.f32 %v3542, %v3873
        %v3875 = vpop.f32.mrb[0].mxu0
        %v3876 = vadd.f32 %v3546, %v3875
        %v3877 = vpop.f32.mrb[0].mxu0
        %v3878 = vadd.f32 %v3542, %v3877
        %v3879 = vpop.f32.mrb[0].mxu0
        %v3880 = vadd.f32 %v3546, %v3879
        %3881 = vmatprep.mubr.bf16.mxu0 0
        %3882 = vmatmul.mubr.bf16.gmra.mrb[0].mxu0 %v3502
        %v3883 = vpop.f32.mrb[0].mxu0
        %v3884 = vadd.f32 %v3542, %v3883
        %v3885 = vpop.f32.mrb[0].mxu0
        %v3886 = vadd.f32 %v3546, %v3885
        %v3887 = vpop.f32.mrb[0].mxu0
        %v3888 = vadd.f32 %v3542, %v3887
        %v3889 = vpop.f32.mrb[0].mxu0
        %v3890 = vadd.f32 %v3546, %v3889
        %3891 = vmatprep.mubr.bf16.mxu0 0
        %3892 = vmatmul.mubr.bf16.gmra.mrb[0].mxu0 %v3503
        %v3893 = vpop.f32.mrb[0].mxu0
        %v3894 = vadd.f32 %v3542, %v3893
        %v3895 = vpop.f32.mrb[0].mxu0
        %v3896 = vadd.f32 %v3546, %v3895
        %v3897 = vpop.f32.mrb[0].mxu0
        %v3898 = vadd.f32 %v3542, %v3897
        %v3899 = vpop.f32.mrb[0].mxu0
        %v3900 = vadd.f32 %v3546, %v3899
        %3901 = vmatprep.mubr.bf16.mxu0 0
        %3902 = vmatmul.mubr.bf16.gmra.mrb[0].mxu0 %v3504
        %v3903 = vpop.f32.mrb[0].mxu0
        %v3904 = vadd.f32 %v3542, %v3903
        %v3905 = vpop.f32.mrb[0].mxu0
        %v3906 = vadd.f32 %v3546, %v3905
        %v3907 = vpop.f32.mrb[0].mxu0
        %v3908 = vadd.f32 %v3542, %v3907
        %v3909 = vpop.f32.mrb[0].mxu0
        %v3910 = vadd.f32 %v3546, %v3909
        %3911 = vdwg.mxu0
        %3912 = vmatprep.subr.bf16.mxu0 %v3658
        %3913 = vmatpush1.bf16.msra.mxu0 %v3657
        %3914 = vmatprep.subr.bf16.mxu0 %v3662
        %3915 = vmatpush1.bf16.msra.mxu0 %v3661
        %3916 = vmatprep.subr.bf16.mxu0 %v3666
        %3917 = vmatpush1.bf16.msra.mxu0 %v3665
        %3918 = vmatprep.subr.bf16.mxu0 %v3670
        %3919 = vmatpush1.bf16.msra.mxu0 %v3669
        %3920 = vmatprep.subr.bf16.mxu0 %v3674
        %3921 = vmatpush1.bf16.msra.mxu0 %v3673
        %3922 = vmatprep.subr.bf16.mxu0 %v3678
        %3923 = vmatpush1.bf16.msra.mxu0 %v3677
        %3924 = vmatprep.subr.bf16.mxu0 %v3682
        %3925 = vmatpush1.bf16.msra.mxu0 %v3681
        %3926 = vmatprep.subr.bf16.mxu0 %v3686
        %3927 = vmatpush1.bf16.msra.mxu0 %v3685
        %3928 = vmatprep.subr.bf16.mxu0 0
        %3929 = vmatpush1.bf16.msra.mxu0 0
        %3930 = vmatprep.subr.bf16.mxu0 0
        %3931 = vmatpush1.bf16.msra.mxu0 0
        %3932 = vmatprep.subr.bf16.mxu0 0
        %3933 = vmatpush1.bf16.msra.mxu0 0
        %3934 = vmatprep.subr.bf16.mxu0 0
        %3935 = vmatpush1.bf16.msra.mxu0 0
        %3936 = vmatprep.subr.bf16.mxu0 0
        %3937 = vmatpush1.bf16.msra.mxu0 0
        %3938 = vmatprep.subr.bf16.mxu0 0
        %3939 = vmatpush1.bf16.msra.mxu0 0
        %3940 = vmatprep.subr.bf16.mxu0 0
        %3941 = vmatpush1.bf16.msra.mxu0 0
        %3942 = vmatprep.subr.bf16.mxu0 0
        %3943 = vmatpush1.bf16.msra.mxu0 0
        %3944 = vmatprep.mubr.bf16.mxu0 0
        %3945 = vmatmul.mubr.bf16.gmra.mrb[0].mxu0 %v3489
        %v3946 = vpop.f32.mrb[0].mxu0
        %v3947 = vadd.f32 %v3550, %v3946
        %v3948 = vpop.f32.mrb[0].mxu0
        %v3949 = vadd.f32 %v3554, %v3948
        %v3950 = vpop.f32.mrb[0].mxu0
        %v3951 = vadd.f32 %v3550, %v3950
        %v3952 = vpop.f32.mrb[0].mxu0
        %v3953 = vadd.f32 %v3554, %v3952
        %3954 = vmatprep.mubr.bf16.mxu0 0
        %3955 = vmatmul.mubr.bf16.gmra.mrb[0].mxu0 %v3490
        %v3956 = vpop.f32.mrb[0].mxu0
        %v3957 = vadd.f32 %v3550, %v3956
        %v3958 = vpop.f32.mrb[0].mxu0
        %v3959 = vadd.f32 %v3554, %v3958
        %v3960 = vpop.f32.mrb[0].mxu0
        %v3961 = vadd.f32 %v3550, %v3960
        %v3962 = vpop.f32.mrb[0].mxu0
        %v3963 = vadd.f32 %v3554, %v3962
        %3964 = vmatprep.mubr.bf16.mxu0 0
        %3965 = vmatmul.mubr.bf16.gmra.mrb[0].mxu0 %v3491
        %v3966 = vpop.f32.mrb[0].mxu0
        %v3967 = vadd.f32 %v3550, %v3966
        %v3968 = vpop.f32.mrb[0].mxu0
        %v3969 = vadd.f32 %v3554, %v3968
        %v3970 = vpop.f32.mrb[0].mxu0
        %v3971 = vadd.f32 %v3550, %v3970
        %v3972 = vpop.f32.mrb[0].mxu0
        %v3973 = vadd.f32 %v3554, %v3972
        %3974 = vmatprep.mubr.bf16.mxu0 0
        %3975 = vmatmul.mubr.bf16.gmra.mrb[0].mxu0 %v3492
        %v3976 = vpop.f32.mrb[0].mxu0
        %v3977 = vadd.f32 %v3550, %v3976
        %v3978 = vpop.f32.mrb[0].mxu0
        %v3979 = vadd.f32 %v3554, %v3978
        %v3980 = vpop.f32.mrb[0].mxu0
        %v3981 = vadd.f32 %v3550, %v3980
        %v3982 = vpop.f32.mrb[0].mxu0
        %v3983 = vadd.f32 %v3554, %v3982
        %3984 = vmatprep.mubr.bf16.mxu0 0
        %3985 = vmatmul.mubr.bf16.gmra.mrb[0].mxu0 %v3493
        %v3986 = vpop.f32.mrb[0].mxu0
        %v3987 = vadd.f32 %v3550, %v3986
        %v3988 = vpop.f32.mrb[0].mxu0
        %v3989 = vadd.f32 %v3554, %v3988
        %v3990 = vpop.f32.mrb[0].mxu0
        %v3991 = vadd.f32 %v3550, %v3990
        %v3992 = vpop.f32.mrb[0].mxu0
        %v3993 = vadd.f32 %v3554, %v3992
        %3994 = vmatprep.mubr.bf16.mxu0 0
        %3995 = vmatmul.mubr.bf16.gmra.mrb[0].mxu0 %v3494
        %v3996 = vpop.f32.mrb[0].mxu0
        %v3997 = vadd.f32 %v3550, %v3996
        %v3998 = vpop.f32.mrb[0].mxu0
        %v3999 = vadd.f32 %v3554, %v3998
        %v4000 = vpop.f32.mrb[0].mxu0
        %v4001 = vadd.f32 %v3550, %v4000
        %v4002 = vpop.f32.mrb[0].mxu0
        %v4003 = vadd.f32 %v3554, %v4002
        %4004 = vmatprep.mubr.bf16.mxu0 0
        %4005 = vmatmul.mubr.bf16.gmra.mrb[0].mxu0 %v3495
        %v4006 = vpop.f32.mrb[0].mxu0
        %v4007 = vadd.f32 %v3550, %v4006
        %v4008 = vpop.f32.mrb[0].mxu0
        %v4009 = vadd.f32 %v3554, %v4008
        %v4010 = vpop.f32.mrb[0].mxu0
        %v4011 = vadd.f32 %v3550, %v4010
        %v4012 = vpop.f32.mrb[0].mxu0
        %v4013 = vadd.f32 %v3554, %v4012
        %4014 = vmatprep.mubr.bf16.mxu0 0
        %4015 = vmatmul.mubr.bf16.gmra.mrb[0].mxu0 %v3496
        %v4016 = vpop.f32.mrb[0].mxu0
        %v4017 = vadd.f32 %v3550, %v4016
        %v4018 = vpop.f32.mrb[0].mxu0
        %v4019 = vadd.f32 %v3554, %v4018
        %v4020 = vpop.f32.mrb[0].mxu0
        %v4021 = vadd.f32 %v3550, %v4020
        %v4022 = vpop.f32.mrb[0].mxu0
        %v4023 = vadd.f32 %v3554, %v4022
        %4024 = vmatprep.mubr.bf16.mxu0 0
        %4025 = vmatmul.mubr.bf16.gmra.mrb[0].mxu0 %v3497
        %v4026 = vpop.f32.mrb[0].mxu0
        %v4027 = vadd.f32 %v3550, %v4026
        %v4028 = vpop.f32.mrb[0].mxu0
        %v4029 = vadd.f32 %v3554, %v4028
        %v4030 = vpop.f32.mrb[0].mxu0
        %v4031 = vadd.f32 %v3550, %v4030
        %v4032 = vpop.f32.mrb[0].mxu0
        %v4033 = vadd.f32 %v3554, %v4032
        %4034 = vmatprep.mubr.bf16.mxu0 0
        %4035 = vmatmul.mubr.bf16.gmra.mrb[0].mxu0 %v3498
        %v4036 = vpop.f32.mrb[0].mxu0
        %v4037 = vadd.f32 %v3550, %v4036
        %v4038 = vpop.f32.mrb[0].mxu0
        %v4039 = vadd.f32 %v3554, %v4038
        %v4040 = vpop.f32.mrb[0].mxu0
        %v4041 = vadd.f32 %v3550, %v4040
        %v4042 = vpop.f32.mrb[0].mxu0
        %v4043 = vadd.f32 %v3554, %v4042
        %4044 = vmatprep.mubr.bf16.mxu0 0
        %4045 = vmatmul.mubr.bf16.gmra.mrb[0].mxu0 %v3499
        %v4046 = vpop.f32.mrb[0].mxu0
        %v4047 = vadd.f32 %v3550, %v4046
        %v4048 = vpop.f32.mrb[0].mxu0
        %v4049 = vadd.f32 %v3554, %v4048
        %v4050 = vpop.f32.mrb[0].mxu0
        %v4051 = vadd.f32 %v3550, %v4050
        %v4052 = vpop.f32.mrb[0].mxu0
        %v4053 = vadd.f32 %v3554, %v4052
        %4054 = vmatprep.mubr.bf16.mxu0 0
        %4055 = vmatmul.mubr.bf16.gmra.mrb[0].mxu0 %v3500
        %v4056 = vpop.f32.mrb[0].mxu0
        %v4057 = vadd.f32 %v3550, %v4056
        %v4058 = vpop.f32.mrb[0].mxu0
        %v4059 = vadd.f32 %v3554, %v4058
        %v4060 = vpop.f32.mrb[0].mxu0
        %v4061 = vadd.f32 %v3550, %v4060
        %v4062 = vpop.f32.mrb[0].mxu0
        %v4063 = vadd.f32 %v3554, %v4062
        %4064 = vmatprep.mubr.bf16.mxu0 0
        %4065 = vmatmul.mubr.bf16.gmra.mrb[0].mxu0 %v3501
        %v4066 = vpop.f32.mrb[0].mxu0
        %v4067 = vadd.f32 %v3550, %v4066
        %v4068 = vpop.f32.mrb[0].mxu0
        %v4069 = vadd.f32 %v3554, %v4068
        %v4070 = vpop.f32.mrb[0].mxu0
        %v4071 = vadd.f32 %v3550, %v4070
        %v4072 = vpop.f32.mrb[0].mxu0
        %v4073 = vadd.f32 %v3554, %v4072
        %4074 = vmatprep.mubr.bf16.mxu0 0
        %4075 = vmatmul.mubr.bf16.gmra.mrb[0].mxu0 %v3502
        %v4076 = vpop.f32.mrb[0].mxu0
        %v4077 = vadd.f32 %v3550, %v4076
        %v4078 = vpop.f32.mrb[0].mxu0
        %v4079 = vadd.f32 %v3554, %v4078
        %v4080 = vpop.f32.mrb[0].mxu0
        %v4081 = vadd.f32 %v3550, %v4080
        %v4082 = vpop.f32.mrb[0].mxu0
        %v4083 = vadd.f32 %v3554, %v4082
        %4084 = vmatprep.mubr.bf16.mxu0 0
        %4085 = vmatmul.mubr.bf16.gmra.mrb[0].mxu0 %v3503
        %v4086 = vpop.f32.mrb[0].mxu0
        %v4087 = vadd.f32 %v3550, %v4086
        %v4088 = vpop.f32.mrb[0].mxu0
        %v4089 = vadd.f32 %v3554, %v4088
        %v4090 = vpop.f32.mrb[0].mxu0
        %v4091 = vadd.f32 %v3550, %v4090
        %v4092 = vpop.f32.mrb[0].mxu0
        %v4093 = vadd.f32 %v3554, %v4092
        %4094 = vmatprep.mubr.bf16.mxu0 0
        %4095 = vmatmul.mubr.bf16.gmra.mrb[0].mxu0 %v3504
        %v4096 = vpop.f32.mrb[0].mxu0
        %v4097 = vadd.f32 %v3550, %v4096
        %v4098 = vpop.f32.mrb[0].mxu0
        %v4099 = vadd.f32 %v3554, %v4098
        %v4100 = vpop.f32.mrb[0].mxu0
        %v4101 = vadd.f32 %v3550, %v4100
        %v4102 = vpop.f32.mrb[0].mxu0
        %v4103 = vadd.f32 %v3554, %v4102
        %4104 = vdwg.mxu0
        %v4105 = vunpack.c.l.bf16 %v373
        %v4106 = vunpack.c.h.bf16 %v373
        %v4107 = vunpack.c.l.bf16 %v374
        %v4108 = vunpack.c.h.bf16 %v374
        %v4109 = vunpack.c.l.bf16 %v375
        %v4110 = vunpack.c.h.bf16 %v375
        %v4111 = vunpack.c.l.bf16 %v376
        %v4112 = vunpack.c.h.bf16 %v376
        %v4113 = vunpack.c.l.bf16 %v377
        %v4114 = vunpack.c.h.bf16 %v377
        %v4115 = vunpack.c.l.bf16 %v378
        %v4116 = vunpack.c.h.bf16 %v378
        %v4117 = vunpack.c.l.bf16 %v379
        %v4118 = vunpack.c.h.bf16 %v379
        %v4119 = vunpack.c.l.bf16 %v380
        %v4120 = vunpack.c.h.bf16 %v380
        %v4121 = vunpack.c.l.bf16 %v381
        %v4122 = vunpack.c.h.bf16 %v381
        %v4123 = vunpack.c.l.bf16 %v382
        %v4124 = vunpack.c.h.bf16 %v382
        %v4125 = vunpack.c.l.bf16 %v383
        %v4126 = vunpack.c.h.bf16 %v383
        %v4127 = vunpack.c.l.bf16 %v384
        %v4128 = vunpack.c.h.bf16 %v384
        %v4129 = vunpack.c.l.bf16 %v385
        %v4130 = vunpack.c.h.bf16 %v385
        %v4131 = vunpack.c.l.bf16 %v386
        %v4132 = vunpack.c.h.bf16 %v386
        %v4133 = vunpack.c.l.bf16 %v387
        %v4134 = vunpack.c.h.bf16 %v387
        %v4135 = vunpack.c.l.bf16 %v388
        %v4136 = vunpack.c.h.bf16 %v388
        %v4137 = vunpack.c.l.bf16 %v389
        %v4138 = vunpack.c.h.bf16 %v389
        %v4139 = vunpack.c.l.bf16 %v390
        %v4140 = vunpack.c.h.bf16 %v390
        %v4141 = vunpack.c.l.bf16 %v391
        %v4142 = vunpack.c.h.bf16 %v391
        %v4143 = vunpack.c.l.bf16 %v392
        %v4144 = vunpack.c.h.bf16 %v392
        %v4145 = vunpack.c.l.bf16 %v393
        %v4146 = vunpack.c.h.bf16 %v393
        %v4147 = vunpack.c.l.bf16 %v394
        %v4148 = vunpack.c.h.bf16 %v394
        %v4149 = vunpack.c.l.bf16 %v395
        %v4150 = vunpack.c.h.bf16 %v395
        %v4151 = vunpack.c.l.bf16 %v396
        %v4152 = vunpack.c.h.bf16 %v396
        %v4153 = vunpack.c.l.bf16 %v397
        %v4154 = vunpack.c.h.bf16 %v397
        %v4155 = vunpack.c.l.bf16 %v398
        %v4156 = vunpack.c.h.bf16 %v398
        %v4157 = vunpack.c.l.bf16 %v399
        %v4158 = vunpack.c.h.bf16 %v399
        %v4159 = vunpack.c.l.bf16 %v400
        %v4160 = vunpack.c.h.bf16 %v400
        %v4161 = vunpack.c.l.bf16 %v401
        %v4162 = vunpack.c.h.bf16 %v401
        %v4163 = vunpack.c.l.bf16 %v402
        %v4164 = vunpack.c.h.bf16 %v402
        %v4165 = vunpack.c.l.bf16 %v403
        %v4166 = vunpack.c.h.bf16 %v403
        %v4167 = vunpack.c.l.bf16 %v404
        %v4168 = vunpack.c.h.bf16 %v404
        %v4169 = vunpack.c.l.bf16 %v405
        %v4170 = vunpack.c.h.bf16 %v405
        %v4171 = vunpack.c.l.bf16 %v406
        %v4172 = vunpack.c.h.bf16 %v406
        %v4173 = vunpack.c.l.bf16 %v407
        %v4174 = vunpack.c.h.bf16 %v407
        %v4175 = vunpack.c.l.bf16 %v408
        %v4176 = vunpack.c.h.bf16 %v408
        %v4177 = vunpack.c.l.bf16 %v409
        %v4178 = vunpack.c.h.bf16 %v409
        %v4179 = vunpack.c.l.bf16 %v410
        %v4180 = vunpack.c.h.bf16 %v410
        %v4181 = vunpack.c.l.bf16 %v411
        %v4182 = vunpack.c.h.bf16 %v411
        %v4183 = vunpack.c.l.bf16 %v412
        %v4184 = vunpack.c.h.bf16 %v412
        %v4185 = vunpack.c.l.bf16 %v413
        %v4186 = vunpack.c.h.bf16 %v413
        %v4187 = vunpack.c.l.bf16 %v414
        %v4188 = vunpack.c.h.bf16 %v414
        %v4189 = vunpack.c.l.bf16 %v415
        %v4190 = vunpack.c.h.bf16 %v415
        %v4191 = vunpack.c.l.bf16 %v416
        %v4192 = vunpack.c.h.bf16 %v416
        %v4193 = vunpack.c.l.bf16 %v417
        %v4194 = vunpack.c.h.bf16 %v417
        %v4195 = vunpack.c.l.bf16 %v418
        %v4196 = vunpack.c.h.bf16 %v418
        %v4197 = vunpack.c.l.bf16 %v419
        %v4198 = vunpack.c.h.bf16 %v419
        %v4199 = vunpack.c.l.bf16 %v420
        %v4200 = vunpack.c.h.bf16 %v420
        %v4201 = vunpack.c.l.bf16 %v421
        %v4202 = vunpack.c.h.bf16 %v421
        %v4203 = vunpack.c.l.bf16 %v422
        %v4204 = vunpack.c.h.bf16 %v422
        %v4205 = vunpack.c.l.bf16 %v423
        %v4206 = vunpack.c.h.bf16 %v423
        %v4207 = vunpack.c.l.bf16 %v424
        %v4208 = vunpack.c.h.bf16 %v424
        %v4209 = vunpack.c.l.bf16 %v425
        %v4210 = vunpack.c.h.bf16 %v425
        %v4211 = vunpack.c.l.bf16 %v426
        %v4212 = vunpack.c.h.bf16 %v426
        %v4213 = vunpack.c.l.bf16 %v427
        %v4214 = vunpack.c.h.bf16 %v427
        %v4215 = vunpack.c.l.bf16 %v428
        %v4216 = vunpack.c.h.bf16 %v428
        %v4217 = vunpack.c.l.bf16 %v429
        %v4218 = vunpack.c.h.bf16 %v429
        %v4219 = vunpack.c.l.bf16 %v430
        %v4220 = vunpack.c.h.bf16 %v430
        %v4221 = vunpack.c.l.bf16 %v431
        %v4222 = vunpack.c.h.bf16 %v431
        %v4223 = vunpack.c.l.bf16 %v432
        %v4224 = vunpack.c.h.bf16 %v432
        %v4225 = vunpack.c.l.bf16 %v433
        %v4226 = vunpack.c.h.bf16 %v433
        %v4227 = vunpack.c.l.bf16 %v434
        %v4228 = vunpack.c.h.bf16 %v434
        %v4229 = vunpack.c.l.bf16 %v435
        %v4230 = vunpack.c.h.bf16 %v435
        %v4231 = vunpack.c.l.bf16 %v436
        %v4232 = vunpack.c.h.bf16 %v436
        %v4233 = vadd.f32 %v4105, %v3754
        %v4234 = vadd.f32 %v4106, %v3756
        %v4235 = vadd.f32 %v4107, %v3947
        %v4236 = vadd.f32 %v4108, %v3949
        %v4237 = vadd.f32 %v4109, %v3758
        %v4238 = vadd.f32 %v4110, %v3760
        %v4239 = vadd.f32 %v4111, %v3951
        %v4240 = vadd.f32 %v4112, %v3953
        %v4241 = vadd.f32 %v4113, %v3764
        %v4242 = vadd.f32 %v4114, %v3766
        %v4243 = vadd.f32 %v4115, %v3957
        %v4244 = vadd.f32 %v4116, %v3959
        %v4245 = vadd.f32 %v4117, %v3768
        %v4246 = vadd.f32 %v4118, %v3770
        %v4247 = vadd.f32 %v4119, %v3961
        %v4248 = vadd.f32 %v4120, %v3963
        %v4249 = vadd.f32 %v4121, %v3774
        %v4250 = vadd.f32 %v4122, %v3776
        %v4251 = vadd.f32 %v4123, %v3967
        %v4252 = vadd.f32 %v4124, %v3969
        %v4253 = vadd.f32 %v4125, %v3778
        %v4254 = vadd.f32 %v4126, %v3780
        %v4255 = vadd.f32 %v4127, %v3971
        %v4256 = vadd.f32 %v4128, %v3973
        %v4257 = vadd.f32 %v4129, %v3784
        %v4258 = vadd.f32 %v4130, %v3786
        %v4259 = vadd.f32 %v4131, %v3977
        %v4260 = vadd.f32 %v4132, %v3979
        %v4261 = vadd.f32 %v4133, %v3788
        %v4262 = vadd.f32 %v4134, %v3790
        %v4263 = vadd.f32 %v4135, %v3981
        %v4264 = vadd.f32 %v4136, %v3983
        %v4265 = vadd.f32 %v4137, %v3794
        %v4266 = vadd.f32 %v4138, %v3796
        %v4267 = vadd.f32 %v4139, %v3987
        %v4268 = vadd.f32 %v4140, %v3989
        %v4269 = vadd.f32 %v4141, %v3798
        %v4270 = vadd.f32 %v4142, %v3800
        %v4271 = vadd.f32 %v4143, %v3991
        %v4272 = vadd.f32 %v4144, %v3993
        %v4273 = vadd.f32 %v4145, %v3804
        %v4274 = vadd.f32 %v4146, %v3806
        %v4275 = vadd.f32 %v4147, %v3997
        %v4276 = vadd.f32 %v4148, %v3999
        %v4277 = vadd.f32 %v4149, %v3808
        %v4278 = vadd.f32 %v4150, %v3810
        %v4279 = vadd.f32 %v4151, %v4001
        %v4280 = vadd.f32 %v4152, %v4003
        %v4281 = vadd.f32 %v4153, %v3814
        %v4282 = vadd.f32 %v4154, %v3816
        %v4283 = vadd.f32 %v4155, %v4007
        %v4284 = vadd.f32 %v4156, %v4009
        %v4285 = vadd.f32 %v4157, %v3818
        %v4286 = vadd.f32 %v4158, %v3820
        %v4287 = vadd.f32 %v4159, %v4011
        %v4288 = vadd.f32 %v4160, %v4013
        %v4289 = vadd.f32 %v4161, %v3824
        %v4290 = vadd.f32 %v4162, %v3826
        %v4291 = vadd.f32 %v4163, %v4017
        %v4292 = vadd.f32 %v4164, %v4019
        %v4293 = vadd.f32 %v4165, %v3828
        %v4294 = vadd.f32 %v4166, %v3830
        %v4295 = vadd.f32 %v4167, %v4021
        %v4296 = vadd.f32 %v4168, %v4023
        %v4297 = vadd.f32 %v4169, %v3834
        %v4298 = vadd.f32 %v4170, %v3836
        %v4299 = vadd.f32 %v4171, %v4027
        %v4300 = vadd.f32 %v4172, %v4029
        %v4301 = vadd.f32 %v4173, %v3838
        %v4302 = vadd.f32 %v4174, %v3840
        %v4303 = vadd.f32 %v4175, %v4031
        %v4304 = vadd.f32 %v4176, %v4033
        %v4305 = vadd.f32 %v4177, %v3844
        %v4306 = vadd.f32 %v4178, %v3846
        %v4307 = vadd.f32 %v4179, %v4037
        %v4308 = vadd.f32 %v4180, %v4039
        %v4309 = vadd.f32 %v4181, %v3848
        %v4310 = vadd.f32 %v4182, %v3850
        %v4311 = vadd.f32 %v4183, %v4041
        %v4312 = vadd.f32 %v4184, %v4043
        %v4313 = vadd.f32 %v4185, %v3854
        %v4314 = vadd.f32 %v4186, %v3856
        %v4315 = vadd.f32 %v4187, %v4047
        %v4316 = vadd.f32 %v4188, %v4049
        %v4317 = vadd.f32 %v4189, %v3858
        %v4318 = vadd.f32 %v4190, %v3860
        %v4319 = vadd.f32 %v4191, %v4051
        %v4320 = vadd.f32 %v4192, %v4053
        %v4321 = vadd.f32 %v4193, %v3864
        %v4322 = vadd.f32 %v4194, %v3866
        %v4323 = vadd.f32 %v4195, %v4057
        %v4324 = vadd.f32 %v4196, %v4059
        %v4325 = vadd.f32 %v4197, %v3868
        %v4326 = vadd.f32 %v4198, %v3870
        %v4327 = vadd.f32 %v4199, %v4061
        %v4328 = vadd.f32 %v4200, %v4063
        %v4329 = vadd.f32 %v4201, %v3874
        %v4330 = vadd.f32 %v4202, %v3876
        %v4331 = vadd.f32 %v4203, %v4067
        %v4332 = vadd.f32 %v4204, %v4069
        %v4333 = vadd.f32 %v4205, %v3878
        %v4334 = vadd.f32 %v4206, %v3880
        %v4335 = vadd.f32 %v4207, %v4071
        %v4336 = vadd.f32 %v4208, %v4073
        %v4337 = vadd.f32 %v4209, %v3884
        %v4338 = vadd.f32 %v4210, %v3886
        %v4339 = vadd.f32 %v4211, %v4077
        %v4340 = vadd.f32 %v4212, %v4079
        %v4341 = vadd.f32 %v4213, %v3888
        %v4342 = vadd.f32 %v4214, %v3890
        %v4343 = vadd.f32 %v4215, %v4081
        %v4344 = vadd.f32 %v4216, %v4083
        %v4345 = vadd.f32 %v4217, %v3894
        %v4346 = vadd.f32 %v4218, %v3896
        %v4347 = vadd.f32 %v4219, %v4087
        %v4348 = vadd.f32 %v4220, %v4089
        %v4349 = vadd.f32 %v4221, %v3898
        %v4350 = vadd.f32 %v4222, %v3900
        %v4351 = vadd.f32 %v4223, %v4091
        %v4352 = vadd.f32 %v4224, %v4093
        %v4353 = vadd.f32 %v4225, %v3904
        %v4354 = vadd.f32 %v4226, %v3906
        %v4355 = vadd.f32 %v4227, %v4097
        %v4356 = vadd.f32 %v4228, %v4099
        %v4357 = vadd.f32 %v4229, %v3908
        %v4358 = vadd.f32 %v4230, %v3910
        %v4359 = vadd.f32 %v4231, %v4101
        %v4360 = vadd.f32 %v4232, %v4103
        %v4361 = vmax.f32 %v4233, 0.0
        %v4362 = vmax.f32 %v4234, 0.0
        %v4363 = vmax.f32 %v4235, 0.0
        %v4364 = vmax.f32 %v4236, 0.0
        %v4365 = vmax.f32 %v4237, 0.0
        %v4366 = vmax.f32 %v4238, 0.0
        %v4367 = vmax.f32 %v4239, 0.0
        %v4368 = vmax.f32 %v4240, 0.0
        %v4369 = vmax.f32 %v4241, 0.0
        %v4370 = vmax.f32 %v4242, 0.0
        %v4371 = vmax.f32 %v4243, 0.0
        %v4372 = vmax.f32 %v4244, 0.0
        %v4373 = vmax.f32 %v4245, 0.0
        %v4374 = vmax.f32 %v4246, 0.0
        %v4375 = vmax.f32 %v4247, 0.0
        %v4376 = vmax.f32 %v4248, 0.0
        %v4377 = vmax.f32 %v4249, 0.0
        %v4378 = vmax.f32 %v4250, 0.0
        %v4379 = vmax.f32 %v4251, 0.0
        %v4380 = vmax.f32 %v4252, 0.0
        %v4381 = vmax.f32 %v4253, 0.0
        %v4382 = vmax.f32 %v4254, 0.0
        %v4383 = vmax.f32 %v4255, 0.0
        %v4384 = vmax.f32 %v4256, 0.0
        %v4385 = vmax.f32 %v4257, 0.0
        %v4386 = vmax.f32 %v4258, 0.0
        %v4387 = vmax.f32 %v4259, 0.0
        %v4388 = vmax.f32 %v4260, 0.0
        %v4389 = vmax.f32 %v4261, 0.0
        %v4390 = vmax.f32 %v4262, 0.0
        %v4391 = vmax.f32 %v4263, 0.0
        %v4392 = vmax.f32 %v4264, 0.0
        %v4393 = vmax.f32 %v4265, 0.0
        %v4394 = vmax.f32 %v4266, 0.0
        %v4395 = vmax.f32 %v4267, 0.0
        %v4396 = vmax.f32 %v4268, 0.0
        %v4397 = vmax.f32 %v4269, 0.0
        %v4398 = vmax.f32 %v4270, 0.0
        %v4399 = vmax.f32 %v4271, 0.0
        %v4400 = vmax.f32 %v4272, 0.0
        %v4401 = vmax.f32 %v4273, 0.0
        %v4402 = vmax.f32 %v4274, 0.0
        %v4403 = vmax.f32 %v4275, 0.0
        %v4404 = vmax.f32 %v4276, 0.0
        %v4405 = vmax.f32 %v4277, 0.0
        %v4406 = vmax.f32 %v4278, 0.0
        %v4407 = vmax.f32 %v4279, 0.0
        %v4408 = vmax.f32 %v4280, 0.0
        %v4409 = vmax.f32 %v4281, 0.0
        %v4410 = vmax.f32 %v4282, 0.0
        %v4411 = vmax.f32 %v4283, 0.0
        %v4412 = vmax.f32 %v4284, 0.0
        %v4413 = vmax.f32 %v4285, 0.0
        %v4414 = vmax.f32 %v4286, 0.0
        %v4415 = vmax.f32 %v4287, 0.0
        %v4416 = vmax.f32 %v4288, 0.0
        %v4417 = vmax.f32 %v4289, 0.0
        %v4418 = vmax.f32 %v4290, 0.0
        %v4419 = vmax.f32 %v4291, 0.0
        %v4420 = vmax.f32 %v4292, 0.0
        %v4421 = vmax.f32 %v4293, 0.0
        %v4422 = vmax.f32 %v4294, 0.0
        %v4423 = vmax.f32 %v4295, 0.0
        %v4424 = vmax.f32 %v4296, 0.0
        %v4425 = vmax.f32 %v4297, 0.0
        %v4426 = vmax.f32 %v4298, 0.0
        %v4427 = vmax.f32 %v4299, 0.0
        %v4428 = vmax.f32 %v4300, 0.0
        %v4429 = vmax.f32 %v4301, 0.0
        %v4430 = vmax.f32 %v4302, 0.0
        %v4431 = vmax.f32 %v4303, 0.0
        %v4432 = vmax.f32 %v4304, 0.0
        %v4433 = vmax.f32 %v4305, 0.0
        %v4434 = vmax.f32 %v4306, 0.0
        %v4435 = vmax.f32 %v4307, 0.0
        %v4436 = vmax.f32 %v4308, 0.0
        %v4437 = vmax.f32 %v4309, 0.0
        %v4438 = vmax.f32 %v4310, 0.0
        %v4439 = vmax.f32 %v4311, 0.0
        %v4440 = vmax.f32 %v4312, 0.0
        %v4441 = vmax.f32 %v4313, 0.0
        %v4442 = vmax.f32 %v4314, 0.0
        %v4443 = vmax.f32 %v4315, 0.0
        %v4444 = vmax.f32 %v4316, 0.0
        %v4445 = vmax.f32 %v4317, 0.0
        %v4446 = vmax.f32 %v4318, 0.0
        %v4447 = vmax.f32 %v4319, 0.0
        %v4448 = vmax.f32 %v4320, 0.0
        %v4449 = vmax.f32 %v4321, 0.0
        %v4450 = vmax.f32 %v4322, 0.0
        %v4451 = vmax.f32 %v4323, 0.0
        %v4452 = vmax.f32 %v4324, 0.0
        %v4453 = vmax.f32 %v4325, 0.0
        %v4454 = vmax.f32 %v4326, 0.0
        %v4455 = vmax.f32 %v4327, 0.0
        %v4456 = vmax.f32 %v4328, 0.0
        %v4457 = vmax.f32 %v4329, 0.0
        %v4458 = vmax.f32 %v4330, 0.0
        %v4459 = vmax.f32 %v4331, 0.0
        %v4460 = vmax.f32 %v4332, 0.0
        %v4461 = vmax.f32 %v4333, 0.0
        %v4462 = vmax.f32 %v4334, 0.0
        %v4463 = vmax.f32 %v4335, 0.0
        %v4464 = vmax.f32 %v4336, 0.0
        %v4465 = vmax.f32 %v4337, 0.0
        %v4466 = vmax.f32 %v4338, 0.0
        %v4467 = vmax.f32 %v4339, 0.0
        %v4468 = vmax.f32 %v4340, 0.0
        %v4469 = vmax.f32 %v4341, 0.0
        %v4470 = vmax.f32 %v4342, 0.0
        %v4471 = vmax.f32 %v4343, 0.0
        %v4472 = vmax.f32 %v4344, 0.0
        %v4473 = vmax.f32 %v4345, 0.0
        %v4474 = vmax.f32 %v4346, 0.0
        %v4475 = vmax.f32 %v4347, 0.0
        %v4476 = vmax.f32 %v4348, 0.0
        %v4477 = vmax.f32 %v4349, 0.0
        %v4478 = vmax.f32 %v4350, 0.0
        %v4479 = vmax.f32 %v4351, 0.0
        %v4480 = vmax.f32 %v4352, 0.0
        %v4481 = vmax.f32 %v4353, 0.0
        %v4482 = vmax.f32 %v4354, 0.0
        %v4483 = vmax.f32 %v4355, 0.0
        %v4484 = vmax.f32 %v4356, 0.0
        %v4485 = vmax.f32 %v4357, 0.0
        %v4486 = vmax.f32 %v4358, 0.0
        %v4487 = vmax.f32 %v4359, 0.0
        %v4488 = vmax.f32 %v4360, 0.0
        %4489 = vst [vmem:[%s350] sm:$0xff] %v4361
        %4490 = vst [vmem:[%s350 + $0x8] sm:$0xff] %v4362
        %4491 = vst [vmem:[%s350 + $0x10] sm:$0xff] %v4363
        %4492 = vst [vmem:[%s350 + $0x18] sm:$0xff] %v4364
        %4493 = vst [vmem:[%s350 + $0x20] sm:$0xff] %v4365
        %4494 = vst [vmem:[%s350 + $0x28] sm:$0xff] %v4366
        %4495 = vst [vmem:[%s350 + $0x30] sm:$0xff] %v4367
        %4496 = vst [vmem:[%s350 + $0x38] sm:$0xff] %v4368
        %4497 = vst [vmem:[%s350 + $0x40] sm:$0xff] %v4369
        %4498 = vst [vmem:[%s350 + $0x48] sm:$0xff] %v4370
        %4499 = vst [vmem:[%s350 + $0x50] sm:$0xff] %v4371
        %4500 = vst [vmem:[%s350 + $0x58] sm:$0xff] %v4372
        %4501 = vst [vmem:[%s350 + $0x60] sm:$0xff] %v4373
        %4502 = vst [vmem:[%s350 + $0x68] sm:$0xff] %v4374
        %4503 = vst [vmem:[%s350 + $0x70] sm:$0xff] %v4375
        %4504 = vst [vmem:[%s350 + $0x78] sm:$0xff] %v4376
        %4505 = vst [vmem:[%s350 + $0x80] sm:$0xff] %v4377
        %4506 = vst [vmem:[%s350 + $0x88] sm:$0xff] %v4378
        %4507 = vst [vmem:[%s350 + $0x90] sm:$0xff] %v4379
        %4508 = vst [vmem:[%s350 + $0x98] sm:$0xff] %v4380
        %4509 = vst [vmem:[%s350 + $0xa0] sm:$0xff] %v4381
        %4510 = vst [vmem:[%s350 + $0xa8] sm:$0xff] %v4382
        %4511 = vst [vmem:[%s350 + $0xb0] sm:$0xff] %v4383
        %4512 = vst [vmem:[%s350 + $0xb8] sm:$0xff] %v4384
        %4513 = vst [vmem:[%s350 + $0xc0] sm:$0xff] %v4385
        %4514 = vst [vmem:[%s350 + $0xc8] sm:$0xff] %v4386
        %4515 = vst [vmem:[%s350 + $0xd0] sm:$0xff] %v4387
        %4516 = vst [vmem:[%s350 + $0xd8] sm:$0xff] %v4388
        %4517 = vst [vmem:[%s350 + $0xe0] sm:$0xff] %v4389
        %4518 = vst [vmem:[%s350 + $0xe8] sm:$0xff] %v4390
        %4519 = vst [vmem:[%s350 + $0xf0] sm:$0xff] %v4391
        %4520 = vst [vmem:[%s350 + $0xf8] sm:$0xff] %v4392
        %4521 = vst [vmem:[%s350 + $0x100] sm:$0xff] %v4393
        %4522 = vst [vmem:[%s350 + $0x108] sm:$0xff] %v4394
        %4523 = vst [vmem:[%s350 + $0x110] sm:$0xff] %v4395
        %4524 = vst [vmem:[%s350 + $0x118] sm:$0xff] %v4396
        %4525 = vst [vmem:[%s350 + $0x120] sm:$0xff] %v4397
        %4526 = vst [vmem:[%s350 + $0x128] sm:$0xff] %v4398
        %4527 = vst [vmem:[%s350 + $0x130] sm:$0xff] %v4399
        %4528 = vst [vmem:[%s350 + $0x138] sm:$0xff] %v4400
        %4529 = vst [vmem:[%s350 + $0x140] sm:$0xff] %v4401
        %4530 = vst [vmem:[%s350 + $0x148] sm:$0xff] %v4402
        %4531 = vst [vmem:[%s350 + $0x150] sm:$0xff] %v4403
        %4532 = vst [vmem:[%s350 + $0x158] sm:$0xff] %v4404
        %4533 = vst [vmem:[%s350 + $0x160] sm:$0xff] %v4405
        %4534 = vst [vmem:[%s350 + $0x168] sm:$0xff] %v4406
        %4535 = vst [vmem:[%s350 + $0x170] sm:$0xff] %v4407
        %4536 = vst [vmem:[%s350 + $0x178] sm:$0xff] %v4408
        %4537 = vst [vmem:[%s350 + $0x180] sm:$0xff] %v4409
        %4538 = vst [vmem:[%s350 + $0x188] sm:$0xff] %v4410
        %4539 = vst [vmem:[%s350 + $0x190] sm:$0xff] %v4411
        %4540 = vst [vmem:[%s350 + $0x198] sm:$0xff] %v4412
        %4541 = vst [vmem:[%s350 + $0x1a0] sm:$0xff] %v4413
        %4542 = vst [vmem:[%s350 + $0x1a8] sm:$0xff] %v4414
        %4543 = vst [vmem:[%s350 + $0x1b0] sm:$0xff] %v4415
        %4544 = vst [vmem:[%s350 + $0x1b8] sm:$0xff] %v4416
        %4545 = vst [vmem:[%s350 + $0x1c0] sm:$0xff] %v4417
        %4546 = vst [vmem:[%s350 + $0x1c8] sm:$0xff] %v4418
        %4547 = vst [vmem:[%s350 + $0x1d0] sm:$0xff] %v4419
        %4548 = vst [vmem:[%s350 + $0x1d8] sm:$0xff] %v4420
        %4549 = vst [vmem:[%s350 + $0x1e0] sm:$0xff] %v4421
        %4550 = vst [vmem:[%s350 + $0x1e8] sm:$0xff] %v4422
        %4551 = vst [vmem:[%s350 + $0x1f0] sm:$0xff] %v4423
        %4552 = vst [vmem:[%s350 + $0x1f8] sm:$0xff] %v4424
        %4553 = vst [vmem:[%s350 + $0x200] sm:$0xff] %v4425
        %4554 = vst [vmem:[%s350 + $0x208] sm:$0xff] %v4426
        %4555 = vst [vmem:[%s350 + $0x210] sm:$0xff] %v4427
        %4556 = vst [vmem:[%s350 + $0x218] sm:$0xff] %v4428
        %4557 = vst [vmem:[%s350 + $0x220] sm:$0xff] %v4429
        %4558 = vst [vmem:[%s350 + $0x228] sm:$0xff] %v4430
        %4559 = vst [vmem:[%s350 + $0x230] sm:$0xff] %v4431
        %4560 = vst [vmem:[%s350 + $0x238] sm:$0xff] %v4432
        %4561 = vst [vmem:[%s350 + $0x240] sm:$0xff] %v4433
        %4562 = vst [vmem:[%s350 + $0x248] sm:$0xff] %v4434
        %4563 = vst [vmem:[%s350 + $0x250] sm:$0xff] %v4435
        %4564 = vst [vmem:[%s350 + $0x258] sm:$0xff] %v4436
        %4565 = vst [vmem:[%s350 + $0x260] sm:$0xff] %v4437
        %4566 = vst [vmem:[%s350 + $0x268] sm:$0xff] %v4438
        %4567 = vst [vmem:[%s350 + $0x270] sm:$0xff] %v4439
        %4568 = vst [vmem:[%s350 + $0x278] sm:$0xff] %v4440
        %4569 = vst [vmem:[%s350 + $0x280] sm:$0xff] %v4441
        %4570 = vst [vmem:[%s350 + $0x288] sm:$0xff] %v4442
        %4571 = vst [vmem:[%s350 + $0x290] sm:$0xff] %v4443
        %4572 = vst [vmem:[%s350 + $0x298] sm:$0xff] %v4444
        %4573 = vst [vmem:[%s350 + $0x2a0] sm:$0xff] %v4445
        %4574 = vst [vmem:[%s350 + $0x2a8] sm:$0xff] %v4446
        %4575 = vst [vmem:[%s350 + $0x2b0] sm:$0xff] %v4447
        %4576 = vst [vmem:[%s350 + $0x2b8] sm:$0xff] %v4448
        %4577 = vst [vmem:[%s350 + $0x2c0] sm:$0xff] %v4449
        %4578 = vst [vmem:[%s350 + $0x2c8] sm:$0xff] %v4450
        %4579 = vst [vmem:[%s350 + $0x2d0] sm:$0xff] %v4451
        %4580 = vst [vmem:[%s350 + $0x2d8] sm:$0xff] %v4452
        %4581 = vst [vmem:[%s350 + $0x2e0] sm:$0xff] %v4453
        %4582 = vst [vmem:[%s350 + $0x2e8] sm:$0xff] %v4454
        %4583 = vst [vmem:[%s350 + $0x2f0] sm:$0xff] %v4455
        %4584 = vst [vmem:[%s350 + $0x2f8] sm:$0xff] %v4456
        %4585 = vst [vmem:[%s350 + $0x300] sm:$0xff] %v4457
        %4586 = vst [vmem:[%s350 + $0x308] sm:$0xff] %v4458
        %4587 = vst [vmem:[%s350 + $0x310] sm:$0xff] %v4459
        %4588 = vst [vmem:[%s350 + $0x318] sm:$0xff] %v4460
        %4589 = vst [vmem:[%s350 + $0x320] sm:$0xff] %v4461
        %4590 = vst [vmem:[%s350 + $0x328] sm:$0xff] %v4462
        %4591 = vst [vmem:[%s350 + $0x330] sm:$0xff] %v4463
        %4592 = vst [vmem:[%s350 + $0x338] sm:$0xff] %v4464
        %4593 = vst [vmem:[%s350 + $0x340] sm:$0xff] %v4465
        %4594 = vst [vmem:[%s350 + $0x348] sm:$0xff] %v4466
        %4595 = vst [vmem:[%s350 + $0x350] sm:$0xff] %v4467
        %4596 = vst [vmem:[%s350 + $0x358] sm:$0xff] %v4468
        %4597 = vst [vmem:[%s350 + $0x360] sm:$0xff] %v4469
        %4598 = vst [vmem:[%s350 + $0x368] sm:$0xff] %v4470
        %4599 = vst [vmem:[%s350 + $0x370] sm:$0xff] %v4471
        %4600 = vst [vmem:[%s350 + $0x378] sm:$0xff] %v4472
        %4601 = vst [vmem:[%s350 + $0x380] sm:$0xff] %v4473
        %4602 = vst [vmem:[%s350 + $0x388] sm:$0xff] %v4474
        %4603 = vst [vmem:[%s350 + $0x390] sm:$0xff] %v4475
        %4604 = vst [vmem:[%s350 + $0x398] sm:$0xff] %v4476
        %4605 = vst [vmem:[%s350 + $0x3a0] sm:$0xff] %v4477
        %4606 = vst [vmem:[%s350 + $0x3a8] sm:$0xff] %v4478
        %4607 = vst [vmem:[%s350 + $0x3b0] sm:$0xff] %v4479
        %4608 = vst [vmem:[%s350 + $0x3b8] sm:$0xff] %v4480
        %4609 = vst [vmem:[%s350 + $0x3c0] sm:$0xff] %v4481
        %4610 = vst [vmem:[%s350 + $0x3c8] sm:$0xff] %v4482
        %4611 = vst [vmem:[%s350 + $0x3d0] sm:$0xff] %v4483
        %4612 = vst [vmem:[%s350 + $0x3d8] sm:$0xff] %v4484
        %4613 = vst [vmem:[%s350 + $0x3e0] sm:$0xff] %v4485
        %4614 = vst [vmem:[%s350 + $0x3e8] sm:$0xff] %v4486
        %4615 = vst [vmem:[%s350 + $0x3f0] sm:$0xff] %v4487
        %4616 = vst [vmem:[%s350 + $0x3f8] sm:$0xff] %v4488
        %s4617 = sand.u32 %s226, 1
        %s4618 = scalar_lea.sflag [#allocation3], %s4617
        %s4619 = sand.u32 %s226, 1
        %s4620 = smul.addr %s4619, 1024
        %s4621 = scalar_lea.vmem [#allocation2], %s4620
        // Predicated region
        $region53: #{resnet_block.1} parent=51 // pred_check
          %p4622 = pneg %p236
        $region54: #{resnet_block.1} parent=51 // pred_check_branch
          %4624 = sbr.rel (%p4622) target = $region56
        $region55: #{resnet_block.1} parent=51 // pred_region
          %s4625 = smul.u32 16, %s27
          %s4627 = ssub.s32 16384, 16384
          %4628 = vsyncadd %s4618, %s4627
          %s4629 = smul.addr %s4625, 8
          %s4630 = smul.addr %s26, 128
          %s4631 = sadd.s32 %s4629, %s4630
          %s4632 = smul.addr %s4631, 128
          %s4633 = scalar_lea.hbm %s8, %s4632
          %s4634 = sshll.u32 %s4621, 4
          %s4635 = int_to_ptr.vmem [resolvable:$true] %s4634
          %4640 = dma.vmem_to_hbm [thread:$0]  %s4635, 16384, %s4633, %s4618, 512, 512, 32
        $region56: #{resnet_block.1} parent=51 // pred_fallthru
          _
      $region52: #{resnet_block.1} parent=5 // pred_fallthru
        _
      %p4641 = scmp.le.s32.totalorder 2, %s17
      // Predicated region
      $region57: #{resnet_block.1} parent=5 // pred_check
        %p4642 = pneg %p4641
      $region58: #{resnet_block.1} parent=5 // pred_check_branch
        %4644 = sbr.rel (%p4642) target = $region60
      $region59: #{resnet_block.1} parent=5 // pred_region
        %s4645 = ssub.s32 %s17, 2
        // Predicated region
        $region61: #{resnet_block.1} parent=59 // pred_check
          %p4646 = pneg %p242
        $region62: #{resnet_block.1} parent=59 // pred_check_branch
          %4648 = sbr.rel (%p4646) target = $region64
        $region63: #{resnet_block.1} parent=59 // pred_region
          %s4649 = sand.u32 %s227, 1
          %s4650 = scalar_lea.sflag [#allocation3], %s4649
          %s4651 = sand.u32 %s227, 1
          %s4652 = smul.addr %s4651, 1024
          %s4653 = scalar_lea.vmem [#allocation2], %s4652
          %4654 = dma.done %s4650, 16384
        $region64: #{resnet_block.1} parent=59 // pred_fallthru
          _
      $region60: #{resnet_block.1} parent=5 // pred_fallthru
        _
    $region6: #{resnet_block.1} parent=1 // loop_footer
      %s21 = sadd.s32 1, %s17
    $region7: #{resnet_block.1} parent=1 // loop_footer_branch
      %16 = sbr.rel target = $region3
    $region8: #{resnet_block.1} parent=1 // loop_exit
      _
    %4655 = vsyncpa [#allocation3], 1
    %s4656 = scalar_lea.sflag [#allocation3], 1
    %4657 = vsyncpa %s4656, 1

</llo_original>
